<compile_context>
chip_gen: v7x
topology: tpu7x:2x2x1
jax: 0.10.0
libtpu: 0.0.40
codegen_flags: <defaults>
</compile_context>

<pallas_src>
import functools
import math

import jax
import jax.numpy as jnp
from jax import lax
from jax.experimental import pallas as pl
from jax.experimental.pallas import tpu as pltpu


def _round_up(x, m):
    return ((x + m - 1) // m) * m


def _decoder_kernel(q_ref, k_ref, v_ref, kpm_ref,
                    w_in_ref, b_in_ref, w_out_ref, b_out_ref,
                    g1_ref, be1_ref, g2_ref, be2_ref,
                    w_fc_ref, b_fc_ref, w_pr_ref, b_pr_ref,
                    q_out_ref, attn_ref, *, n_head):
    TL, E = q_ref.shape
    S = k_ref.shape[0]
    Dh = E // n_head
    scale = 1.0 / math.sqrt(Dh)

    xq_f32 = q_ref[...].astype(jnp.float32)          # residual / LN path (exact)
    xq = xq_f32.astype(jnp.bfloat16)                 # MXU operand
    xk = k_ref[...].astype(jnp.bfloat16)             # (S, E)
    xv = v_ref[...].astype(jnp.bfloat16)             # (S, E)

    w_in = w_in_ref[...]                             # (E, 3E) bf16 (pre-transposed)
    b_in = b_in_ref[...]                             # (1, 3E) f32

    # Packed in-projection (matches torch _in_projection_packed); f32 accumulation.
    Q = (jnp.dot(xq, w_in[:, 0:E], preferred_element_type=jnp.float32)
         + b_in[:, 0:E]) * scale
    K = jnp.dot(xk, w_in[:, E:2 * E], preferred_element_type=jnp.float32) + b_in[:, E:2 * E]
    V = jnp.dot(xv, w_in[:, 2 * E:3 * E], preferred_element_type=jnp.float32) + b_in[:, 2 * E:3 * E]
    Qb = Q.astype(jnp.bfloat16)
    Kb = K.astype(jnp.bfloat16)
    Vb = V.astype(jnp.bfloat16)

    # key_padding_mask -> additive mask.  NOTE: a fully-masked row yields a uniform
    # 1/S attention row here (torch softmax over all -inf would give NaN).
    neg = jnp.where(kpm_ref[...] > 0.5, jnp.float32(-1e30), jnp.float32(0.0))  # (1, S)

    attn_sum = jnp.zeros((TL, S), jnp.float32)
    ctx_parts = []
    for h in range(n_head):                          # heads unrolled statically
        qh = Qb[:, h * Dh:(h + 1) * Dh]
        kh = Kb[:, h * Dh:(h + 1) * Dh]
        vh = Vb[:, h * Dh:(h + 1) * Dh]
        s = lax.dot_general(qh, kh, (((1,), (1,)), ((), ())),
                            preferred_element_type=jnp.float32)               # (TL, S)
        s = s + neg
        s = s - jnp.max(s, axis=-1, keepdims=True)
        e = jnp.exp(s)
        # softmax divide on the EUP (free slot) instead of a VALU divide
        p = e * pl.reciprocal(jnp.sum(e, axis=-1, keepdims=True), approx=True)
        attn_sum = attn_sum + p
        ctx_parts.append(jnp.dot(p.astype(jnp.bfloat16), vh,
                                 preferred_element_type=jnp.float32))          # (TL, Dh)

    # One full-K (TL,E)@(E,E) out-projection instead of n_head skinny K=Dh matmuls.
    ctx = jnp.concatenate(ctx_parts, axis=-1).astype(jnp.bfloat16)             # (TL, E)
    attn_out = jnp.dot(ctx, w_out_ref[...],
                       preferred_element_type=jnp.float32) + b_out_ref[...]

    # attn weights averaged over heads (torch average_attn_weights=True default)
    attn_ref[...] = (attn_sum * (1.0 / n_head)).astype(attn_ref.dtype)

    def layer_norm(x, g, b):
        mu = jnp.mean(x, axis=-1, keepdims=True)
        var = jnp.mean(jnp.square(x - mu), axis=-1, keepdims=True)
        return (x - mu) * lax.rsqrt(var + 1e-5) * g + b

    # q = q + ln_1(attn_out)
    q1 = xq_f32 + layer_norm(attn_out, g1_ref[...], be1_ref[...])
    # q = q + mlp(ln_2(q)) with QuickGELU (elementwise math in f32, matmuls in bf16)
    h1 = layer_norm(q1, g2_ref[...], be2_ref[...]).astype(jnp.bfloat16)
    fc = jnp.dot(h1, w_fc_ref[...], preferred_element_type=jnp.float32) + b_fc_ref[...]
    act = (fc * jax.nn.sigmoid(1.702 * fc)).astype(jnp.bfloat16)
    proj = jnp.dot(act, w_pr_ref[...], preferred_element_type=jnp.float32) + b_pr_ref[...]
    q_out_ref[...] = (q1 + proj).astype(q_out_ref.dtype)


def _vmem_limit_bytes(weight_args, TL, S, E):
    """Weights (x2 for safety) + pipelined activation tiles + in-kernel f32 temps."""
    w_bytes = sum(math.prod(w.shape) * w.dtype.itemsize for w in weight_args)
    act_bytes = 4 * (6 * TL * E + 8 * S * E + 4 * TL * S + 3 * TL * 4 * E)
    est = 2 * w_bytes + 2 * act_bytes + (8 << 20)
    return int(min(max(est, 32 << 20), 128 << 20))


def _pallas_forward(qb, kb, vb, kpm, weight_args, *, n_head, TL, single_buffer_weights):
    N, L_pad, E = qb.shape
    S = kb.shape[1]
    num_l = L_pad // TL

    def widx(b, l):
        return (0, 0)

    if single_buffer_weights:
        # Weights never change across the grid -> single-buffered residency.
        weight_specs = [pl.BlockSpec(w.shape, widx, pipeline_mode=pl.Buffered(1))
                        for w in weight_args]
    else:
        weight_specs = [pl.BlockSpec(w.shape, widx) for w in weight_args]

    in_specs = [
        pl.BlockSpec((None, TL, E), lambda b, l: (b, l, 0)),   # q tile
        pl.BlockSpec((None, S, E), lambda b, l: (b, 0, 0)),    # k (resident across l)
        pl.BlockSpec((None, S, E), lambda b, l: (b, 0, 0)),    # v (resident across l)
        pl.BlockSpec((None, 1, S), lambda b, l: (b, 0, 0)),    # key_padding_mask
    ] + weight_specs

    out_specs = (
        pl.BlockSpec((None, TL, E), lambda b, l: (b, l, 0)),
        pl.BlockSpec((None, TL, S), lambda b, l: (b, l, 0)),
    )

    return pl.pallas_call(
        functools.partial(_decoder_kernel, n_head=n_head),
        out_shape=(jax.ShapeDtypeStruct((N, L_pad, E), qb.dtype),
                   jax.ShapeDtypeStruct((N, L_pad, S), jnp.float32)),
        grid_spec=pltpu.PrefetchScalarGridSpec(
            num_scalar_prefetch=0,
            grid=(N, num_l),
            in_specs=in_specs,
            out_specs=out_specs,
        ),
        compiler_params=pltpu.CompilerParams(
            dimension_semantics=("parallel", "parallel"),
            vmem_limit_bytes=_vmem_limit_bytes(weight_args, TL, S, E),
        ),
    )(qb, kb, vb, kpm, *weight_args)


def residual_attention_block_decoder(x, params, n_head):
    """x = [q, k, v, im_m] or [q, k, v, im_m, m]; returns [q, k, v, im_m, m]."""
    if len(x) == 4:
        q, k, v, im_m = x
    else:
        q, k, v, im_m, _ = x
    L, N, E = q.shape
    S = k.shape[0]

    # Batch-major; k/v are matmul-only operands -> bf16 (halves DMA); q keeps its
    # dtype so the residual path stays exact.  No f32 up-cast in the wrapper.
    qb = jnp.transpose(q, (1, 0, 2))
    kb = jnp.transpose(k, (1, 0, 2)).astype(jnp.bfloat16)
    vb = jnp.transpose(v, (1, 0, 2)).astype(jnp.bfloat16)
    kpm = im_m.astype(jnp.float32).reshape(N, 1, S)            # 1.0 == padded

    # Query-sequence tiling: bounds the (TL,4E) MLP working set and gives the
    # pipeline N * L/TL steps.
    TL = 128 if L >= 128 else _round_up(L, 8)
    L_pad = _round_up(L, TL)
    if L_pad != L:
        qb = jnp.pad(qb, ((0, 0), (0, L_pad - L), (0, 0)))

    p = params
    f32 = jnp.float32
    bf16 = jnp.bfloat16
    weight_args = (
        p["w_in"].T.astype(bf16), p["b_in"].reshape(1, -1).astype(f32),
        p["w_out"].T.astype(bf16), p["b_out"].reshape(1, -1).astype(f32),
        p["g1"].reshape(1, -1).astype(f32), p["be1"].reshape(1, -1).astype(f32),
        p["g2"].reshape(1, -1).astype(f32), p["be2"].reshape(1, -1).astype(f32),
        p["w_fc"].T.astype(bf16), p["b_fc"].reshape(1, -1).astype(f32),
        p["w_pr"].T.astype(bf16), p["b_pr"].reshape(1, -1).astype(f32),
    )

    try:
        q_out, attn_w = _pallas_forward(qb, kb, vb, kpm, weight_args,
                                        n_head=n_head, TL=TL,
                                        single_buffer_weights=True)
    except Exception:
        # Fallback for JAX versions where pl.Buffered(1) on top-level block specs
        # is not supported; identical semantics, default double buffering.
        q_out, attn_w = _pallas_forward(qb, kb, vb, kpm, weight_args,
                                        n_head=n_head, TL=TL,
                                        single_buffer_weights=False)

    q_new = jnp.transpose(q_out[:, :L, :], (1, 0, 2)).astype(q.dtype)  # back to (L,N,E)
    attn_w = attn_w[:, :L, :]                                          # (N, L, S)
    return [q_new, k, v, im_m, attn_w]


def init_params(key, d_model):
    ks = jax.random.split(key, 8)
    s = 0.05
    return {
        "w_in": jax.random.normal(ks[0], (3 * d_model, d_model), jnp.float32) * s,
        "b_in": jax.random.normal(ks[1], (3 * d_model,), jnp.float32) * s,
        "w_out": jax.random.normal(ks[2], (d_model, d_model), jnp.float32) * s,
        "b_out": jax.random.normal(ks[3], (d_model,), jnp.float32) * s,
        "g1": jnp.ones((d_model,), jnp.float32),
        "be1": jnp.zeros((d_model,), jnp.float32),
        "g2": jnp.ones((d_model,), jnp.float32),
        "be2": jnp.zeros((d_model,), jnp.float32),
        "w_fc": jax.random.normal(ks[4], (4 * d_model, d_model), jnp.float32) * s,
        "b_fc": jax.random.normal(ks[5], (4 * d_model,), jnp.float32) * s,
        "w_pr": jax.random.normal(ks[6], (d_model, 4 * d_model), jnp.float32) * s,
        "b_pr": jax.random.normal(ks[7], (d_model,), jnp.float32) * s,
    }


def reference_forward(x, params, n_head):
    """Pure-f32 JAX reference mirroring torch semantics (for the sanity check)."""
    q, k, v, im_m = x[:4]
    L, N, E = q.shape
    S = k.shape[0]
    Dh = E // n_head
    p = params

    qp = q @ p["w_in"][:E].T + p["b_in"][:E]
    kp = k @ p["w_in"][E:2 * E].T + p["b_in"][E:2 * E]
    vp = v @ p["w_in"][2 * E:].T + p["b_in"][2 * E:]

    def split(xx, T):
        return xx.reshape(T, N, n_head, Dh).transpose(1, 2, 0, 3)  # (N, H, T, Dh)

    qh = split(qp, L) / math.sqrt(Dh)
    kh = split(kp, S)
    vh = split(vp, S)
    scores = jnp.einsum('nhld,nhsd->nhls', qh, kh)
    scores = scores + jnp.where(im_m[:, None, None, :], -1e30, 0.0)
    attn = jax.nn.softmax(scores, axis=-1)
    ctx = jnp.einsum('nhls,nhsd->nhld', attn, vh)
    ctx = ctx.transpose(2, 0, 1, 3).reshape(L, N, E)
    attn_out = ctx @ p["w_out"].T + p["b_out"]
    weights = attn.mean(axis=1)                                     # (N, L, S)

    def ln(xx, g, b):
        mu = xx.mean(-1, keepdims=True)
        var = ((xx - mu) ** 2).mean(-1, keepdims=True)
        return (xx - mu) / jnp.sqrt(var + 1e-5) * g + b

    q1 = q + ln(attn_out, p["g1"], p["be1"])
    h1 = ln(q1, p["g2"], p["be2"])
    fc = h1 @ p["w_fc"].T + p["b_fc"]
    fc = fc * jax.nn.sigmoid(1.702 * fc)
    q2 = q1 + fc @ p["w_pr"].T + p["b_pr"]
    return q2, weights


if __name__ == "__main__":
    key = jax.random.PRNGKey(0)
    L, S, N, E, H = 8, 8, 2, 32, 4
    kq, kk, kv, kparam = jax.random.split(key, 4)

    q = jax.random.normal(kq, (L, N, E), jnp.float32)
    k = jax.random.normal(kk, (S, N, E), jnp.float32)
    v = jax.random.normal(kv, (S, N, E), jnp.float32)
    im_m = jnp.zeros((N, S), dtype=bool).at[1, S - 2:].set(True)   # pad last 2 keys of batch 1

    params = init_params(kparam, E)

    out = residual_attention_block_decoder([q, k, v, im_m], params, H)
    out = jax.block_until_ready(out)

    q_ref, w_ref = reference_forward([q, k, v, im_m], params, H)
    # Tolerances account for bf16 matmul operands (LayerNorm rescales the relative
    # bf16 error to ~1e-2 absolute) and the approximate EUP reciprocal in softmax.
    err_q = jnp.max(jnp.abs(out[0] - q_ref))
    err_q_mean = jnp.mean(jnp.abs(out[0] - q_ref))
    err_w = jnp.max(jnp.abs(out[4] - w_ref))
    assert err_q < 1e-1, f"q output mismatch: max abs err {err_q}"
    assert err_q_mean < 2e-2, f"q output mismatch: mean abs err {err_q_mean}"
    assert err_w < 2e-2, f"attn weights mismatch: max abs err {err_w}"

    print("KERNEL_OK")
</pallas_src>

<mosaic_0001>
module attributes {stable_mosaic.version = 11 : i64} {
  func.func @_decoder_kernel(%arg0: i32, %arg1: i32, %arg2: memref<1x8x32xf32, #tpu.memory_space<vmem>>, %arg3: memref<1x8x32xbf16, #tpu.memory_space<vmem>>, %arg4: memref<1x8x32xbf16, #tpu.memory_space<vmem>>, %arg5: memref<1x1x8xf32, #tpu.memory_space<vmem>>, %arg6: memref<32x96xbf16, #tpu.memory_space<vmem>>, %arg7: memref<1x96xf32, #tpu.memory_space<vmem>>, %arg8: memref<32x32xbf16, #tpu.memory_space<vmem>>, %arg9: memref<1x32xf32, #tpu.memory_space<vmem>>, %arg10: memref<1x32xf32, #tpu.memory_space<vmem>>, %arg11: memref<1x32xf32, #tpu.memory_space<vmem>>, %arg12: memref<1x32xf32, #tpu.memory_space<vmem>>, %arg13: memref<1x32xf32, #tpu.memory_space<vmem>>, %arg14: memref<32x128xbf16, #tpu.memory_space<vmem>>, %arg15: memref<1x128xf32, #tpu.memory_space<vmem>>, %arg16: memref<128x32xbf16, #tpu.memory_space<vmem>>, %arg17: memref<1x32xf32, #tpu.memory_space<vmem>>, %arg18: memref<1x8x32xf32, #tpu.memory_space<vmem>>, %arg19: memref<1x8x8xf32, #tpu.memory_space<vmem>>) attributes {dimension_semantics = [#tpu.dimension_semantics<parallel>, #tpu.dimension_semantics<parallel>], iteration_bounds = array<i64: 2, 1>, scalar_prefetch = 0 : i64, scratch_operands = 0 : i64, tpu.core_type = #tpu.core_type<tc>, window_params = [{transform_indices = @transform_0, window_bounds = array<i64: 1, 8, 32>}, {transform_indices = @transform_1, window_bounds = array<i64: 1, 8, 32>}, {transform_indices = @transform_2, window_bounds = array<i64: 1, 8, 32>}, {transform_indices = @transform_3, window_bounds = array<i64: 1, 1, 8>}, {pipeline_mode = #tpu.pipeline_mode<synchronous>, transform_indices = @transform_4, window_bounds = array<i64: 32, 96>}, {pipeline_mode = #tpu.pipeline_mode<synchronous>, transform_indices = @transform_5, window_bounds = array<i64: 1, 96>}, {pipeline_mode = #tpu.pipeline_mode<synchronous>, transform_indices = @transform_6, window_bounds = array<i64: 32, 32>}, {pipeline_mode = #tpu.pipeline_mode<synchronous>, transform_indices = @transform_7, window_bounds = array<i64: 1, 32>}, {pipeline_mode = #tpu.pipeline_mode<synchronous>, transform_indices = @transform_8, window_bounds = array<i64: 1, 32>}, {pipeline_mode = #tpu.pipeline_mode<synchronous>, transform_indices = @transform_9, window_bounds = array<i64: 1, 32>}, {pipeline_mode = #tpu.pipeline_mode<synchronous>, transform_indices = @transform_10, window_bounds = array<i64: 1, 32>}, {pipeline_mode = #tpu.pipeline_mode<synchronous>, transform_indices = @transform_11, window_bounds = array<i64: 1, 32>}, {pipeline_mode = #tpu.pipeline_mode<synchronous>, transform_indices = @transform_12, window_bounds = array<i64: 32, 128>}, {pipeline_mode = #tpu.pipeline_mode<synchronous>, transform_indices = @transform_13, window_bounds = array<i64: 1, 128>}, {pipeline_mode = #tpu.pipeline_mode<synchronous>, transform_indices = @transform_14, window_bounds = array<i64: 128, 32>}, {pipeline_mode = #tpu.pipeline_mode<synchronous>, transform_indices = @transform_15, window_bounds = array<i64: 1, 32>}, {transform_indices = @transform_16, window_bounds = array<i64: 1, 8, 32>}, {transform_indices = @transform_17, window_bounds = array<i64: 1, 8, 8>}]} {
    %c0 = arith.constant 0 : index
    %c0_0 = arith.constant 0 : index
    %c0_1 = arith.constant 0 : index
    %0 = vector.load %arg2[%c0, %c0_0, %c0_1] : memref<1x8x32xf32, #tpu.memory_space<vmem>>, vector<1x8x32xf32>
    %1 = vector.shape_cast %0 : vector<1x8x32xf32> to vector<8x32xf32>
    %2 = arith.truncf %1 : vector<8x32xf32> to vector<8x32xbf16>
    %c0_2 = arith.constant 0 : index
    %c0_3 = arith.constant 0 : index
    %c0_4 = arith.constant 0 : index
    %3 = vector.load %arg3[%c0_2, %c0_3, %c0_4] : memref<1x8x32xbf16, #tpu.memory_space<vmem>>, vector<1x8x32xbf16>
    %4 = vector.shape_cast %3 : vector<1x8x32xbf16> to vector<8x32xbf16>
    %c0_5 = arith.constant 0 : index
    %c0_6 = arith.constant 0 : index
    %c0_7 = arith.constant 0 : index
    %5 = vector.load %arg4[%c0_5, %c0_6, %c0_7] : memref<1x8x32xbf16, #tpu.memory_space<vmem>>, vector<1x8x32xbf16>
    %6 = vector.shape_cast %5 : vector<1x8x32xbf16> to vector<8x32xbf16>
    %c0_8 = arith.constant 0 : index
    %c0_9 = arith.constant 0 : index
    %7 = vector.load %arg6[%c0_8, %c0_9] : memref<32x96xbf16, #tpu.memory_space<vmem>>, vector<32x96xbf16>
    %c0_10 = arith.constant 0 : index
    %c0_11 = arith.constant 0 : index
    %8 = vector.load %arg7[%c0_10, %c0_11] : memref<1x96xf32, #tpu.memory_space<vmem>>, vector<1x96xf32>
    %9 = vector.extract_strided_slice %7 {offsets = [0, 0], sizes = [32, 32], strides = [1, 1]} : vector<32x96xbf16> to vector<32x32xbf16>
    %cst = arith.constant dense<0.000000e+00> : vector<8x32xf32>
    %10 = tpu.matmul %2, %9, %cst {dimension_numbers = #tpu.dot_dimension_numbers<[1], [0], [0], [1], [0, 0, 1, 1], [], []>} : vector<8x32xbf16>, vector<32x32xbf16>, vector<8x32xf32> -> vector<8x32xf32>
    %11 = vector.extract_strided_slice %8 {offsets = [0, 0], sizes = [1, 32], strides = [1, 1]} : vector<1x96xf32> to vector<1x32xf32>
    %12 = vector.broadcast %11 : vector<1x32xf32> to vector<8x32xf32>
    %13 = arith.addf %10, %12 : vector<8x32xf32>
    %cst_12 = arith.constant 0.353553385 : f32
    %14 = vector.broadcast %cst_12 : f32 to vector<8x32xf32>
    %15 = arith.mulf %13, %14 : vector<8x32xf32>
    %16 = vector.extract_strided_slice %7 {offsets = [0, 32], sizes = [32, 32], strides = [1, 1]} : vector<32x96xbf16> to vector<32x32xbf16>
    %cst_13 = arith.constant dense<0.000000e+00> : vector<8x32xf32>
    %17 = tpu.matmul %4, %16, %cst_13 {dimension_numbers = #tpu.dot_dimension_numbers<[1], [0], [0], [1], [0, 0, 1, 1], [], []>} : vector<8x32xbf16>, vector<32x32xbf16>, vector<8x32xf32> -> vector<8x32xf32>
    %18 = vector.extract_strided_slice %8 {offsets = [0, 32], sizes = [1, 32], strides = [1, 1]} : vector<1x96xf32> to vector<1x32xf32>
    %19 = vector.broadcast %18 : vector<1x32xf32> to vector<8x32xf32>
    %20 = arith.addf %17, %19 : vector<8x32xf32>
    %21 = vector.extract_strided_slice %7 {offsets = [0, 64], sizes = [32, 32], strides = [1, 1]} : vector<32x96xbf16> to vector<32x32xbf16>
    %cst_14 = arith.constant dense<0.000000e+00> : vector<8x32xf32>
    %22 = tpu.matmul %6, %21, %cst_14 {dimension_numbers = #tpu.dot_dimension_numbers<[1], [0], [0], [1], [0, 0, 1, 1], [], []>} : vector<8x32xbf16>, vector<32x32xbf16>, vector<8x32xf32> -> vector<8x32xf32>
    %23 = vector.extract_strided_slice %8 {offsets = [0, 64], sizes = [1, 32], strides = [1, 1]} : vector<1x96xf32> to vector<1x32xf32>
    %24 = vector.broadcast %23 : vector<1x32xf32> to vector<8x32xf32>
    %25 = arith.addf %22, %24 : vector<8x32xf32>
    %26 = arith.truncf %15 : vector<8x32xf32> to vector<8x32xbf16>
    %27 = arith.truncf %20 : vector<8x32xf32> to vector<8x32xbf16>
    %28 = arith.truncf %25 : vector<8x32xf32> to vector<8x32xbf16>
    %c0_15 = arith.constant 0 : index
    %c0_16 = arith.constant 0 : index
    %c0_17 = arith.constant 0 : index
    %29 = vector.load %arg5[%c0_15, %c0_16, %c0_17] : memref<1x1x8xf32, #tpu.memory_space<vmem>>, vector<1x1x8xf32>
    %30 = vector.shape_cast %29 : vector<1x1x8xf32> to vector<1x8xf32>
    %cst_18 = arith.constant 5.000000e-01 : f32
    %31 = vector.broadcast %cst_18 : f32 to vector<1x8xf32>
    %32 = arith.cmpf ogt, %30, %31 : vector<1x8xf32>
    %cst_19 = arith.constant -1.000000e+30 : f32
    %cst_20 = arith.constant 0.000000e+00 : f32
    %33 = vector.broadcast %cst_19 : f32 to vector<1x8xf32>
    %34 = vector.broadcast %cst_20 : f32 to vector<1x8xf32>
    %35 = arith.select %32, %33, %34 : vector<1x8xi1>, vector<1x8xf32>
    %cst_21 = arith.constant 0.000000e+00 : f32
    %36 = vector.broadcast %cst_21 : f32 to vector<8x8xf32>
    %37 = vector.extract_strided_slice %26 {offsets = [0, 0], sizes = [8, 8], strides = [1, 1]} : vector<8x32xbf16> to vector<8x8xbf16>
    %38 = vector.extract_strided_slice %27 {offsets = [0, 0], sizes = [8, 8], strides = [1, 1]} : vector<8x32xbf16> to vector<8x8xbf16>
    %39 = vector.extract_strided_slice %28 {offsets = [0, 0], sizes = [8, 8], strides = [1, 1]} : vector<8x32xbf16> to vector<8x8xbf16>
    %cst_22 = arith.constant dense<0.000000e+00> : vector<8x8xf32>
    %40 = tpu.matmul %37, %38, %cst_22 {dimension_numbers = #tpu.dot_dimension_numbers<[1], [1], [0], [0], [0, 0, 1, 0], [], []>} : vector<8x8xbf16>, vector<8x8xbf16>, vector<8x8xf32> -> vector<8x8xf32>
    %41 = vector.broadcast %35 : vector<1x8xf32> to vector<8x8xf32>
    %42 = arith.addf %40, %41 : vector<8x8xf32>
    %cst_23 = arith.constant dense<0xFF800000> : vector<8xf32>
    %43 = vector.multi_reduction <maximumf>, %42, %cst_23 [1] : vector<8x8xf32> to vector<8xf32>
    %44 = vector.shape_cast %43 : vector<8xf32> to vector<8x1xf32>
    %45 = vector.broadcast %44 : vector<8x1xf32> to vector<8x8xf32>
    %46 = arith.subf %42, %45 : vector<8x8xf32>
    %47 = math.exp %46 : vector<8x8xf32>
    %cst_24 = arith.constant dense<0.000000e+00> : vector<8xf32>
    %48 = vector.multi_reduction <add>, %47, %cst_24 [1] : vector<8x8xf32> to vector<8xf32>
    %49 = vector.shape_cast %48 : vector<8xf32> to vector<8x1xf32>
    %50 = tpu.reciprocal %49 {approx = true} : vector<8x1xf32> -> vector<8x1xf32>
    %51 = vector.broadcast %50 : vector<8x1xf32> to vector<8x8xf32>
    %52 = arith.mulf %47, %51 : vector<8x8xf32>
    %53 = arith.addf %36, %52 : vector<8x8xf32>
    %54 = arith.truncf %52 : vector<8x8xf32> to vector<8x8xbf16>
    %cst_25 = arith.constant dense<0.000000e+00> : vector<8x8xf32>
    %55 = tpu.matmul %54, %39, %cst_25 {dimension_numbers = #tpu.dot_dimension_numbers<[1], [0], [0], [1], [0, 0, 1, 1], [], []>} : vector<8x8xbf16>, vector<8x8xbf16>, vector<8x8xf32> -> vector<8x8xf32>
    %56 = vector.extract_strided_slice %26 {offsets = [0, 8], sizes = [8, 8], strides = [1, 1]} : vector<8x32xbf16> to vector<8x8xbf16>
    %57 = vector.extract_strided_slice %27 {offsets = [0, 8], sizes = [8, 8], strides = [1, 1]} : vector<8x32xbf16> to vector<8x8xbf16>
    %58 = vector.extract_strided_slice %28 {offsets = [0, 8], sizes = [8, 8], strides = [1, 1]} : vector<8x32xbf16> to vector<8x8xbf16>
    %cst_26 = arith.constant dense<0.000000e+00> : vector<8x8xf32>
    %59 = tpu.matmul %56, %57, %cst_26 {dimension_numbers = #tpu.dot_dimension_numbers<[1], [1], [0], [0], [0, 0, 1, 0], [], []>} : vector<8x8xbf16>, vector<8x8xbf16>, vector<8x8xf32> -> vector<8x8xf32>
    %60 = vector.broadcast %35 : vector<1x8xf32> to vector<8x8xf32>
    %61 = arith.addf %59, %60 : vector<8x8xf32>
    %cst_27 = arith.constant dense<0xFF800000> : vector<8xf32>
    %62 = vector.multi_reduction <maximumf>, %61, %cst_27 [1] : vector<8x8xf32> to vector<8xf32>
    %63 = vector.shape_cast %62 : vector<8xf32> to vector<8x1xf32>
    %64 = vector.broadcast %63 : vector<8x1xf32> to vector<8x8xf32>
    %65 = arith.subf %61, %64 : vector<8x8xf32>
    %66 = math.exp %65 : vector<8x8xf32>
    %cst_28 = arith.constant dense<0.000000e+00> : vector<8xf32>
    %67 = vector.multi_reduction <add>, %66, %cst_28 [1] : vector<8x8xf32> to vector<8xf32>
    %68 = vector.shape_cast %67 : vector<8xf32> to vector<8x1xf32>
    %69 = tpu.reciprocal %68 {approx = true} : vector<8x1xf32> -> vector<8x1xf32>
    %70 = vector.broadcast %69 : vector<8x1xf32> to vector<8x8xf32>
    %71 = arith.mulf %66, %70 : vector<8x8xf32>
    %72 = arith.addf %53, %71 : vector<8x8xf32>
    %73 = arith.truncf %71 : vector<8x8xf32> to vector<8x8xbf16>
    %cst_29 = arith.constant dense<0.000000e+00> : vector<8x8xf32>
    %74 = tpu.matmul %73, %58, %cst_29 {dimension_numbers = #tpu.dot_dimension_numbers<[1], [0], [0], [1], [0, 0, 1, 1], [], []>} : vector<8x8xbf16>, vector<8x8xbf16>, vector<8x8xf32> -> vector<8x8xf32>
    %75 = vector.extract_strided_slice %26 {offsets = [0, 16], sizes = [8, 8], strides = [1, 1]} : vector<8x32xbf16> to vector<8x8xbf16>
    %76 = vector.extract_strided_slice %27 {offsets = [0, 16], sizes = [8, 8], strides = [1, 1]} : vector<8x32xbf16> to vector<8x8xbf16>
    %77 = vector.extract_strided_slice %28 {offsets = [0, 16], sizes = [8, 8], strides = [1, 1]} : vector<8x32xbf16> to vector<8x8xbf16>
    %cst_30 = arith.constant dense<0.000000e+00> : vector<8x8xf32>
    %78 = tpu.matmul %75, %76, %cst_30 {dimension_numbers = #tpu.dot_dimension_numbers<[1], [1], [0], [0], [0, 0, 1, 0], [], []>} : vector<8x8xbf16>, vector<8x8xbf16>, vector<8x8xf32> -> vector<8x8xf32>
    %79 = vector.broadcast %35 : vector<1x8xf32> to vector<8x8xf32>
    %80 = arith.addf %78, %79 : vector<8x8xf32>
    %cst_31 = arith.constant dense<0xFF800000> : vector<8xf32>
    %81 = vector.multi_reduction <maximumf>, %80, %cst_31 [1] : vector<8x8xf32> to vector<8xf32>
    %82 = vector.shape_cast %81 : vector<8xf32> to vector<8x1xf32>
    %83 = vector.broadcast %82 : vector<8x1xf32> to vector<8x8xf32>
    %84 = arith.subf %80, %83 : vector<8x8xf32>
    %85 = math.exp %84 : vector<8x8xf32>
    %cst_32 = arith.constant dense<0.000000e+00> : vector<8xf32>
    %86 = vector.multi_reduction <add>, %85, %cst_32 [1] : vector<8x8xf32> to vector<8xf32>
    %87 = vector.shape_cast %86 : vector<8xf32> to vector<8x1xf32>
    %88 = tpu.reciprocal %87 {approx = true} : vector<8x1xf32> -> vector<8x1xf32>
    %89 = vector.broadcast %88 : vector<8x1xf32> to vector<8x8xf32>
    %90 = arith.mulf %85, %89 : vector<8x8xf32>
    %91 = arith.addf %72, %90 : vector<8x8xf32>
    %92 = arith.truncf %90 : vector<8x8xf32> to vector<8x8xbf16>
    %cst_33 = arith.constant dense<0.000000e+00> : vector<8x8xf32>
    %93 = tpu.matmul %92, %77, %cst_33 {dimension_numbers = #tpu.dot_dimension_numbers<[1], [0], [0], [1], [0, 0, 1, 1], [], []>} : vector<8x8xbf16>, vector<8x8xbf16>, vector<8x8xf32> -> vector<8x8xf32>
    %94 = vector.extract_strided_slice %26 {offsets = [0, 24], sizes = [8, 8], strides = [1, 1]} : vector<8x32xbf16> to vector<8x8xbf16>
    %95 = vector.extract_strided_slice %27 {offsets = [0, 24], sizes = [8, 8], strides = [1, 1]} : vector<8x32xbf16> to vector<8x8xbf16>
    %96 = vector.extract_strided_slice %28 {offsets = [0, 24], sizes = [8, 8], strides = [1, 1]} : vector<8x32xbf16> to vector<8x8xbf16>
    %cst_34 = arith.constant dense<0.000000e+00> : vector<8x8xf32>
    %97 = tpu.matmul %94, %95, %cst_34 {dimension_numbers = #tpu.dot_dimension_numbers<[1], [1], [0], [0], [0, 0, 1, 0], [], []>} : vector<8x8xbf16>, vector<8x8xbf16>, vector<8x8xf32> -> vector<8x8xf32>
    %98 = vector.broadcast %35 : vector<1x8xf32> to vector<8x8xf32>
    %99 = arith.addf %97, %98 : vector<8x8xf32>
    %cst_35 = arith.constant dense<0xFF800000> : vector<8xf32>
    %100 = vector.multi_reduction <maximumf>, %99, %cst_35 [1] : vector<8x8xf32> to vector<8xf32>
    %101 = vector.shape_cast %100 : vector<8xf32> to vector<8x1xf32>
    %102 = vector.broadcast %101 : vector<8x1xf32> to vector<8x8xf32>
    %103 = arith.subf %99, %102 : vector<8x8xf32>
    %104 = math.exp %103 : vector<8x8xf32>
    %cst_36 = arith.constant dense<0.000000e+00> : vector<8xf32>
    %105 = vector.multi_reduction <add>, %104, %cst_36 [1] : vector<8x8xf32> to vector<8xf32>
    %106 = vector.shape_cast %105 : vector<8xf32> to vector<8x1xf32>
    %107 = tpu.reciprocal %106 {approx = true} : vector<8x1xf32> -> vector<8x1xf32>
    %108 = vector.broadcast %107 : vector<8x1xf32> to vector<8x8xf32>
    %109 = arith.mulf %104, %108 : vector<8x8xf32>
    %110 = arith.addf %91, %109 : vector<8x8xf32>
    %111 = arith.truncf %109 : vector<8x8xf32> to vector<8x8xbf16>
    %cst_37 = arith.constant dense<0.000000e+00> : vector<8x8xf32>
    %112 = tpu.matmul %111, %96, %cst_37 {dimension_numbers = #tpu.dot_dimension_numbers<[1], [0], [0], [1], [0, 0, 1, 1], [], []>} : vector<8x8xbf16>, vector<8x8xbf16>, vector<8x8xf32> -> vector<8x8xf32>
    %113 = tpu.concatenate %55, %74, %93, %112 in 1 : vector<8x8xf32>, vector<8x8xf32>, vector<8x8xf32>, vector<8x8xf32> -> vector<8x32xf32>
    %114 = arith.truncf %113 : vector<8x32xf32> to vector<8x32xbf16>
    %c0_38 = arith.constant 0 : index
    %c0_39 = arith.constant 0 : index
    %115 = vector.load %arg8[%c0_38, %c0_39] : memref<32x32xbf16, #tpu.memory_space<vmem>>, vector<32x32xbf16>
    %cst_40 = arith.constant dense<0.000000e+00> : vector<8x32xf32>
    %116 = tpu.matmul %114, %115, %cst_40 {dimension_numbers = #tpu.dot_dimension_numbers<[1], [0], [0], [1], [0, 0, 1, 1], [], []>} : vector<8x32xbf16>, vector<32x32xbf16>, vector<8x32xf32> -> vector<8x32xf32>
    %c0_41 = arith.constant 0 : index
    %c0_42 = arith.constant 0 : index
    %117 = vector.load %arg9[%c0_41, %c0_42] : memref<1x32xf32, #tpu.memory_space<vmem>>, vector<1x32xf32>
    %118 = vector.broadcast %117 : vector<1x32xf32> to vector<8x32xf32>
    %119 = arith.addf %116, %118 : vector<8x32xf32>
    %cst_43 = arith.constant 2.500000e-01 : f32
    %120 = vector.broadcast %cst_43 : f32 to vector<8x8xf32>
    %121 = arith.mulf %110, %120 : vector<8x8xf32>
    %c0_44 = arith.constant 0 : index
    %c0_45 = arith.constant 0 : index
    %c0_46 = arith.constant 0 : index
    %122 = vector.load %arg19[%c0_44, %c0_45, %c0_46] : memref<1x8x8xf32, #tpu.memory_space<vmem>>, vector<1x8x8xf32>
    %123 = vector.shape_cast %122 : vector<1x8x8xf32> to vector<8x8xf32>
    %124 = vector.shape_cast %121 : vector<8x8xf32> to vector<1x8x8xf32>
    tpu.vector_store %arg19[%c0_44, %c0_45, %c0_46], %124 {strides = array<i32>} : memref<1x8x8xf32, #tpu.memory_space<vmem>>, vector<1x8x8xf32>,
    %c0_47 = arith.constant 0 : index
    %c0_48 = arith.constant 0 : index
    %125 = vector.load %arg10[%c0_47, %c0_48] : memref<1x32xf32, #tpu.memory_space<vmem>>, vector<1x32xf32>
    %c0_49 = arith.constant 0 : index
    %c0_50 = arith.constant 0 : index
    %126 = vector.load %arg11[%c0_49, %c0_50] : memref<1x32xf32, #tpu.memory_space<vmem>>, vector<1x32xf32>
    %cst_51 = arith.constant dense<0.000000e+00> : vector<8xf32>
    %127 = vector.multi_reduction <add>, %119, %cst_51 [1] : vector<8x32xf32> to vector<8xf32>
    %128 = vector.shape_cast %127 : vector<8xf32> to vector<8x1xf32>
    %cst_52 = arith.constant 3.200000e+01 : f32
    %129 = vector.broadcast %cst_52 : f32 to vector<8x1xf32>
    %130 = arith.divf %128, %129 : vector<8x1xf32>
    %131 = vector.broadcast %130 : vector<8x1xf32> to vector<8x32xf32>
    %132 = arith.subf %119, %131 : vector<8x32xf32>
    %133 = arith.mulf %132, %132 : vector<8x32xf32>
    %cst_53 = arith.constant dense<0.000000e+00> : vector<8xf32>
    %134 = vector.multi_reduction <add>, %133, %cst_53 [1] : vector<8x32xf32> to vector<8xf32>
    %135 = vector.shape_cast %134 : vector<8xf32> to vector<8x1xf32>
    %cst_54 = arith.constant 3.200000e+01 : f32
    %136 = vector.broadcast %cst_54 : f32 to vector<8x1xf32>
    %137 = arith.divf %135, %136 : vector<8x1xf32>
    %138 = vector.broadcast %130 : vector<8x1xf32> to vector<8x32xf32>
    %139 = arith.subf %119, %138 : vector<8x32xf32>
    %cst_55 = arith.constant 9.99999974E-6 : f32
    %140 = vector.broadcast %cst_55 : f32 to vector<8x1xf32>
    %141 = arith.addf %137, %140 : vector<8x1xf32>
    %142 = math.rsqrt %141 : vector<8x1xf32>
    %143 = vector.broadcast %142 : vector<8x1xf32> to vector<8x32xf32>
    %144 = arith.mulf %139, %143 : vector<8x32xf32>
    %145 = vector.broadcast %125 : vector<1x32xf32> to vector<8x32xf32>
    %146 = arith.mulf %144, %145 : vector<8x32xf32>
    %147 = vector.broadcast %126 : vector<1x32xf32> to vector<8x32xf32>
    %148 = arith.addf %146, %147 : vector<8x32xf32>
    %149 = arith.addf %1, %148 : vector<8x32xf32>
    %c0_56 = arith.constant 0 : index
    %c0_57 = arith.constant 0 : index
    %150 = vector.load %arg12[%c0_56, %c0_57] : memref<1x32xf32, #tpu.memory_space<vmem>>, vector<1x32xf32>
    %c0_58 = arith.constant 0 : index
    %c0_59 = arith.constant 0 : index
    %151 = vector.load %arg13[%c0_58, %c0_59] : memref<1x32xf32, #tpu.memory_space<vmem>>, vector<1x32xf32>
    %cst_60 = arith.constant dense<0.000000e+00> : vector<8xf32>
    %152 = vector.multi_reduction <add>, %149, %cst_60 [1] : vector<8x32xf32> to vector<8xf32>
    %153 = vector.shape_cast %152 : vector<8xf32> to vector<8x1xf32>
    %cst_61 = arith.constant 3.200000e+01 : f32
    %154 = vector.broadcast %cst_61 : f32 to vector<8x1xf32>
    %155 = arith.divf %153, %154 : vector<8x1xf32>
    %156 = vector.broadcast %155 : vector<8x1xf32> to vector<8x32xf32>
    %157 = arith.subf %149, %156 : vector<8x32xf32>
    %158 = arith.mulf %157, %157 : vector<8x32xf32>
    %cst_62 = arith.constant dense<0.000000e+00> : vector<8xf32>
    %159 = vector.multi_reduction <add>, %158, %cst_62 [1] : vector<8x32xf32> to vector<8xf32>
    %160 = vector.shape_cast %159 : vector<8xf32> to vector<8x1xf32>
    %cst_63 = arith.constant 3.200000e+01 : f32
    %161 = vector.broadcast %cst_63 : f32 to vector<8x1xf32>
    %162 = arith.divf %160, %161 : vector<8x1xf32>
    %163 = vector.broadcast %155 : vector<8x1xf32> to vector<8x32xf32>
    %164 = arith.subf %149, %163 : vector<8x32xf32>
    %cst_64 = arith.constant 9.99999974E-6 : f32
    %165 = vector.broadcast %cst_64 : f32 to vector<8x1xf32>
    %166 = arith.addf %162, %165 : vector<8x1xf32>
    %167 = math.rsqrt %166 : vector<8x1xf32>
    %168 = vector.broadcast %167 : vector<8x1xf32> to vector<8x32xf32>
    %169 = arith.mulf %164, %168 : vector<8x32xf32>
    %170 = vector.broadcast %150 : vector<1x32xf32> to vector<8x32xf32>
    %171 = arith.mulf %169, %170 : vector<8x32xf32>
    %172 = vector.broadcast %151 : vector<1x32xf32> to vector<8x32xf32>
    %173 = arith.addf %171, %172 : vector<8x32xf32>
    %174 = arith.truncf %173 : vector<8x32xf32> to vector<8x32xbf16>
    %c0_65 = arith.constant 0 : index
    %c0_66 = arith.constant 0 : index
    %175 = vector.load %arg14[%c0_65, %c0_66] : memref<32x128xbf16, #tpu.memory_space<vmem>>, vector<32x128xbf16>
    %cst_67 = arith.constant dense<0.000000e+00> : vector<8x128xf32>
    %176 = tpu.matmul %174, %175, %cst_67 {dimension_numbers = #tpu.dot_dimension_numbers<[1], [0], [0], [1], [0, 0, 1, 1], [], []>} : vector<8x32xbf16>, vector<32x128xbf16>, vector<8x128xf32> -> vector<8x128xf32>
    %c0_68 = arith.constant 0 : index
    %c0_69 = arith.constant 0 : index
    %177 = vector.load %arg15[%c0_68, %c0_69] : memref<1x128xf32, #tpu.memory_space<vmem>>, vector<1x128xf32>
    %178 = vector.broadcast %177 : vector<1x128xf32> to vector<8x128xf32>
    %179 = arith.addf %176, %178 : vector<8x128xf32>
    %cst_70 = arith.constant 1.702000e+00 : f32
    %180 = vector.broadcast %cst_70 : f32 to vector<8x128xf32>
    %181 = arith.mulf %180, %179 : vector<8x128xf32>
    %182 = arith.negf %181 : vector<8x128xf32>
    %183 = math.exp %182 : vector<8x128xf32>
    %cst_71 = arith.constant 1.000000e+00 : f32
    %184 = vector.broadcast %cst_71 : f32 to vector<8x128xf32>
    %185 = arith.addf %184, %183 : vector<8x128xf32>
    %186 = arith.divf %184, %185 : vector<8x128xf32>
    %187 = arith.mulf %179, %186 : vector<8x128xf32>
    %188 = arith.truncf %187 : vector<8x128xf32> to vector<8x128xbf16>
    %c0_72 = arith.constant 0 : index
    %c0_73 = arith.constant 0 : index
    %189 = vector.load %arg16[%c0_72, %c0_73] : memref<128x32xbf16, #tpu.memory_space<vmem>>, vector<128x32xbf16>
    %cst_74 = arith.constant dense<0.000000e+00> : vector<8x32xf32>
    %190 = tpu.matmul %188, %189, %cst_74 {dimension_numbers = #tpu.dot_dimension_numbers<[1], [0], [0], [1], [0, 0, 1, 1], [], []>} : vector<8x128xbf16>, vector<128x32xbf16>, vector<8x32xf32> -> vector<8x32xf32>
    %c0_75 = arith.constant 0 : index
    %c0_76 = arith.constant 0 : index
    %191 = vector.load %arg17[%c0_75, %c0_76] : memref<1x32xf32, #tpu.memory_space<vmem>>, vector<1x32xf32>
    %192 = vector.broadcast %191 : vector<1x32xf32> to vector<8x32xf32>
    %193 = arith.addf %190, %192 : vector<8x32xf32>
    %194 = arith.addf %149, %193 : vector<8x32xf32>
    %c0_77 = arith.constant 0 : index
    %c0_78 = arith.constant 0 : index
    %c0_79 = arith.constant 0 : index
    %195 = vector.load %arg18[%c0_77, %c0_78, %c0_79] : memref<1x8x32xf32, #tpu.memory_space<vmem>>, vector<1x8x32xf32>
    %196 = vector.shape_cast %195 : vector<1x8x32xf32> to vector<8x32xf32>
    %197 = vector.shape_cast %194 : vector<8x32xf32> to vector<1x8x32xf32>
    tpu.vector_store %arg18[%c0_77, %c0_78, %c0_79], %197 {strides = array<i32>} : memref<1x8x32xf32, #tpu.memory_space<vmem>>, vector<1x8x32xf32>,
    return
  }
  func.func @transform_0(%arg0: i32, %arg1: i32) -> (i32, i32, i32) {
    %c0_i32 = arith.constant 0 : i32
    %c0_i32_0 = arith.constant 0 : i32
    return %arg0, %arg1, %c0_i32 : i32, i32, i32
  }
  func.func @transform_1(%arg0: i32, %arg1: i32) -> (i32, i32, i32) {
    %c0_i32 = arith.constant 0 : i32
    %c0_i32_0 = arith.constant 0 : i32
    %c0_i32_1 = arith.constant 0 : i32
    return %arg0, %c0_i32, %c0_i32_0 : i32, i32, i32
  }
  func.func @transform_2(%arg0: i32, %arg1: i32) -> (i32, i32, i32) {
    %c0_i32 = arith.constant 0 : i32
    %c0_i32_0 = arith.constant 0 : i32
    %c0_i32_1 = arith.constant 0 : i32
    return %arg0, %c0_i32, %c0_i32_0 : i32, i32, i32
  }
  func.func @transform_3(%arg0: i32, %arg1: i32) -> (i32, i32, i32) {
    %c0_i32 = arith.constant 0 : i32
    %c0_i32_0 = arith.constant 0 : i32
    %c0_i32_1 = arith.constant 0 : i32
    return %arg0, %c0_i32, %c0_i32_0 : i32, i32, i32
  }
  func.func @transform_4(%arg0: i32, %arg1: i32) -> (i32, i32) {
    %c0_i32 = arith.constant 0 : i32
    %c0_i32_0 = arith.constant 0 : i32
    %c0_i32_1 = arith.constant 0 : i32
    return %c0_i32, %c0_i32_0 : i32, i32
  }
  func.func @transform_5(%arg0: i32, %arg1: i32) -> (i32, i32) {
    %c0_i32 = arith.constant 0 : i32
    %c0_i32_0 = arith.constant 0 : i32
    %c0_i32_1 = arith.constant 0 : i32
    return %c0_i32, %c0_i32_0 : i32, i32
  }
  func.func @transform_6(%arg0: i32, %arg1: i32) -> (i32, i32) {
    %c0_i32 = arith.constant 0 : i32
    %c0_i32_0 = arith.constant 0 : i32
    %c0_i32_1 = arith.constant 0 : i32
    return %c0_i32, %c0_i32_0 : i32, i32
  }
  func.func @transform_7(%arg0: i32, %arg1: i32) -> (i32, i32) {
    %c0_i32 = arith.constant 0 : i32
    %c0_i32_0 = arith.constant 0 : i32
    %c0_i32_1 = arith.constant 0 : i32
    return %c0_i32, %c0_i32_0 : i32, i32
  }
  func.func @transform_8(%arg0: i32, %arg1: i32) -> (i32, i32) {
    %c0_i32 = arith.constant 0 : i32
    %c0_i32_0 = arith.constant 0 : i32
    %c0_i32_1 = arith.constant 0 : i32
    return %c0_i32, %c0_i32_0 : i32, i32
  }
  func.func @transform_9(%arg0: i32, %arg1: i32) -> (i32, i32) {
    %c0_i32 = arith.constant 0 : i32
    %c0_i32_0 = arith.constant 0 : i32
    %c0_i32_1 = arith.constant 0 : i32
    return %c0_i32, %c0_i32_0 : i32, i32
  }
  func.func @transform_10(%arg0: i32, %arg1: i32) -> (i32, i32) {
    %c0_i32 = arith.constant 0 : i32
    %c0_i32_0 = arith.constant 0 : i32
    %c0_i32_1 = arith.constant 0 : i32
    return %c0_i32, %c0_i32_0 : i32, i32
  }
  func.func @transform_11(%arg0: i32, %arg1: i32) -> (i32, i32) {
    %c0_i32 = arith.constant 0 : i32
    %c0_i32_0 = arith.constant 0 : i32
    %c0_i32_1 = arith.constant 0 : i32
    return %c0_i32, %c0_i32_0 : i32, i32
  }
  func.func @transform_12(%arg0: i32, %arg1: i32) -> (i32, i32) {
    %c0_i32 = arith.constant 0 : i32
    %c0_i32_0 = arith.constant 0 : i32
    %c0_i32_1 = arith.constant 0 : i32
    return %c0_i32, %c0_i32_0 : i32, i32
  }
  func.func @transform_13(%arg0: i32, %arg1: i32) -> (i32, i32) {
    %c0_i32 = arith.constant 0 : i32
    %c0_i32_0 = arith.constant 0 : i32
    %c0_i32_1 = arith.constant 0 : i32
    return %c0_i32, %c0_i32_0 : i32, i32
  }
  func.func @transform_14(%arg0: i32, %arg1: i32) -> (i32, i32) {
    %c0_i32 = arith.constant 0 : i32
    %c0_i32_0 = arith.constant 0 : i32
    %c0_i32_1 = arith.constant 0 : i32
    return %c0_i32, %c0_i32_0 : i32, i32
  }
  func.func @transform_15(%arg0: i32, %arg1: i32) -> (i32, i32) {
    %c0_i32 = arith.constant 0 : i32
    %c0_i32_0 = arith.constant 0 : i32
    %c0_i32_1 = arith.constant 0 : i32
    return %c0_i32, %c0_i32_0 : i32, i32
  }
  func.func @transform_16(%arg0: i32, %arg1: i32) -> (i32, i32, i32) {
    %c0_i32 = arith.constant 0 : i32
    %c0_i32_0 = arith.constant 0 : i32
    return %arg0, %arg1, %c0_i32 : i32, i32, i32
  }
  func.func @transform_17(%arg0: i32, %arg1: i32) -> (i32, i32, i32) {
    %c0_i32 = arith.constant 0 : i32
    %c0_i32_0 = arith.constant 0 : i32
    return %arg0, %arg1, %c0_i32 : i32, i32, i32
  }
}

module attributes {stable_mosaic.version = 11 : i64} {
  func.func @_decoder_kernel(%arg0: i32, %arg1: i32, %arg2: memref<1x8x32xf32, #tpu.memory_space<vmem>>, %arg3: memref<1x8x32xbf16, #tpu.memory_space<vmem>>, %arg4: memref<1x8x32xbf16, #tpu.memory_space<vmem>>, %arg5: memref<1x1x8xf32, #tpu.memory_space<vmem>>, %arg6: memref<32x96xbf16, #tpu.memory_space<vmem>>, %arg7: memref<1x96xf32, #tpu.memory_space<vmem>>, %arg8: memref<32x32xbf16, #tpu.memory_space<vmem>>, %arg9: memref<1x32xf32, #tpu.memory_space<vmem>>, %arg10: memref<1x32xf32, #tpu.memory_space<vmem>>, %arg11: memref<1x32xf32, #tpu.memory_space<vmem>>, %arg12: memref<1x32xf32, #tpu.memory_space<vmem>>, %arg13: memref<1x32xf32, #tpu.memory_space<vmem>>, %arg14: memref<32x128xbf16, #tpu.memory_space<vmem>>, %arg15: memref<1x128xf32, #tpu.memory_space<vmem>>, %arg16: memref<128x32xbf16, #tpu.memory_space<vmem>>, %arg17: memref<1x32xf32, #tpu.memory_space<vmem>>, %arg18: memref<1x8x32xf32, #tpu.memory_space<vmem>>, %arg19: memref<1x8x8xf32, #tpu.memory_space<vmem>>) attributes {dimension_semantics = [#tpu.dimension_semantics<parallel>, #tpu.dimension_semantics<parallel>], iteration_bounds = array<i64: 2, 1>, scalar_prefetch = 0 : i64, scratch_operands = 0 : i64, tpu.core_type = #tpu.core_type<tc>, window_params = [{transform_indices = @transform_0, window_bounds = array<i64: 1, 8, 32>}, {transform_indices = @transform_1, window_bounds = array<i64: 1, 8, 32>}, {transform_indices = @transform_2, window_bounds = array<i64: 1, 8, 32>}, {transform_indices = @transform_3, window_bounds = array<i64: 1, 1, 8>}, {pipeline_mode = #tpu.pipeline_mode<synchronous>, transform_indices = @transform_4, window_bounds = array<i64: 32, 96>}, {pipeline_mode = #tpu.pipeline_mode<synchronous>, transform_indices = @transform_5, window_bounds = array<i64: 1, 96>}, {pipeline_mode = #tpu.pipeline_mode<synchronous>, transform_indices = @transform_6, window_bounds = array<i64: 32, 32>}, {pipeline_mode = #tpu.pipeline_mode<synchronous>, transform_indices = @transform_7, window_bounds = array<i64: 1, 32>}, {pipeline_mode = #tpu.pipeline_mode<synchronous>, transform_indices = @transform_8, window_bounds = array<i64: 1, 32>}, {pipeline_mode = #tpu.pipeline_mode<synchronous>, transform_indices = @transform_9, window_bounds = array<i64: 1, 32>}, {pipeline_mode = #tpu.pipeline_mode<synchronous>, transform_indices = @transform_10, window_bounds = array<i64: 1, 32>}, {pipeline_mode = #tpu.pipeline_mode<synchronous>, transform_indices = @transform_11, window_bounds = array<i64: 1, 32>}, {pipeline_mode = #tpu.pipeline_mode<synchronous>, transform_indices = @transform_12, window_bounds = array<i64: 32, 128>}, {pipeline_mode = #tpu.pipeline_mode<synchronous>, transform_indices = @transform_13, window_bounds = array<i64: 1, 128>}, {pipeline_mode = #tpu.pipeline_mode<synchronous>, transform_indices = @transform_14, window_bounds = array<i64: 128, 32>}, {pipeline_mode = #tpu.pipeline_mode<synchronous>, transform_indices = @transform_15, window_bounds = array<i64: 1, 32>}, {transform_indices = @transform_16, window_bounds = array<i64: 1, 8, 32>}, {transform_indices = @transform_17, window_bounds = array<i64: 1, 8, 8>}]} {
    %c0 = arith.constant 0 : index
    %c0_0 = arith.constant 0 : index
    %c0_1 = arith.constant 0 : index
    %0 = vector.load %arg2[%c0, %c0_0, %c0_1] : memref<1x8x32xf32, #tpu.memory_space<vmem>>, vector<1x8x32xf32>
    %1 = vector.shape_cast %0 : vector<1x8x32xf32> to vector<8x32xf32>
    %2 = arith.truncf %1 : vector<8x32xf32> to vector<8x32xbf16>
    %c0_2 = arith.constant 0 : index
    %c0_3 = arith.constant 0 : index
    %c0_4 = arith.constant 0 : index
    %3 = vector.load %arg3[%c0_2, %c0_3, %c0_4] : memref<1x8x32xbf16, #tpu.memory_space<vmem>>, vector<1x8x32xbf16>
    %4 = vector.shape_cast %3 : vector<1x8x32xbf16> to vector<8x32xbf16>
    %c0_5 = arith.constant 0 : index
    %c0_6 = arith.constant 0 : index
    %c0_7 = arith.constant 0 : index
    %5 = vector.load %arg4[%c0_5, %c0_6, %c0_7] : memref<1x8x32xbf16, #tpu.memory_space<vmem>>, vector<1x8x32xbf16>
    %6 = vector.shape_cast %5 : vector<1x8x32xbf16> to vector<8x32xbf16>
    %c0_8 = arith.constant 0 : index
    %c0_9 = arith.constant 0 : index
    %7 = vector.load %arg6[%c0_8, %c0_9] : memref<32x96xbf16, #tpu.memory_space<vmem>>, vector<32x96xbf16>
    %c0_10 = arith.constant 0 : index
    %c0_11 = arith.constant 0 : index
    %8 = vector.load %arg7[%c0_10, %c0_11] : memref<1x96xf32, #tpu.memory_space<vmem>>, vector<1x96xf32>
    %9 = vector.extract_strided_slice %7 {offsets = [0, 0], sizes = [32, 32], strides = [1, 1]} : vector<32x96xbf16> to vector<32x32xbf16>
    %cst = arith.constant dense<0.000000e+00> : vector<8x32xf32>
    %10 = tpu.matmul %2, %9, %cst {dimension_numbers = #tpu.dot_dimension_numbers<[1], [0], [0], [1], [0, 0, 1, 1], [], []>} : vector<8x32xbf16>, vector<32x32xbf16>, vector<8x32xf32> -> vector<8x32xf32>
    %11 = vector.extract_strided_slice %8 {offsets = [0, 0], sizes = [1, 32], strides = [1, 1]} : vector<1x96xf32> to vector<1x32xf32>
    %12 = vector.broadcast %11 : vector<1x32xf32> to vector<8x32xf32>
    %13 = arith.addf %10, %12 : vector<8x32xf32>
    %cst_12 = arith.constant 0.353553385 : f32
    %14 = vector.broadcast %cst_12 : f32 to vector<8x32xf32>
    %15 = arith.mulf %13, %14 : vector<8x32xf32>
    %16 = vector.extract_strided_slice %7 {offsets = [0, 32], sizes = [32, 32], strides = [1, 1]} : vector<32x96xbf16> to vector<32x32xbf16>
    %cst_13 = arith.constant dense<0.000000e+00> : vector<8x32xf32>
    %17 = tpu.matmul %4, %16, %cst_13 {dimension_numbers = #tpu.dot_dimension_numbers<[1], [0], [0], [1], [0, 0, 1, 1], [], []>} : vector<8x32xbf16>, vector<32x32xbf16>, vector<8x32xf32> -> vector<8x32xf32>
    %18 = vector.extract_strided_slice %8 {offsets = [0, 32], sizes = [1, 32], strides = [1, 1]} : vector<1x96xf32> to vector<1x32xf32>
    %19 = vector.broadcast %18 : vector<1x32xf32> to vector<8x32xf32>
    %20 = arith.addf %17, %19 : vector<8x32xf32>
    %21 = vector.extract_strided_slice %7 {offsets = [0, 64], sizes = [32, 32], strides = [1, 1]} : vector<32x96xbf16> to vector<32x32xbf16>
    %cst_14 = arith.constant dense<0.000000e+00> : vector<8x32xf32>
    %22 = tpu.matmul %6, %21, %cst_14 {dimension_numbers = #tpu.dot_dimension_numbers<[1], [0], [0], [1], [0, 0, 1, 1], [], []>} : vector<8x32xbf16>, vector<32x32xbf16>, vector<8x32xf32> -> vector<8x32xf32>
    %23 = vector.extract_strided_slice %8 {offsets = [0, 64], sizes = [1, 32], strides = [1, 1]} : vector<1x96xf32> to vector<1x32xf32>
    %24 = vector.broadcast %23 : vector<1x32xf32> to vector<8x32xf32>
    %25 = arith.addf %22, %24 : vector<8x32xf32>
    %26 = arith.truncf %15 : vector<8x32xf32> to vector<8x32xbf16>
    %27 = arith.truncf %20 : vector<8x32xf32> to vector<8x32xbf16>
    %28 = arith.truncf %25 : vector<8x32xf32> to vector<8x32xbf16>
    %c0_15 = arith.constant 0 : index
    %c0_16 = arith.constant 0 : index
    %c0_17 = arith.constant 0 : index
    %29 = vector.load %arg5[%c0_15, %c0_16, %c0_17] : memref<1x1x8xf32, #tpu.memory_space<vmem>>, vector<1x1x8xf32>
    %30 = vector.shape_cast %29 : vector<1x1x8xf32> to vector<1x8xf32>
    %cst_18 = arith.constant 5.000000e-01 : f32
    %31 = vector.broadcast %cst_18 : f32 to vector<1x8xf32>
    %32 = arith.cmpf ogt, %30, %31 : vector<1x8xf32>
    %cst_19 = arith.constant -1.000000e+30 : f32
    %cst_20 = arith.constant 0.000000e+00 : f32
    %33 = vector.broadcast %cst_19 : f32 to vector<1x8xf32>
    %34 = vector.broadcast %cst_20 : f32 to vector<1x8xf32>
    %35 = arith.select %32, %33, %34 : vector<1x8xi1>, vector<1x8xf32>
    %cst_21 = arith.constant 0.000000e+00 : f32
    %36 = vector.broadcast %cst_21 : f32 to vector<8x8xf32>
    %37 = vector.extract_strided_slice %26 {offsets = [0, 0], sizes = [8, 8], strides = [1, 1]} : vector<8x32xbf16> to vector<8x8xbf16>
    %38 = vector.extract_strided_slice %27 {offsets = [0, 0], sizes = [8, 8], strides = [1, 1]} : vector<8x32xbf16> to vector<8x8xbf16>
    %39 = vector.extract_strided_slice %28 {offsets = [0, 0], sizes = [8, 8], strides = [1, 1]} : vector<8x32xbf16> to vector<8x8xbf16>
    %cst_22 = arith.constant dense<0.000000e+00> : vector<8x8xf32>
    %40 = tpu.matmul %37, %38, %cst_22 {dimension_numbers = #tpu.dot_dimension_numbers<[1], [1], [0], [0], [0, 0, 1, 0], [], []>} : vector<8x8xbf16>, vector<8x8xbf16>, vector<8x8xf32> -> vector<8x8xf32>
    %41 = vector.broadcast %35 : vector<1x8xf32> to vector<8x8xf32>
    %42 = arith.addf %40, %41 : vector<8x8xf32>
    %cst_23 = arith.constant dense<0xFF800000> : vector<8xf32>
    %43 = vector.multi_reduction <maximumf>, %42, %cst_23 [1] : vector<8x8xf32> to vector<8xf32>
    %44 = vector.shape_cast %43 : vector<8xf32> to vector<8x1xf32>
    %45 = vector.broadcast %44 : vector<8x1xf32> to vector<8x8xf32>
    %46 = arith.subf %42, %45 : vector<8x8xf32>
    %47 = math.exp %46 : vector<8x8xf32>
    %cst_24 = arith.constant dense<0.000000e+00> : vector<8xf32>
    %48 = vector.multi_reduction <add>, %47, %cst_24 [1] : vector<8x8xf32> to vector<8xf32>
    %49 = vector.shape_cast %48 : vector<8xf32> to vector<8x1xf32>
    %50 = tpu.reciprocal %49 {approx = true} : vector<8x1xf32> -> vector<8x1xf32>
    %51 = vector.broadcast %50 : vector<8x1xf32> to vector<8x8xf32>
    %52 = arith.mulf %47, %51 : vector<8x8xf32>
    %53 = arith.addf %36, %52 : vector<8x8xf32>
    %54 = arith.truncf %52 : vector<8x8xf32> to vector<8x8xbf16>
    %cst_25 = arith.constant dense<0.000000e+00> : vector<8x8xf32>
    %55 = tpu.matmul %54, %39, %cst_25 {dimension_numbers = #tpu.dot_dimension_numbers<[1], [0], [0], [1], [0, 0, 1, 1], [], []>} : vector<8x8xbf16>, vector<8x8xbf16>, vector<8x8xf32> -> vector<8x8xf32>
    %56 = vector.extract_strided_slice %26 {offsets = [0, 8], sizes = [8, 8], strides = [1, 1]} : vector<8x32xbf16> to vector<8x8xbf16>
    %57 = vector.extract_strided_slice %27 {offsets = [0, 8], sizes = [8, 8], strides = [1, 1]} : vector<8x32xbf16> to vector<8x8xbf16>
    %58 = vector.extract_strided_slice %28 {offsets = [0, 8], sizes = [8, 8], strides = [1, 1]} : vector<8x32xbf16> to vector<8x8xbf16>
    %cst_26 = arith.constant dense<0.000000e+00> : vector<8x8xf32>
    %59 = tpu.matmul %56, %57, %cst_26 {dimension_numbers = #tpu.dot_dimension_numbers<[1], [1], [0], [0], [0, 0, 1, 0], [], []>} : vector<8x8xbf16>, vector<8x8xbf16>, vector<8x8xf32> -> vector<8x8xf32>
    %60 = vector.broadcast %35 : vector<1x8xf32> to vector<8x8xf32>
    %61 = arith.addf %59, %60 : vector<8x8xf32>
    %cst_27 = arith.constant dense<0xFF800000> : vector<8xf32>
    %62 = vector.multi_reduction <maximumf>, %61, %cst_27 [1] : vector<8x8xf32> to vector<8xf32>
    %63 = vector.shape_cast %62 : vector<8xf32> to vector<8x1xf32>
    %64 = vector.broadcast %63 : vector<8x1xf32> to vector<8x8xf32>
    %65 = arith.subf %61, %64 : vector<8x8xf32>
    %66 = math.exp %65 : vector<8x8xf32>
    %cst_28 = arith.constant dense<0.000000e+00> : vector<8xf32>
    %67 = vector.multi_reduction <add>, %66, %cst_28 [1] : vector<8x8xf32> to vector<8xf32>
    %68 = vector.shape_cast %67 : vector<8xf32> to vector<8x1xf32>
    %69 = tpu.reciprocal %68 {approx = true} : vector<8x1xf32> -> vector<8x1xf32>
    %70 = vector.broadcast %69 : vector<8x1xf32> to vector<8x8xf32>
    %71 = arith.mulf %66, %70 : vector<8x8xf32>
    %72 = arith.addf %53, %71 : vector<8x8xf32>
    %73 = arith.truncf %71 : vector<8x8xf32> to vector<8x8xbf16>
    %cst_29 = arith.constant dense<0.000000e+00> : vector<8x8xf32>
    %74 = tpu.matmul %73, %58, %cst_29 {dimension_numbers = #tpu.dot_dimension_numbers<[1], [0], [0], [1], [0, 0, 1, 1], [], []>} : vector<8x8xbf16>, vector<8x8xbf16>, vector<8x8xf32> -> vector<8x8xf32>
    %75 = vector.extract_strided_slice %26 {offsets = [0, 16], sizes = [8, 8], strides = [1, 1]} : vector<8x32xbf16> to vector<8x8xbf16>
    %76 = vector.extract_strided_slice %27 {offsets = [0, 16], sizes = [8, 8], strides = [1, 1]} : vector<8x32xbf16> to vector<8x8xbf16>
    %77 = vector.extract_strided_slice %28 {offsets = [0, 16], sizes = [8, 8], strides = [1, 1]} : vector<8x32xbf16> to vector<8x8xbf16>
    %cst_30 = arith.constant dense<0.000000e+00> : vector<8x8xf32>
    %78 = tpu.matmul %75, %76, %cst_30 {dimension_numbers = #tpu.dot_dimension_numbers<[1], [1], [0], [0], [0, 0, 1, 0], [], []>} : vector<8x8xbf16>, vector<8x8xbf16>, vector<8x8xf32> -> vector<8x8xf32>
    %79 = vector.broadcast %35 : vector<1x8xf32> to vector<8x8xf32>
    %80 = arith.addf %78, %79 : vector<8x8xf32>
    %cst_31 = arith.constant dense<0xFF800000> : vector<8xf32>
    %81 = vector.multi_reduction <maximumf>, %80, %cst_31 [1] : vector<8x8xf32> to vector<8xf32>
    %82 = vector.shape_cast %81 : vector<8xf32> to vector<8x1xf32>
    %83 = vector.broadcast %82 : vector<8x1xf32> to vector<8x8xf32>
    %84 = arith.subf %80, %83 : vector<8x8xf32>
    %85 = math.exp %84 : vector<8x8xf32>
    %cst_32 = arith.constant dense<0.000000e+00> : vector<8xf32>
    %86 = vector.multi_reduction <add>, %85, %cst_32 [1] : vector<8x8xf32> to vector<8xf32>
    %87 = vector.shape_cast %86 : vector<8xf32> to vector<8x1xf32>
    %88 = tpu.reciprocal %87 {approx = true} : vector<8x1xf32> -> vector<8x1xf32>
    %89 = vector.broadcast %88 : vector<8x1xf32> to vector<8x8xf32>
    %90 = arith.mulf %85, %89 : vector<8x8xf32>
    %91 = arith.addf %72, %90 : vector<8x8xf32>
    %92 = arith.truncf %90 : vector<8x8xf32> to vector<8x8xbf16>
    %cst_33 = arith.constant dense<0.000000e+00> : vector<8x8xf32>
    %93 = tpu.matmul %92, %77, %cst_33 {dimension_numbers = #tpu.dot_dimension_numbers<[1], [0], [0], [1], [0, 0, 1, 1], [], []>} : vector<8x8xbf16>, vector<8x8xbf16>, vector<8x8xf32> -> vector<8x8xf32>
    %94 = vector.extract_strided_slice %26 {offsets = [0, 24], sizes = [8, 8], strides = [1, 1]} : vector<8x32xbf16> to vector<8x8xbf16>
    %95 = vector.extract_strided_slice %27 {offsets = [0, 24], sizes = [8, 8], strides = [1, 1]} : vector<8x32xbf16> to vector<8x8xbf16>
    %96 = vector.extract_strided_slice %28 {offsets = [0, 24], sizes = [8, 8], strides = [1, 1]} : vector<8x32xbf16> to vector<8x8xbf16>
    %cst_34 = arith.constant dense<0.000000e+00> : vector<8x8xf32>
    %97 = tpu.matmul %94, %95, %cst_34 {dimension_numbers = #tpu.dot_dimension_numbers<[1], [1], [0], [0], [0, 0, 1, 0], [], []>} : vector<8x8xbf16>, vector<8x8xbf16>, vector<8x8xf32> -> vector<8x8xf32>
    %98 = vector.broadcast %35 : vector<1x8xf32> to vector<8x8xf32>
    %99 = arith.addf %97, %98 : vector<8x8xf32>
    %cst_35 = arith.constant dense<0xFF800000> : vector<8xf32>
    %100 = vector.multi_reduction <maximumf>, %99, %cst_35 [1] : vector<8x8xf32> to vector<8xf32>
    %101 = vector.shape_cast %100 : vector<8xf32> to vector<8x1xf32>
    %102 = vector.broadcast %101 : vector<8x1xf32> to vector<8x8xf32>
    %103 = arith.subf %99, %102 : vector<8x8xf32>
    %104 = math.exp %103 : vector<8x8xf32>
    %cst_36 = arith.constant dense<0.000000e+00> : vector<8xf32>
    %105 = vector.multi_reduction <add>, %104, %cst_36 [1] : vector<8x8xf32> to vector<8xf32>
    %106 = vector.shape_cast %105 : vector<8xf32> to vector<8x1xf32>
    %107 = tpu.reciprocal %106 {approx = true} : vector<8x1xf32> -> vector<8x1xf32>
    %108 = vector.broadcast %107 : vector<8x1xf32> to vector<8x8xf32>
    %109 = arith.mulf %104, %108 : vector<8x8xf32>
    %110 = arith.addf %91, %109 : vector<8x8xf32>
    %111 = arith.truncf %109 : vector<8x8xf32> to vector<8x8xbf16>
    %cst_37 = arith.constant dense<0.000000e+00> : vector<8x8xf32>
    %112 = tpu.matmul %111, %96, %cst_37 {dimension_numbers = #tpu.dot_dimension_numbers<[1], [0], [0], [1], [0, 0, 1, 1], [], []>} : vector<8x8xbf16>, vector<8x8xbf16>, vector<8x8xf32> -> vector<8x8xf32>
    %113 = tpu.concatenate %55, %74, %93, %112 in 1 : vector<8x8xf32>, vector<8x8xf32>, vector<8x8xf32>, vector<8x8xf32> -> vector<8x32xf32>
    %114 = arith.truncf %113 : vector<8x32xf32> to vector<8x32xbf16>
    %c0_38 = arith.constant 0 : index
    %c0_39 = arith.constant 0 : index
    %115 = vector.load %arg8[%c0_38, %c0_39] : memref<32x32xbf16, #tpu.memory_space<vmem>>, vector<32x32xbf16>
    %cst_40 = arith.constant dense<0.000000e+00> : vector<8x32xf32>
    %116 = tpu.matmul %114, %115, %cst_40 {dimension_numbers = #tpu.dot_dimension_numbers<[1], [0], [0], [1], [0, 0, 1, 1], [], []>} : vector<8x32xbf16>, vector<32x32xbf16>, vector<8x32xf32> -> vector<8x32xf32>
    %c0_41 = arith.constant 0 : index
    %c0_42 = arith.constant 0 : index
    %117 = vector.load %arg9[%c0_41, %c0_42] : memref<1x32xf32, #tpu.memory_space<vmem>>, vector<1x32xf32>
    %118 = vector.broadcast %117 : vector<1x32xf32> to vector<8x32xf32>
    %119 = arith.addf %116, %118 : vector<8x32xf32>
    %cst_43 = arith.constant 2.500000e-01 : f32
    %120 = vector.broadcast %cst_43 : f32 to vector<8x8xf32>
    %121 = arith.mulf %110, %120 : vector<8x8xf32>
    %c0_44 = arith.constant 0 : index
    %c0_45 = arith.constant 0 : index
    %c0_46 = arith.constant 0 : index
    %122 = vector.load %arg19[%c0_44, %c0_45, %c0_46] : memref<1x8x8xf32, #tpu.memory_space<vmem>>, vector<1x8x8xf32>
    %123 = vector.shape_cast %122 : vector<1x8x8xf32> to vector<8x8xf32>
    %124 = vector.shape_cast %121 : vector<8x8xf32> to vector<1x8x8xf32>
    tpu.vector_store %arg19[%c0_44, %c0_45, %c0_46], %124 {strides = array<i32>} : memref<1x8x8xf32, #tpu.memory_space<vmem>>, vector<1x8x8xf32>,
    %c0_47 = arith.constant 0 : index
    %c0_48 = arith.constant 0 : index
    %125 = vector.load %arg10[%c0_47, %c0_48] : memref<1x32xf32, #tpu.memory_space<vmem>>, vector<1x32xf32>
    %c0_49 = arith.constant 0 : index
    %c0_50 = arith.constant 0 : index
    %126 = vector.load %arg11[%c0_49, %c0_50] : memref<1x32xf32, #tpu.memory_space<vmem>>, vector<1x32xf32>
    %cst_51 = arith.constant dense<0.000000e+00> : vector<8xf32>
    %127 = vector.multi_reduction <add>, %119, %cst_51 [1] : vector<8x32xf32> to vector<8xf32>
    %128 = vector.shape_cast %127 : vector<8xf32> to vector<8x1xf32>
    %cst_52 = arith.constant 3.200000e+01 : f32
    %129 = vector.broadcast %cst_52 : f32 to vector<8x1xf32>
    %130 = arith.divf %128, %129 : vector<8x1xf32>
    %131 = vector.broadcast %130 : vector<8x1xf32> to vector<8x32xf32>
    %132 = arith.subf %119, %131 : vector<8x32xf32>
    %133 = arith.mulf %132, %132 : vector<8x32xf32>
    %cst_53 = arith.constant dense<0.000000e+00> : vector<8xf32>
    %134 = vector.multi_reduction <add>, %133, %cst_53 [1] : vector<8x32xf32> to vector<8xf32>
    %135 = vector.shape_cast %134 : vector<8xf32> to vector<8x1xf32>
    %cst_54 = arith.constant 3.200000e+01 : f32
    %136 = vector.broadcast %cst_54 : f32 to vector<8x1xf32>
    %137 = arith.divf %135, %136 : vector<8x1xf32>
    %138 = vector.broadcast %130 : vector<8x1xf32> to vector<8x32xf32>
    %139 = arith.subf %119, %138 : vector<8x32xf32>
    %cst_55 = arith.constant 9.99999974E-6 : f32
    %140 = vector.broadcast %cst_55 : f32 to vector<8x1xf32>
    %141 = arith.addf %137, %140 : vector<8x1xf32>
    %142 = math.rsqrt %141 : vector<8x1xf32>
    %143 = vector.broadcast %142 : vector<8x1xf32> to vector<8x32xf32>
    %144 = arith.mulf %139, %143 : vector<8x32xf32>
    %145 = vector.broadcast %125 : vector<1x32xf32> to vector<8x32xf32>
    %146 = arith.mulf %144, %145 : vector<8x32xf32>
    %147 = vector.broadcast %126 : vector<1x32xf32> to vector<8x32xf32>
    %148 = arith.addf %146, %147 : vector<8x32xf32>
    %149 = arith.addf %1, %148 : vector<8x32xf32>
    %c0_56 = arith.constant 0 : index
    %c0_57 = arith.constant 0 : index
    %150 = vector.load %arg12[%c0_56, %c0_57] : memref<1x32xf32, #tpu.memory_space<vmem>>, vector<1x32xf32>
    %c0_58 = arith.constant 0 : index
    %c0_59 = arith.constant 0 : index
    %151 = vector.load %arg13[%c0_58, %c0_59] : memref<1x32xf32, #tpu.memory_space<vmem>>, vector<1x32xf32>
    %cst_60 = arith.constant dense<0.000000e+00> : vector<8xf32>
    %152 = vector.multi_reduction <add>, %149, %cst_60 [1] : vector<8x32xf32> to vector<8xf32>
    %153 = vector.shape_cast %152 : vector<8xf32> to vector<8x1xf32>
    %cst_61 = arith.constant 3.200000e+01 : f32
    %154 = vector.broadcast %cst_61 : f32 to vector<8x1xf32>
    %155 = arith.divf %153, %154 : vector<8x1xf32>
    %156 = vector.broadcast %155 : vector<8x1xf32> to vector<8x32xf32>
    %157 = arith.subf %149, %156 : vector<8x32xf32>
    %158 = arith.mulf %157, %157 : vector<8x32xf32>
    %cst_62 = arith.constant dense<0.000000e+00> : vector<8xf32>
    %159 = vector.multi_reduction <add>, %158, %cst_62 [1] : vector<8x32xf32> to vector<8xf32>
    %160 = vector.shape_cast %159 : vector<8xf32> to vector<8x1xf32>
    %cst_63 = arith.constant 3.200000e+01 : f32
    %161 = vector.broadcast %cst_63 : f32 to vector<8x1xf32>
    %162 = arith.divf %160, %161 : vector<8x1xf32>
    %163 = vector.broadcast %155 : vector<8x1xf32> to vector<8x32xf32>
    %164 = arith.subf %149, %163 : vector<8x32xf32>
    %cst_64 = arith.constant 9.99999974E-6 : f32
    %165 = vector.broadcast %cst_64 : f32 to vector<8x1xf32>
    %166 = arith.addf %162, %165 : vector<8x1xf32>
    %167 = math.rsqrt %166 : vector<8x1xf32>
    %168 = vector.broadcast %167 : vector<8x1xf32> to vector<8x32xf32>
    %169 = arith.mulf %164, %168 : vector<8x32xf32>
    %170 = vector.broadcast %150 : vector<1x32xf32> to vector<8x32xf32>
    %171 = arith.mulf %169, %170 : vector<8x32xf32>
    %172 = vector.broadcast %151 : vector<1x32xf32> to vector<8x32xf32>
    %173 = arith.addf %171, %172 : vector<8x32xf32>
    %174 = arith.truncf %173 : vector<8x32xf32> to vector<8x32xbf16>
    %c0_65 = arith.constant 0 : index
    %c0_66 = arith.constant 0 : index
    %175 = vector.load %arg14[%c0_65, %c0_66] : memref<32x128xbf16, #tpu.memory_space<vmem>>, vector<32x128xbf16>
    %cst_67 = arith.constant dense<0.000000e+00> : vector<8x128xf32>
    %176 = tpu.matmul %174, %175, %cst_67 {dimension_numbers = #tpu.dot_dimension_numbers<[1], [0], [0], [1], [0, 0, 1, 1], [], []>} : vector<8x32xbf16>, vector<32x128xbf16>, vector<8x128xf32> -> vector<8x128xf32>
    %c0_68 = arith.constant 0 : index
    %c0_69 = arith.constant 0 : index
    %177 = vector.load %arg15[%c0_68, %c0_69] : memref<1x128xf32, #tpu.memory_space<vmem>>, vector<1x128xf32>
    %178 = vector.broadcast %177 : vector<1x128xf32> to vector<8x128xf32>
    %179 = arith.addf %176, %178 : vector<8x128xf32>
    %cst_70 = arith.constant 1.702000e+00 : f32
    %180 = vector.broadcast %cst_70 : f32 to vector<8x128xf32>
    %181 = arith.mulf %180, %179 : vector<8x128xf32>
    %182 = arith.negf %181 : vector<8x128xf32>
    %183 = math.exp %182 : vector<8x128xf32>
    %cst_71 = arith.constant 1.000000e+00 : f32
    %184 = vector.broadcast %cst_71 : f32 to vector<8x128xf32>
    %185 = arith.addf %184, %183 : vector<8x128xf32>
    %186 = arith.divf %184, %185 : vector<8x128xf32>
    %187 = arith.mulf %179, %186 : vector<8x128xf32>
    %188 = arith.truncf %187 : vector<8x128xf32> to vector<8x128xbf16>
    %c0_72 = arith.constant 0 : index
    %c0_73 = arith.constant 0 : index
    %189 = vector.load %arg16[%c0_72, %c0_73] : memref<128x32xbf16, #tpu.memory_space<vmem>>, vector<128x32xbf16>
    %cst_74 = arith.constant dense<0.000000e+00> : vector<8x32xf32>
    %190 = tpu.matmul %188, %189, %cst_74 {dimension_numbers = #tpu.dot_dimension_numbers<[1], [0], [0], [1], [0, 0, 1, 1], [], []>} : vector<8x128xbf16>, vector<128x32xbf16>, vector<8x32xf32> -> vector<8x32xf32>
    %c0_75 = arith.constant 0 : index
    %c0_76 = arith.constant 0 : index
    %191 = vector.load %arg17[%c0_75, %c0_76] : memref<1x32xf32, #tpu.memory_space<vmem>>, vector<1x32xf32>
    %192 = vector.broadcast %191 : vector<1x32xf32> to vector<8x32xf32>
    %193 = arith.addf %190, %192 : vector<8x32xf32>
    %194 = arith.addf %149, %193 : vector<8x32xf32>
    %c0_77 = arith.constant 0 : index
    %c0_78 = arith.constant 0 : index
    %c0_79 = arith.constant 0 : index
    %195 = vector.load %arg18[%c0_77, %c0_78, %c0_79] : memref<1x8x32xf32, #tpu.memory_space<vmem>>, vector<1x8x32xf32>
    %196 = vector.shape_cast %195 : vector<1x8x32xf32> to vector<8x32xf32>
    %197 = vector.shape_cast %194 : vector<8x32xf32> to vector<1x8x32xf32>
    tpu.vector_store %arg18[%c0_77, %c0_78, %c0_79], %197 {strides = array<i32>} : memref<1x8x32xf32, #tpu.memory_space<vmem>>, vector<1x8x32xf32>,
    return
  }
  func.func @transform_0(%arg0: i32, %arg1: i32) -> (i32, i32, i32) {
    %c0_i32 = arith.constant 0 : i32
    %c0_i32_0 = arith.constant 0 : i32
    return %arg0, %arg1, %c0_i32 : i32, i32, i32
  }
  func.func @transform_1(%arg0: i32, %arg1: i32) -> (i32, i32, i32) {
    %c0_i32 = arith.constant 0 : i32
    %c0_i32_0 = arith.constant 0 : i32
    %c0_i32_1 = arith.constant 0 : i32
    return %arg0, %c0_i32, %c0_i32_0 : i32, i32, i32
  }
  func.func @transform_2(%arg0: i32, %arg1: i32) -> (i32, i32, i32) {
    %c0_i32 = arith.constant 0 : i32
    %c0_i32_0 = arith.constant 0 : i32
    %c0_i32_1 = arith.constant 0 : i32
    return %arg0, %c0_i32, %c0_i32_0 : i32, i32, i32
  }
  func.func @transform_3(%arg0: i32, %arg1: i32) -> (i32, i32, i32) {
    %c0_i32 = arith.constant 0 : i32
    %c0_i32_0 = arith.constant 0 : i32
    %c0_i32_1 = arith.constant 0 : i32
    return %arg0, %c0_i32, %c0_i32_0 : i32, i32, i32
  }
  func.func @transform_4(%arg0: i32, %arg1: i32) -> (i32, i32) {
    %c0_i32 = arith.constant 0 : i32
    %c0_i32_0 = arith.constant 0 : i32
    %c0_i32_1 = arith.constant 0 : i32
    return %c0_i32, %c0_i32_0 : i32, i32
  }
  func.func @transform_5(%arg0: i32, %arg1: i32) -> (i32, i32) {
    %c0_i32 = arith.constant 0 : i32
    %c0_i32_0 = arith.constant 0 : i32
    %c0_i32_1 = arith.constant 0 : i32
    return %c0_i32, %c0_i32_0 : i32, i32
  }
  func.func @transform_6(%arg0: i32, %arg1: i32) -> (i32, i32) {
    %c0_i32 = arith.constant 0 : i32
    %c0_i32_0 = arith.constant 0 : i32
    %c0_i32_1 = arith.constant 0 : i32
    return %c0_i32, %c0_i32_0 : i32, i32
  }
  func.func @transform_7(%arg0: i32, %arg1: i32) -> (i32, i32) {
    %c0_i32 = arith.constant 0 : i32
    %c0_i32_0 = arith.constant 0 : i32
    %c0_i32_1 = arith.constant 0 : i32
    return %c0_i32, %c0_i32_0 : i32, i32
  }
  func.func @transform_8(%arg0: i32, %arg1: i32) -> (i32, i32) {
    %c0_i32 = arith.constant 0 : i32
    %c0_i32_0 = arith.constant 0 : i32
    %c0_i32_1 = arith.constant 0 : i32
    return %c0_i32, %c0_i32_0 : i32, i32
  }
  func.func @transform_9(%arg0: i32, %arg1: i32) -> (i32, i32) {
    %c0_i32 = arith.constant 0 : i32
    %c0_i32_0 = arith.constant 0 : i32
    %c0_i32_1 = arith.constant 0 : i32
    return %c0_i32, %c0_i32_0 : i32, i32
  }
  func.func @transform_10(%arg0: i32, %arg1: i32) -> (i32, i32) {
    %c0_i32 = arith.constant 0 : i32
    %c0_i32_0 = arith.constant 0 : i32
    %c0_i32_1 = arith.constant 0 : i32
    return %c0_i32, %c0_i32_0 : i32, i32
  }
  func.func @transform_11(%arg0: i32, %arg1: i32) -> (i32, i32) {
    %c0_i32 = arith.constant 0 : i32
    %c0_i32_0 = arith.constant 0 : i32
    %c0_i32_1 = arith.constant 0 : i32
    return %c0_i32, %c0_i32_0 : i32, i32
  }
  func.func @transform_12(%arg0: i32, %arg1: i32) -> (i32, i32) {
    %c0_i32 = arith.constant 0 : i32
    %c0_i32_0 = arith.constant 0 : i32
    %c0_i32_1 = arith.constant 0 : i32
    return %c0_i32, %c0_i32_0 : i32, i32
  }
  func.func @transform_13(%arg0: i32, %arg1: i32) -> (i32, i32) {
    %c0_i32 = arith.constant 0 : i32
    %c0_i32_0 = arith.constant 0 : i32
    %c0_i32_1 = arith.constant 0 : i32
    return %c0_i32, %c0_i32_0 : i32, i32
  }
  func.func @transform_14(%arg0: i32, %arg1: i32) -> (i32, i32) {
    %c0_i32 = arith.constant 0 : i32
    %c0_i32_0 = arith.constant 0 : i32
    %c0_i32_1 = arith.constant 0 : i32
    return %c0_i32, %c0_i32_0 : i32, i32
  }
  func.func @transform_15(%arg0: i32, %arg1: i32) -> (i32, i32) {
    %c0_i32 = arith.constant 0 : i32
    %c0_i32_0 = arith.constant 0 : i32
    %c0_i32_1 = arith.constant 0 : i32
    return %c0_i32, %c0_i32_0 : i32, i32
  }
  func.func @transform_16(%arg0: i32, %arg1: i32) -> (i32, i32, i32) {
    %c0_i32 = arith.constant 0 : i32
    %c0_i32_0 = arith.constant 0 : i32
    return %arg0, %arg1, %c0_i32 : i32, i32, i32
  }
  func.func @transform_17(%arg0: i32, %arg1: i32) -> (i32, i32, i32) {
    %c0_i32 = arith.constant 0 : i32
    %c0_i32_0 = arith.constant 0 : i32
    return %arg0, %arg1, %c0_i32 : i32, i32, i32
  }
}

</mosaic_0001>

<llo_original>
// kernel: tpu_custom_call.1
$region0: #{tpu_custom_call.1}
  #allocation0 [shape = 'u32[]', space=smem, size = 0x4, offset = 0x4, fixed_abs, tag = 'smem constant byte address 0x4 - core index']
  #allocation1 [shape = 'u32[144,128]{1,0:T(1,128)}', space=vmem, size = 0x12000, scoped, tag = 'internal scratch']
  %s0 = inlined_call_operand.vmem [shape: f32[2,8,32], index: 0, kind: input, shape index: {}]
  %s1 = inlined_call_operand.vmem [shape: bf16[2,8,32], index: 1, kind: input, shape index: {}]
  %s2 = inlined_call_operand.vmem [shape: bf16[2,8,32], index: 2, kind: input, shape index: {}]
  %s3 = inlined_call_operand.vmem [shape: f32[2,1,8], index: 3, kind: input, shape index: {}]
  %s4 = inlined_call_operand.vmem [shape: bf16[32,96], index: 4, kind: input, shape index: {}]
  %s5 = inlined_call_operand.vmem [shape: f32[1,96], index: 5, kind: input, shape index: {}]
  %s6 = inlined_call_operand.vmem [shape: bf16[32,32], index: 6, kind: input, shape index: {}]
  %s7 = inlined_call_operand.vmem [shape: f32[1,32], index: 7, kind: input, shape index: {}]
  %s8 = inlined_call_operand.vmem [shape: f32[1,32], index: 8, kind: input, shape index: {}]
  %s9 = inlined_call_operand.vmem [shape: f32[1,32], index: 9, kind: input, shape index: {}]
  %s10 = inlined_call_operand.vmem [shape: f32[1,32], index: 10, kind: input, shape index: {}]
  %s11 = inlined_call_operand.vmem [shape: f32[1,32], index: 11, kind: input, shape index: {}]
  %s12 = inlined_call_operand.vmem [shape: bf16[32,128], index: 12, kind: input, shape index: {}]
  %s13 = inlined_call_operand.vmem [shape: f32[1,128], index: 13, kind: input, shape index: {}]
  %s14 = inlined_call_operand.vmem [shape: bf16[128,32], index: 14, kind: input, shape index: {}]
  %s15 = inlined_call_operand.vmem [shape: f32[1,32], index: 15, kind: input, shape index: {}]
  %s16 = inlined_call_operand.hbm [shape: f32[2,8,32], index: 16, kind: output, shape index: {0}]
  %s17 = inlined_call_operand.hbm [shape: f32[2,8,8], index: 17, kind: output, shape index: {1}]
  %18 = xla_tuple %s16, %s17
  %s19 = sld [smem:[#allocation0]]
  $region105: #{tpu_custom_call.1} parent=0
    _
  %s21 = ssub.s32 1, %s19
  %s22 = scalar_select 0, %s21, %s19
  $region1: #{tpu_custom_call.1} parent=0
    #allocation2 [shape = 'u8[8192]{0}', space=vmem, size = 0x2000, scoped, tag = 'output window, operand 0']
    #allocation3 [shape = 's32[2]{0}', space=sflag, size = 0x8, scoped, tag = 'scoped memory for tpu_custom_call.1']
    #allocation4 [shape = 'u8[8192]{0}', space=vmem, size = 0x2000, scoped, tag = 'output window, operand 1']
    #allocation5 [shape = 's32[2]{0}', space=sflag, size = 0x8, scoped, tag = 'scoped memory for tpu_custom_call.1']
    %23 = vsyncpa [#allocation3], 0
    %s24 = scalar_lea.sflag [#allocation3], 1
    %25 = vsyncpa %s24, 0
    %26 = vsyncpa [#allocation5], 0
    %s27 = scalar_lea.sflag [#allocation5], 1
    %28 = vsyncpa %s27, 0
    loop: start=0, step=1, limit=4
    $region2: #{tpu_custom_call.1} parent=1 // loop_pre_header
      _
    $region3: #{tpu_custom_call.1} parent=1 // loop_header
      %s30 = sphi 0, %s34
      %p31 = scmp.ge.s32.totalorder %s30, 4
      %s37 = sphi 0, %s49
      %s38 = sphi 0, %s45
      %s39 = sphi 0, %s37
      %s40 = sphi 0, %s38
      %s41 = sphi 0, %s39
      %s42 = sphi 0, %s40
      %s54 = sphi 0, %s56
      %s57 = sphi 0, %s54
      %s58 = sphi 0, %s57
      %s74 = sphi 0, %s58
      %s80 = sphi 0, %s82
      %s83 = sphi 0, %s80
      %s84 = sphi 0, %s83
      %s100 = sphi 0, %s84
      %s106 = sphi 0, %s108
      %s109 = sphi 0, %s106
      %s110 = sphi 0, %s109
      %s126 = sphi 0, %s110
      %s132 = sphi 0, %s134
      %s135 = sphi 0, %s132
      %s136 = sphi 0, %s135
      %s152 = sphi 0, %s136
      %s156 = sphi 0, %s156
      %s158 = sphi 0, %s156
      %s159 = sphi 0, %s158
      %s173 = sphi 0, %s159
      %s177 = sphi 0, %s177
      %s179 = sphi 0, %s177
      %s180 = sphi 0, %s179
      %s194 = sphi 0, %s180
      %s198 = sphi 0, %s198
      %s200 = sphi 0, %s198
      %s201 = sphi 0, %s200
      %s215 = sphi 0, %s201
      %s219 = sphi 0, %s219
      %s221 = sphi 0, %s219
      %s222 = sphi 0, %s221
      %s236 = sphi 0, %s222
      %s240 = sphi 0, %s240
      %s242 = sphi 0, %s240
      %s243 = sphi 0, %s242
      %s257 = sphi 0, %s243
      %s261 = sphi 0, %s261
      %s263 = sphi 0, %s261
      %s264 = sphi 0, %s263
      %s278 = sphi 0, %s264
      %s282 = sphi 0, %s282
      %s284 = sphi 0, %s282
      %s285 = sphi 0, %s284
      %s299 = sphi 0, %s285
      %s303 = sphi 0, %s303
      %s305 = sphi 0, %s303
      %s306 = sphi 0, %s305
      %s320 = sphi 0, %s306
      %s324 = sphi 0, %s324
      %s326 = sphi 0, %s324
      %s327 = sphi 0, %s326
      %s341 = sphi 0, %s327
      %s345 = sphi 0, %s345
      %s347 = sphi 0, %s345
      %s348 = sphi 0, %s347
      %s362 = sphi 0, %s348
      %s366 = sphi 0, %s366
      %s368 = sphi 0, %s366
      %s369 = sphi 0, %s368
      %s383 = sphi 0, %s369
      %s387 = sphi 0, %s387
      %s389 = sphi 0, %s387
      %s390 = sphi 0, %s389
      %s404 = sphi 0, %s390
      %s412 = sphi 0, %s414
      %s415 = sphi 0, %s412
      %s416 = sphi 0, %s415
      %s432 = sphi 0, %s416
      %s440 = sphi 0, %s442
      %s443 = sphi 0, %s440
      %s444 = sphi 0, %s443
      %s460 = sphi 0, %s444
    $region4: #{tpu_custom_call.1} parent=1 // loop_header_branch
      %33 = sbr.rel (%p31) target = $region8
    $region5: #{tpu_custom_call.1} parent=1 // loop_body
      %s35 = ssub.s32 %s30, 1
      %s36 = ssub.s32 %s30, 2
      %s43 = sadd.s32 1, %s38
      %p44 = scmp.ge.s32.totalorder %s43, 1
      %s45 = scalar_select %p44, 0, %s43
      %s46 = sadd.s32 1, %s37
      %s47 = scalar_select %p44, %s46, %s37
      %p48 = scmp.ge.s32.totalorder %s47, 2
      %s49 = scalar_select %p48, 0, %s47
      %s50 = ssub.s32 %s37, %s49
      %s51 = ssub.s32 %s38, %s45
      %s52 = sor.u32 %s50, %s51
      %p53 = scmp.eq.s32.totalorder %s52, 0
      %s55 = sadd.s32 %s54, 1
      %s56 = scalar_select %p53, %s54, %s55
      %p59 = pneg %p53
      %p60 = scmp.eq.s32.totalorder %s30, 1
      %p61 = por %p59, %p60
      %p62 = scmp.ne.s32.totalorder %s54, %s57
      %p63 = scmp.eq.s32.totalorder %s30, 0
      %p64 = por %p62, %p63
      %p65 = scmp.ne.s32.totalorder %s54, %s57
      %p66 = scmp.eq.s32.totalorder %s35, 1
      %p67 = por %p65, %p66
      %p68 = scmp.ne.s32.totalorder %s57, %s58
      %p69 = scmp.eq.s32.totalorder %s35, 0
      %p70 = por %p68, %p69
      %p71 = scmp.ne.s32.totalorder %s57, %s58
      %p72 = scmp.eq.s32.totalorder %s36, 1
      %p73 = por %p71, %p72
      %p75 = scmp.ne.s32.totalorder %s58, %s74
      %p76 = scmp.eq.s32.totalorder %s36, 0
      %p77 = por %p75, %p76
      %s78 = ssub.s32 %s37, %s49
      %p79 = scmp.eq.s32.totalorder %s78, 0
      %s81 = sadd.s32 %s80, 1
      %s82 = scalar_select %p79, %s80, %s81
      %p85 = pneg %p79
      %p86 = scmp.eq.s32.totalorder %s30, 1
      %p87 = por %p85, %p86
      %p88 = scmp.ne.s32.totalorder %s80, %s83
      %p89 = scmp.eq.s32.totalorder %s30, 0
      %p90 = por %p88, %p89
      %p91 = scmp.ne.s32.totalorder %s80, %s83
      %p92 = scmp.eq.s32.totalorder %s35, 1
      %p93 = por %p91, %p92
      %p94 = scmp.ne.s32.totalorder %s83, %s84
      %p95 = scmp.eq.s32.totalorder %s35, 0
      %p96 = por %p94, %p95
      %p97 = scmp.ne.s32.totalorder %s83, %s84
      %p98 = scmp.eq.s32.totalorder %s36, 1
      %p99 = por %p97, %p98
      %p101 = scmp.ne.s32.totalorder %s84, %s100
      %p102 = scmp.eq.s32.totalorder %s36, 0
      %p103 = por %p101, %p102
      %s104 = ssub.s32 %s37, %s49
      %p105 = scmp.eq.s32.totalorder %s104, 0
      %s107 = sadd.s32 %s106, 1
      %s108 = scalar_select %p105, %s106, %s107
      %p111 = pneg %p105
      %p112 = scmp.eq.s32.totalorder %s30, 1
      %p113 = por %p111, %p112
      %p114 = scmp.ne.s32.totalorder %s106, %s109
      %p115 = scmp.eq.s32.totalorder %s30, 0
      %p116 = por %p114, %p115
      %p117 = scmp.ne.s32.totalorder %s106, %s109
      %p118 = scmp.eq.s32.totalorder %s35, 1
      %p119 = por %p117, %p118
      %p120 = scmp.ne.s32.totalorder %s109, %s110
      %p121 = scmp.eq.s32.totalorder %s35, 0
      %p122 = por %p120, %p121
      %p123 = scmp.ne.s32.totalorder %s109, %s110
      %p124 = scmp.eq.s32.totalorder %s36, 1
      %p125 = por %p123, %p124
      %p127 = scmp.ne.s32.totalorder %s110, %s126
      %p128 = scmp.eq.s32.totalorder %s36, 0
      %p129 = por %p127, %p128
      %s130 = ssub.s32 %s37, %s49
      %p131 = scmp.eq.s32.totalorder %s130, 0
      %s133 = sadd.s32 %s132, 1
      %s134 = scalar_select %p131, %s132, %s133
      %p137 = pneg %p131
      %p138 = scmp.eq.s32.totalorder %s30, 1
      %p139 = por %p137, %p138
      %p140 = scmp.ne.s32.totalorder %s132, %s135
      %p141 = scmp.eq.s32.totalorder %s30, 0
      %p142 = por %p140, %p141
      %p143 = scmp.ne.s32.totalorder %s132, %s135
      %p144 = scmp.eq.s32.totalorder %s35, 1
      %p145 = por %p143, %p144
      %p146 = scmp.ne.s32.totalorder %s135, %s136
      %p147 = scmp.eq.s32.totalorder %s35, 0
      %p148 = por %p146, %p147
      %p149 = scmp.ne.s32.totalorder %s135, %s136
      %p150 = scmp.eq.s32.totalorder %s36, 1
      %p151 = por %p149, %p150
      %p153 = scmp.ne.s32.totalorder %s136, %s152
      %p154 = scmp.eq.s32.totalorder %s36, 0
      %p155 = por %p153, %p154
      %s157 = sadd.s32 %s156, 1
      %p160 = scmp.eq.s32.totalorder %s30, 1
      %p161 = scmp.ne.s32.totalorder %s156, %s158
      %p162 = scmp.eq.s32.totalorder %s30, 0
      %p163 = por %p161, %p162
      %p164 = scmp.ne.s32.totalorder %s156, %s158
      %p165 = scmp.eq.s32.totalorder %s35, 1
      %p166 = por %p164, %p165
      %p167 = scmp.ne.s32.totalorder %s158, %s159
      %p168 = scmp.eq.s32.totalorder %s35, 0
      %p169 = por %p167, %p168
      %p170 = scmp.ne.s32.totalorder %s158, %s159
      %p171 = scmp.eq.s32.totalorder %s36, 1
      %p172 = por %p170, %p171
      %p174 = scmp.ne.s32.totalorder %s159, %s173
      %p175 = scmp.eq.s32.totalorder %s36, 0
      %p176 = por %p174, %p175
      %s178 = sadd.s32 %s177, 1
      %p181 = scmp.eq.s32.totalorder %s30, 1
      %p182 = scmp.ne.s32.totalorder %s177, %s179
      %p183 = scmp.eq.s32.totalorder %s30, 0
      %p184 = por %p182, %p183
      %p185 = scmp.ne.s32.totalorder %s177, %s179
      %p186 = scmp.eq.s32.totalorder %s35, 1
      %p187 = por %p185, %p186
      %p188 = scmp.ne.s32.totalorder %s179, %s180
      %p189 = scmp.eq.s32.totalorder %s35, 0
      %p190 = por %p188, %p189
      %p191 = scmp.ne.s32.totalorder %s179, %s180
      %p192 = scmp.eq.s32.totalorder %s36, 1
      %p193 = por %p191, %p192
      %p195 = scmp.ne.s32.totalorder %s180, %s194
      %p196 = scmp.eq.s32.totalorder %s36, 0
      %p197 = por %p195, %p196
      %s199 = sadd.s32 %s198, 1
      %p202 = scmp.eq.s32.totalorder %s30, 1
      %p203 = scmp.ne.s32.totalorder %s198, %s200
      %p204 = scmp.eq.s32.totalorder %s30, 0
      %p205 = por %p203, %p204
      %p206 = scmp.ne.s32.totalorder %s198, %s200
      %p207 = scmp.eq.s32.totalorder %s35, 1
      %p208 = por %p206, %p207
      %p209 = scmp.ne.s32.totalorder %s200, %s201
      %p210 = scmp.eq.s32.totalorder %s35, 0
      %p211 = por %p209, %p210
      %p212 = scmp.ne.s32.totalorder %s200, %s201
      %p213 = scmp.eq.s32.totalorder %s36, 1
      %p214 = por %p212, %p213
      %p216 = scmp.ne.s32.totalorder %s201, %s215
      %p217 = scmp.eq.s32.totalorder %s36, 0
      %p218 = por %p216, %p217
      %s220 = sadd.s32 %s219, 1
      %p223 = scmp.eq.s32.totalorder %s30, 1
      %p224 = scmp.ne.s32.totalorder %s219, %s221
      %p225 = scmp.eq.s32.totalorder %s30, 0
      %p226 = por %p224, %p225
      %p227 = scmp.ne.s32.totalorder %s219, %s221
      %p228 = scmp.eq.s32.totalorder %s35, 1
      %p229 = por %p227, %p228
      %p230 = scmp.ne.s32.totalorder %s221, %s222
      %p231 = scmp.eq.s32.totalorder %s35, 0
      %p232 = por %p230, %p231
      %p233 = scmp.ne.s32.totalorder %s221, %s222
      %p234 = scmp.eq.s32.totalorder %s36, 1
      %p235 = por %p233, %p234
      %p237 = scmp.ne.s32.totalorder %s222, %s236
      %p238 = scmp.eq.s32.totalorder %s36, 0
      %p239 = por %p237, %p238
      %s241 = sadd.s32 %s240, 1
      %p244 = scmp.eq.s32.totalorder %s30, 1
      %p245 = scmp.ne.s32.totalorder %s240, %s242
      %p246 = scmp.eq.s32.totalorder %s30, 0
      %p247 = por %p245, %p246
      %p248 = scmp.ne.s32.totalorder %s240, %s242
      %p249 = scmp.eq.s32.totalorder %s35, 1
      %p250 = por %p248, %p249
      %p251 = scmp.ne.s32.totalorder %s242, %s243
      %p252 = scmp.eq.s32.totalorder %s35, 0
      %p253 = por %p251, %p252
      %p254 = scmp.ne.s32.totalorder %s242, %s243
      %p255 = scmp.eq.s32.totalorder %s36, 1
      %p256 = por %p254, %p255
      %p258 = scmp.ne.s32.totalorder %s243, %s257
      %p259 = scmp.eq.s32.totalorder %s36, 0
      %p260 = por %p258, %p259
      %s262 = sadd.s32 %s261, 1
      %p265 = scmp.eq.s32.totalorder %s30, 1
      %p266 = scmp.ne.s32.totalorder %s261, %s263
      %p267 = scmp.eq.s32.totalorder %s30, 0
      %p268 = por %p266, %p267
      %p269 = scmp.ne.s32.totalorder %s261, %s263
      %p270 = scmp.eq.s32.totalorder %s35, 1
      %p271 = por %p269, %p270
      %p272 = scmp.ne.s32.totalorder %s263, %s264
      %p273 = scmp.eq.s32.totalorder %s35, 0
      %p274 = por %p272, %p273
      %p275 = scmp.ne.s32.totalorder %s263, %s264
      %p276 = scmp.eq.s32.totalorder %s36, 1
      %p277 = por %p275, %p276
      %p279 = scmp.ne.s32.totalorder %s264, %s278
      %p280 = scmp.eq.s32.totalorder %s36, 0
      %p281 = por %p279, %p280
      %s283 = sadd.s32 %s282, 1
      %p286 = scmp.eq.s32.totalorder %s30, 1
      %p287 = scmp.ne.s32.totalorder %s282, %s284
      %p288 = scmp.eq.s32.totalorder %s30, 0
      %p289 = por %p287, %p288
      %p290 = scmp.ne.s32.totalorder %s282, %s284
      %p291 = scmp.eq.s32.totalorder %s35, 1
      %p292 = por %p290, %p291
      %p293 = scmp.ne.s32.totalorder %s284, %s285
      %p294 = scmp.eq.s32.totalorder %s35, 0
      %p295 = por %p293, %p294
      %p296 = scmp.ne.s32.totalorder %s284, %s285
      %p297 = scmp.eq.s32.totalorder %s36, 1
      %p298 = por %p296, %p297
      %p300 = scmp.ne.s32.totalorder %s285, %s299
      %p301 = scmp.eq.s32.totalorder %s36, 0
      %p302 = por %p300, %p301
      %s304 = sadd.s32 %s303, 1
      %p307 = scmp.eq.s32.totalorder %s30, 1
      %p308 = scmp.ne.s32.totalorder %s303, %s305
      %p309 = scmp.eq.s32.totalorder %s30, 0
      %p310 = por %p308, %p309
      %p311 = scmp.ne.s32.totalorder %s303, %s305
      %p312 = scmp.eq.s32.totalorder %s35, 1
      %p313 = por %p311, %p312
      %p314 = scmp.ne.s32.totalorder %s305, %s306
      %p315 = scmp.eq.s32.totalorder %s35, 0
      %p316 = por %p314, %p315
      %p317 = scmp.ne.s32.totalorder %s305, %s306
      %p318 = scmp.eq.s32.totalorder %s36, 1
      %p319 = por %p317, %p318
      %p321 = scmp.ne.s32.totalorder %s306, %s320
      %p322 = scmp.eq.s32.totalorder %s36, 0
      %p323 = por %p321, %p322
      %s325 = sadd.s32 %s324, 1
      %p328 = scmp.eq.s32.totalorder %s30, 1
      %p329 = scmp.ne.s32.totalorder %s324, %s326
      %p330 = scmp.eq.s32.totalorder %s30, 0
      %p331 = por %p329, %p330
      %p332 = scmp.ne.s32.totalorder %s324, %s326
      %p333 = scmp.eq.s32.totalorder %s35, 1
      %p334 = por %p332, %p333
      %p335 = scmp.ne.s32.totalorder %s326, %s327
      %p336 = scmp.eq.s32.totalorder %s35, 0
      %p337 = por %p335, %p336
      %p338 = scmp.ne.s32.totalorder %s326, %s327
      %p339 = scmp.eq.s32.totalorder %s36, 1
      %p340 = por %p338, %p339
      %p342 = scmp.ne.s32.totalorder %s327, %s341
      %p343 = scmp.eq.s32.totalorder %s36, 0
      %p344 = por %p342, %p343
      %s346 = sadd.s32 %s345, 1
      %p349 = scmp.eq.s32.totalorder %s30, 1
      %p350 = scmp.ne.s32.totalorder %s345, %s347
      %p351 = scmp.eq.s32.totalorder %s30, 0
      %p352 = por %p350, %p351
      %p353 = scmp.ne.s32.totalorder %s345, %s347
      %p354 = scmp.eq.s32.totalorder %s35, 1
      %p355 = por %p353, %p354
      %p356 = scmp.ne.s32.totalorder %s347, %s348
      %p357 = scmp.eq.s32.totalorder %s35, 0
      %p358 = por %p356, %p357
      %p359 = scmp.ne.s32.totalorder %s347, %s348
      %p360 = scmp.eq.s32.totalorder %s36, 1
      %p361 = por %p359, %p360
      %p363 = scmp.ne.s32.totalorder %s348, %s362
      %p364 = scmp.eq.s32.totalorder %s36, 0
      %p365 = por %p363, %p364
      %s367 = sadd.s32 %s366, 1
      %p370 = scmp.eq.s32.totalorder %s30, 1
      %p371 = scmp.ne.s32.totalorder %s366, %s368
      %p372 = scmp.eq.s32.totalorder %s30, 0
      %p373 = por %p371, %p372
      %p374 = scmp.ne.s32.totalorder %s366, %s368
      %p375 = scmp.eq.s32.totalorder %s35, 1
      %p376 = por %p374, %p375
      %p377 = scmp.ne.s32.totalorder %s368, %s369
      %p378 = scmp.eq.s32.totalorder %s35, 0
      %p379 = por %p377, %p378
      %p380 = scmp.ne.s32.totalorder %s368, %s369
      %p381 = scmp.eq.s32.totalorder %s36, 1
      %p382 = por %p380, %p381
      %p384 = scmp.ne.s32.totalorder %s369, %s383
      %p385 = scmp.eq.s32.totalorder %s36, 0
      %p386 = por %p384, %p385
      %s388 = sadd.s32 %s387, 1
      %p391 = scmp.eq.s32.totalorder %s30, 1
      %p392 = scmp.ne.s32.totalorder %s387, %s389
      %p393 = scmp.eq.s32.totalorder %s30, 0
      %p394 = por %p392, %p393
      %p395 = scmp.ne.s32.totalorder %s387, %s389
      %p396 = scmp.eq.s32.totalorder %s35, 1
      %p397 = por %p395, %p396
      %p398 = scmp.ne.s32.totalorder %s389, %s390
      %p399 = scmp.eq.s32.totalorder %s35, 0
      %p400 = por %p398, %p399
      %p401 = scmp.ne.s32.totalorder %s389, %s390
      %p402 = scmp.eq.s32.totalorder %s36, 1
      %p403 = por %p401, %p402
      %p405 = scmp.ne.s32.totalorder %s390, %s404
      %p406 = scmp.eq.s32.totalorder %s36, 0
      %p407 = por %p405, %p406
      %s408 = ssub.s32 %s37, %s49
      %s409 = ssub.s32 %s38, %s45
      %s410 = sor.u32 %s408, %s409
      %p411 = scmp.eq.s32.totalorder %s410, 0
      %s413 = sadd.s32 %s412, 1
      %s414 = scalar_select %p411, %s412, %s413
      %p417 = pneg %p411
      %p418 = scmp.eq.s32.totalorder %s30, 1
      %p419 = por %p417, %p418
      %p420 = scmp.ne.s32.totalorder %s412, %s415
      %p421 = scmp.eq.s32.totalorder %s30, 0
      %p422 = por %p420, %p421
      %p423 = scmp.ne.s32.totalorder %s412, %s415
      %p424 = scmp.eq.s32.totalorder %s35, 1
      %p425 = por %p423, %p424
      %p426 = scmp.ne.s32.totalorder %s415, %s416
      %p427 = scmp.eq.s32.totalorder %s35, 0
      %p428 = por %p426, %p427
      %p429 = scmp.ne.s32.totalorder %s415, %s416
      %p430 = scmp.eq.s32.totalorder %s36, 1
      %p431 = por %p429, %p430
      %p433 = scmp.ne.s32.totalorder %s416, %s432
      %p434 = scmp.eq.s32.totalorder %s36, 0
      %p435 = por %p433, %p434
      %s436 = ssub.s32 %s37, %s49
      %s437 = ssub.s32 %s38, %s45
      %s438 = sor.u32 %s436, %s437
      %p439 = scmp.eq.s32.totalorder %s438, 0
      %s441 = sadd.s32 %s440, 1
      %s442 = scalar_select %p439, %s440, %s441
      %p445 = pneg %p439
      %p446 = scmp.eq.s32.totalorder %s30, 1
      %p447 = por %p445, %p446
      %p448 = scmp.ne.s32.totalorder %s440, %s443
      %p449 = scmp.eq.s32.totalorder %s30, 0
      %p450 = por %p448, %p449
      %p451 = scmp.ne.s32.totalorder %s440, %s443
      %p452 = scmp.eq.s32.totalorder %s35, 1
      %p453 = por %p451, %p452
      %p454 = scmp.ne.s32.totalorder %s443, %s444
      %p455 = scmp.eq.s32.totalorder %s35, 0
      %p456 = por %p454, %p455
      %p457 = scmp.ne.s32.totalorder %s443, %s444
      %p458 = scmp.eq.s32.totalorder %s36, 1
      %p459 = por %p457, %p458
      %p461 = scmp.ne.s32.totalorder %s444, %s460
      %p462 = scmp.eq.s32.totalorder %s36, 0
      %p463 = por %p461, %p462
      %p464 = scmp.le.s32.totalorder 1, %s30
      %p465 = scmp.lt.s32.totalorder %s30, 3
      %p466 = pnand %p464, %p465
      %p467 = pneg %p466
      // Predicated region
      $region9: #{tpu_custom_call.1} parent=5 // pred_check
        _
      $region10: #{tpu_custom_call.1} parent=5 // pred_check_branch
        %469 = sbr.rel (%p466) target = $region12
      $region11: #{tpu_custom_call.1} parent=5 // pred_region
        %s470 = ssub.s32 %s30, 1
        // Predicated region
        $region13: #{tpu_custom_call.1} parent=11 // pred_check
          %p471 = pneg %p169
        $region14: #{tpu_custom_call.1} parent=11 // pred_check_branch
          %473 = sbr.rel (%p471) target = $region16
        $region15: #{tpu_custom_call.1} parent=11 // pred_region
          _
        $region16: #{tpu_custom_call.1} parent=11 // pred_fallthru
          _
        // Predicated region
        $region17: #{tpu_custom_call.1} parent=11 // pred_check
          %p474 = pneg %p190
        $region18: #{tpu_custom_call.1} parent=11 // pred_check_branch
          %476 = sbr.rel (%p474) target = $region20
        $region19: #{tpu_custom_call.1} parent=11 // pred_region
          _
        $region20: #{tpu_custom_call.1} parent=11 // pred_fallthru
          _
        // Predicated region
        $region21: #{tpu_custom_call.1} parent=11 // pred_check
          %p477 = pneg %p211
        $region22: #{tpu_custom_call.1} parent=11 // pred_check_branch
          %479 = sbr.rel (%p477) target = $region24
        $region23: #{tpu_custom_call.1} parent=11 // pred_region
          _
        $region24: #{tpu_custom_call.1} parent=11 // pred_fallthru
          _
        // Predicated region
        $region25: #{tpu_custom_call.1} parent=11 // pred_check
          %p480 = pneg %p232
        $region26: #{tpu_custom_call.1} parent=11 // pred_check_branch
          %482 = sbr.rel (%p480) target = $region28
        $region27: #{tpu_custom_call.1} parent=11 // pred_region
          _
        $region28: #{tpu_custom_call.1} parent=11 // pred_fallthru
          _
        // Predicated region
        $region29: #{tpu_custom_call.1} parent=11 // pred_check
          %p483 = pneg %p253
        $region30: #{tpu_custom_call.1} parent=11 // pred_check_branch
          %485 = sbr.rel (%p483) target = $region32
        $region31: #{tpu_custom_call.1} parent=11 // pred_region
          _
        $region32: #{tpu_custom_call.1} parent=11 // pred_fallthru
          _
        // Predicated region
        $region33: #{tpu_custom_call.1} parent=11 // pred_check
          %p486 = pneg %p274
        $region34: #{tpu_custom_call.1} parent=11 // pred_check_branch
          %488 = sbr.rel (%p486) target = $region36
        $region35: #{tpu_custom_call.1} parent=11 // pred_region
          _
        $region36: #{tpu_custom_call.1} parent=11 // pred_fallthru
          _
        // Predicated region
        $region37: #{tpu_custom_call.1} parent=11 // pred_check
          %p489 = pneg %p295
        $region38: #{tpu_custom_call.1} parent=11 // pred_check_branch
          %491 = sbr.rel (%p489) target = $region40
        $region39: #{tpu_custom_call.1} parent=11 // pred_region
          _
        $region40: #{tpu_custom_call.1} parent=11 // pred_fallthru
          _
        // Predicated region
        $region41: #{tpu_custom_call.1} parent=11 // pred_check
          %p492 = pneg %p316
        $region42: #{tpu_custom_call.1} parent=11 // pred_check_branch
          %494 = sbr.rel (%p492) target = $region44
        $region43: #{tpu_custom_call.1} parent=11 // pred_region
          _
        $region44: #{tpu_custom_call.1} parent=11 // pred_fallthru
          _
        // Predicated region
        $region45: #{tpu_custom_call.1} parent=11 // pred_check
          %p495 = pneg %p337
        $region46: #{tpu_custom_call.1} parent=11 // pred_check_branch
          %497 = sbr.rel (%p495) target = $region48
        $region47: #{tpu_custom_call.1} parent=11 // pred_region
          _
        $region48: #{tpu_custom_call.1} parent=11 // pred_fallthru
          _
        // Predicated region
        $region49: #{tpu_custom_call.1} parent=11 // pred_check
          %p498 = pneg %p358
        $region50: #{tpu_custom_call.1} parent=11 // pred_check_branch
          %500 = sbr.rel (%p498) target = $region52
        $region51: #{tpu_custom_call.1} parent=11 // pred_region
          _
        $region52: #{tpu_custom_call.1} parent=11 // pred_fallthru
          _
        // Predicated region
        $region53: #{tpu_custom_call.1} parent=11 // pred_check
          %p501 = pneg %p379
        $region54: #{tpu_custom_call.1} parent=11 // pred_check_branch
          %503 = sbr.rel (%p501) target = $region56
        $region55: #{tpu_custom_call.1} parent=11 // pred_region
          _
        $region56: #{tpu_custom_call.1} parent=11 // pred_fallthru
          _
        // Predicated region
        $region57: #{tpu_custom_call.1} parent=11 // pred_check
          %p504 = pneg %p400
        $region58: #{tpu_custom_call.1} parent=11 // pred_check_branch
          %506 = sbr.rel (%p504) target = $region60
        $region59: #{tpu_custom_call.1} parent=11 // pred_region
          _
        $region60: #{tpu_custom_call.1} parent=11 // pred_fallthru
          _
      $region12: #{tpu_custom_call.1} parent=5 // pred_fallthru
        _
      %p507 = scmp.lt.s32.totalorder %s30, 2
      // Predicated region
      $region61: #{tpu_custom_call.1} parent=5 // pred_check
        %p508 = pneg %p507
      $region62: #{tpu_custom_call.1} parent=5 // pred_check_branch
        %510 = sbr.rel (%p508) target = $region64
      $region63: #{tpu_custom_call.1} parent=5 // pred_region
        // Predicated region
        $region65: #{tpu_custom_call.1} parent=63 // pred_check
          %p511 = pneg %p64
        $region66: #{tpu_custom_call.1} parent=63 // pred_check_branch
          %513 = sbr.rel (%p511) target = $region68
        $region67: #{tpu_custom_call.1} parent=63 // pred_region
          %p514 = scmp.lt.s32.totalorder %s37, 1
          %s515 = scalar_select %p514, %s37, 1
          %p516 = scmp.lt.s32.totalorder %s38, 0
          %s517 = scalar_select %p516, %s38, 0
          %s518 = sadd.s32 %s517, %s515
          %s519 = smul.addr %s518, 8
          %s520 = scalar_lea.vmem %s0, %s519
        $region68: #{tpu_custom_call.1} parent=63 // pred_fallthru
          _
        // Predicated region
        $region69: #{tpu_custom_call.1} parent=63 // pred_check
          %p521 = pneg %p90
        $region70: #{tpu_custom_call.1} parent=63 // pred_check_branch
          %523 = sbr.rel (%p521) target = $region72
        $region71: #{tpu_custom_call.1} parent=63 // pred_region
          %p524 = scmp.lt.s32.totalorder %s37, 1
          %s525 = scalar_select %p524, %s37, 1
          %s526 = smul.addr %s525, 4
          %s527 = scalar_lea.vmem %s1, %s526
        $region72: #{tpu_custom_call.1} parent=63 // pred_fallthru
          _
        // Predicated region
        $region73: #{tpu_custom_call.1} parent=63 // pred_check
          %p528 = pneg %p116
        $region74: #{tpu_custom_call.1} parent=63 // pred_check_branch
          %530 = sbr.rel (%p528) target = $region76
        $region75: #{tpu_custom_call.1} parent=63 // pred_region
          %p531 = scmp.lt.s32.totalorder %s37, 1
          %s532 = scalar_select %p531, %s37, 1
          %s533 = smul.addr %s532, 4
          %s534 = scalar_lea.vmem %s2, %s533
        $region76: #{tpu_custom_call.1} parent=63 // pred_fallthru
          _
        // Predicated region
        $region77: #{tpu_custom_call.1} parent=63 // pred_check
          %p535 = pneg %p142
        $region78: #{tpu_custom_call.1} parent=63 // pred_check_branch
          %537 = sbr.rel (%p535) target = $region80
        $region79: #{tpu_custom_call.1} parent=63 // pred_region
          %p538 = scmp.lt.s32.totalorder %s37, 1
          %s539 = scalar_select %p538, %s37, 1
          %s540 = scalar_lea.vmem %s3, %s539
        $region80: #{tpu_custom_call.1} parent=63 // pred_fallthru
          _
      $region64: #{tpu_custom_call.1} parent=5 // pred_fallthru
        _
      %p541 = scmp.le.s32.totalorder 1, %s30
      %p542 = scmp.lt.s32.totalorder %s30, 3
      %p543 = pnand %p541, %p542
      %p544 = pneg %p543
      // Predicated region
      $region81: #{tpu_custom_call.1} parent=5 // pred_check
        _
      $region82: #{tpu_custom_call.1} parent=5 // pred_check_branch
        %546 = sbr.rel (%p543) target = $region84
      $region83: #{tpu_custom_call.1} parent=5 // pred_region
        %s547 = ssub.s32 %s30, 1
        %p548 = scmp.lt.s32.totalorder %s39, 1
        %s549 = scalar_select %p548, %s39, 1
        %p550 = scmp.lt.s32.totalorder %s40, 0
        %s551 = scalar_select %p550, %s40, 0
        %s552 = sadd.s32 %s551, %s549
        %s553 = smul.addr %s552, 8
        %s554 = scalar_lea.vmem %s0, %s553
        %p555 = pneg %p70
        %p556 = pneg %p67
        %p557 = scmp.lt.s32.totalorder %s39, 1
        %s558 = scalar_select %p557, %s39, 1
        %s559 = smul.addr %s558, 4
        %s560 = scalar_lea.vmem %s1, %s559
        %p561 = pneg %p96
        %p562 = pneg %p93
        %p563 = scmp.lt.s32.totalorder %s39, 1
        %s564 = scalar_select %p563, %s39, 1
        %s565 = smul.addr %s564, 4
        %s566 = scalar_lea.vmem %s2, %s565
        %p567 = pneg %p122
        %p568 = pneg %p119
        %p569 = scmp.lt.s32.totalorder %s39, 1
        %s570 = scalar_select %p569, %s39, 1
        %s571 = scalar_lea.vmem %s3, %s570
        %p572 = pneg %p148
        %p573 = pneg %p145
        %p574 = pneg %p169
        %p575 = pneg %p166
        %p576 = pneg %p190
        %p577 = pneg %p187
        %p578 = pneg %p211
        %p579 = pneg %p208
        %p580 = pneg %p232
        %p581 = pneg %p229
        %p582 = pneg %p253
        %p583 = pneg %p250
        %p584 = pneg %p274
        %p585 = pneg %p271
        %p586 = pneg %p295
        %p587 = pneg %p292
        %p588 = pneg %p316
        %p589 = pneg %p313
        %p590 = pneg %p337
        %p591 = pneg %p334
        %p592 = pneg %p358
        %p593 = pneg %p355
        %p594 = pneg %p379
        %p595 = pneg %p376
        %p596 = pneg %p400
        %p597 = pneg %p397
        %p598 = pneg %p428
        %p599 = pneg %p425
        %s600 = sand.u32 %s415, 1
        %s601 = scalar_lea.sflag [#allocation3], %s600
        %s602 = sand.u32 %s415, 1
        %s603 = smul.addr %s602, 8
        %s604 = scalar_lea.vmem [#allocation2], %s603
        %p605 = pneg %p456
        %p606 = pneg %p453
        %s607 = sand.u32 %s443, 1
        %s608 = scalar_lea.sflag [#allocation5], %s607
        %s609 = sand.u32 %s443, 1
        %s610 = smul.addr %s609, 8
        %s611 = scalar_lea.vmem [#allocation4], %s610
        %p612 = scmp.lt.s32.totalorder %s39, 1
        %s613 = scalar_select %p612, %s39, 1
        %p614 = scmp.lt.s32.totalorder %s40, 0
        %s615 = scalar_select %p614, %s40, 0
        %s616 = sadd.s32 %s615, %s613
        %s617 = smul.addr %s616, 8
        %s618 = scalar_lea.vmem %s0, %s617
        %p619 = scmp.lt.s32.totalorder %s39, 1
        %s620 = scalar_select %p619, %s39, 1
        %s621 = smul.addr %s620, 4
        %s622 = scalar_lea.vmem %s1, %s621
        %p623 = scmp.lt.s32.totalorder %s39, 1
        %s624 = scalar_select %p623, %s39, 1
        %s625 = smul.addr %s624, 4
        %s626 = scalar_lea.vmem %s2, %s625
        %p627 = scmp.lt.s32.totalorder %s39, 1
        %s628 = scalar_select %p627, %s39, 1
        %s629 = scalar_lea.vmem %s3, %s628
        %v631 = vld [vmem:[%s618] sm:$0xff]
        %v632 = vpack.c.bf16 %v631, %v631
        %v633 = vld [vmem:[%s622] sm:$0xf]
        %v634 = vld [vmem:[%s626] sm:$0xf]
        %v635 = vld [vmem:[%s4] sm:$0xf]
        %v636 = vld [vmem:[%s4 + $0x4] sm:$0xf]
        %v637 = vld [vmem:[%s4 + $0x8] sm:$0xf]
        %v638 = vld [vmem:[%s4 + $0xc] sm:$0xf]
        %v639 = vld [vmem:[%s5] sm:$0x1]
        %v641 = vlaneseq
        %v642 = vshrl.u32 %v641, 7
        %v643 = vsub.s32 0, %v642
        %v644 = vrot.slane %v639, %v643
        %v650 = vunpack.c.l.b16 %v635
        %v651 = vunpack.c.l.b16 %v636
        %v652 = vunpack.c.l.b16 %v637
        %v653 = vunpack.c.l.b16 %v638
        %v654 = vpack.c.b16 %v651, %v650
        %v655 = vpack.c.b16 %v653, %v652
        %vm658 = vcmask 261120
        %v660 = vsel %vm658, %v632, 0
        %662 = vmatprep.subr.bf16.mxu0 0
        %663 = vmatpush1.bf16.msra.mxu0 %v654
        %664 = vmatprep.subr.bf16.mxu0 0
        %665 = vmatpush1.bf16.msra.mxu0 %v655
        %666 = vmatprep.subr.bf16.mxu0 0
        %667 = vmatpush1.bf16.msra.mxu0 0
        %668 = vmatprep.subr.bf16.mxu0 0
        %669 = vmatpush1.bf16.msra.mxu0 0
        %670 = vmatprep.subr.bf16.mxu0 0
        %671 = vmatpush1.bf16.msra.mxu0 0
        %672 = vmatprep.subr.bf16.mxu0 0
        %673 = vmatpush1.bf16.msra.mxu0 0
        %674 = vmatprep.subr.bf16.mxu0 0
        %675 = vmatpush1.bf16.msra.mxu0 0
        %676 = vmatprep.subr.bf16.mxu0 0
        %677 = vmatpush1.bf16.msra.mxu0 0
        %678 = vmatprep.subr.bf16.mxu0 0
        %679 = vmatpush1.bf16.msra.mxu0 0
        %680 = vmatprep.subr.bf16.mxu0 0
        %681 = vmatpush1.bf16.msra.mxu0 0
        %682 = vmatprep.subr.bf16.mxu0 0
        %683 = vmatpush1.bf16.msra.mxu0 0
        %684 = vmatprep.subr.bf16.mxu0 0
        %685 = vmatpush1.bf16.msra.mxu0 0
        %686 = vmatprep.subr.bf16.mxu0 0
        %687 = vmatpush1.bf16.msra.mxu0 0
        %688 = vmatprep.subr.bf16.mxu0 0
        %689 = vmatpush1.bf16.msra.mxu0 0
        %690 = vmatprep.subr.bf16.mxu0 0
        %691 = vmatpush1.bf16.msra.mxu0 0
        %692 = vmatprep.subr.bf16.mxu0 0
        %693 = vmatpush1.bf16.msra.mxu0 0
        %694 = vmatprep.mubr.bf16.mxu0 0
        %695 = vmatmul.mubr.bf16.gmra.mrb[0].mxu0 %v660
        %v696 = vpop.f32.mrb[0].mxu0
        %v697 = vadd.f32 %v644, %v696
        %v698 = vpop.f32.mrb[0].mxu0
        %v699 = vpop.f32.mrb[0].mxu0
        %v700 = vpop.f32.mrb[0].mxu0
        %701 = vdwg.mxu0
        %v702 = vmul.f32 %v697, 0.35355338
        %703 = vrot.lane.b32.xlu0 %v654, 96
        %v704 = vpop.permute.xlu0 %703
        %705 = vrot.lane.b32.xlu0 %v655, 96
        %v706 = vpop.permute.xlu0 %705
        %709 = vrot.lane.b32.xlu0 %v644, 96
        %v710 = vpop.permute.xlu0 %709
        %v713 = vsel %vm658, %v633, 0
        %715 = vmatprep.subr.bf16.mxu0 0
        %716 = vmatpush1.bf16.msra.mxu0 %v704
        %717 = vmatprep.subr.bf16.mxu0 0
        %718 = vmatpush1.bf16.msra.mxu0 %v706
        %719 = vmatprep.subr.bf16.mxu0 0
        %720 = vmatpush1.bf16.msra.mxu0 0
        %721 = vmatprep.subr.bf16.mxu0 0
        %722 = vmatpush1.bf16.msra.mxu0 0
        %723 = vmatprep.subr.bf16.mxu0 0
        %724 = vmatpush1.bf16.msra.mxu0 0
        %725 = vmatprep.subr.bf16.mxu0 0
        %726 = vmatpush1.bf16.msra.mxu0 0
        %727 = vmatprep.subr.bf16.mxu0 0
        %728 = vmatpush1.bf16.msra.mxu0 0
        %729 = vmatprep.subr.bf16.mxu0 0
        %730 = vmatpush1.bf16.msra.mxu0 0
        %731 = vmatprep.subr.bf16.mxu0 0
        %732 = vmatpush1.bf16.msra.mxu0 0
        %733 = vmatprep.subr.bf16.mxu0 0
        %734 = vmatpush1.bf16.msra.mxu0 0
        %735 = vmatprep.subr.bf16.mxu0 0
        %736 = vmatpush1.bf16.msra.mxu0 0
        %737 = vmatprep.subr.bf16.mxu0 0
        %738 = vmatpush1.bf16.msra.mxu0 0
        %739 = vmatprep.subr.bf16.mxu0 0
        %740 = vmatpush1.bf16.msra.mxu0 0
        %741 = vmatprep.subr.bf16.mxu0 0
        %742 = vmatpush1.bf16.msra.mxu0 0
        %743 = vmatprep.subr.bf16.mxu0 0
        %744 = vmatpush1.bf16.msra.mxu0 0
        %745 = vmatprep.subr.bf16.mxu0 0
        %746 = vmatpush1.bf16.msra.mxu0 0
        %747 = vmatprep.mubr.bf16.mxu0 0
        %748 = vmatmul.mubr.bf16.gmra.mrb[0].mxu0 %v713
        %v749 = vpop.f32.mrb[0].mxu0
        %v750 = vadd.f32 %v710, %v749
        %v751 = vpop.f32.mrb[0].mxu0
        %v752 = vpop.f32.mrb[0].mxu0
        %v753 = vpop.f32.mrb[0].mxu0
        %754 = vdwg.mxu0
        %755 = vrot.lane.b32.xlu0 %v654, 64
        %v756 = vpop.permute.xlu0 %755
        %757 = vrot.lane.b32.xlu0 %v655, 64
        %v758 = vpop.permute.xlu0 %757
        %761 = vrot.lane.b32.xlu0 %v644, 64
        %v762 = vpop.permute.xlu0 %761
        %v765 = vsel %vm658, %v634, 0
        %767 = vmatprep.subr.bf16.mxu0 0
        %768 = vmatpush1.bf16.msra.mxu0 %v756
        %769 = vmatprep.subr.bf16.mxu0 0
        %770 = vmatpush1.bf16.msra.mxu0 %v758
        %771 = vmatprep.subr.bf16.mxu0 0
        %772 = vmatpush1.bf16.msra.mxu0 0
        %773 = vmatprep.subr.bf16.mxu0 0
        %774 = vmatpush1.bf16.msra.mxu0 0
        %775 = vmatprep.subr.bf16.mxu0 0
        %776 = vmatpush1.bf16.msra.mxu0 0
        %777 = vmatprep.subr.bf16.mxu0 0
        %778 = vmatpush1.bf16.msra.mxu0 0
        %779 = vmatprep.subr.bf16.mxu0 0
        %780 = vmatpush1.bf16.msra.mxu0 0
        %781 = vmatprep.subr.bf16.mxu0 0
        %782 = vmatpush1.bf16.msra.mxu0 0
        %783 = vmatprep.subr.bf16.mxu0 0
        %784 = vmatpush1.bf16.msra.mxu0 0
        %785 = vmatprep.subr.bf16.mxu0 0
        %786 = vmatpush1.bf16.msra.mxu0 0
        %787 = vmatprep.subr.bf16.mxu0 0
        %788 = vmatpush1.bf16.msra.mxu0 0
        %789 = vmatprep.subr.bf16.mxu0 0
        %790 = vmatpush1.bf16.msra.mxu0 0
        %791 = vmatprep.subr.bf16.mxu0 0
        %792 = vmatpush1.bf16.msra.mxu0 0
        %793 = vmatprep.subr.bf16.mxu0 0
        %794 = vmatpush1.bf16.msra.mxu0 0
        %795 = vmatprep.subr.bf16.mxu0 0
        %796 = vmatpush1.bf16.msra.mxu0 0
        %797 = vmatprep.subr.bf16.mxu0 0
        %798 = vmatpush1.bf16.msra.mxu0 0
        %799 = vmatprep.mubr.bf16.mxu0 0
        %800 = vmatmul.mubr.bf16.gmra.mrb[0].mxu0 %v765
        %v801 = vpop.f32.mrb[0].mxu0
        %v802 = vadd.f32 %v762, %v801
        %v803 = vpop.f32.mrb[0].mxu0
        %v804 = vpop.f32.mrb[0].mxu0
        %v805 = vpop.f32.mrb[0].mxu0
        %806 = vdwg.mxu0
        %v807 = vpack.c.bf16 %v702, %v702
        %v808 = vpack.c.bf16 %v750, %v750
        %v809 = vpack.c.bf16 %v802, %v802
        %v810 = vld [vmem:[%s629] sm:$0x1]
        %vm811 = vcmp.gt.f32.partialorder %v810, 0.5
        %v812 = vsel %vm811, -1e+30, 0.0
        %v814 = vlaneseq
        %v815 = vshrl.u32 %v814, 7
        %v816 = vsub.s32 0, %v815
        %v817 = vrot.slane %v812, %v816
        %vm819 = vcmask 64512
        %v821 = vsel %vm819, %v807, 0
        %v824 = vsel %vm819, %v808, 0
        %826 = vmatprep.subr.bf16.mxu0 0
        %827 = vmatpush1.bf16.xpose.msra.mxu0 %v824
        %828 = vmatprep.subr.bf16.mxu0 0
        %829 = vmatpush1.bf16.xpose.msra.mxu0 0
        %830 = vmatprep.subr.bf16.mxu0 0
        %831 = vmatpush1.bf16.xpose.msra.mxu0 0
        %832 = vmatprep.subr.bf16.mxu0 0
        %833 = vmatpush1.bf16.xpose.msra.mxu0 0
        %834 = vmatprep.subr.bf16.mxu0 0
        %835 = vmatpush1.bf16.xpose.msra.mxu0 0
        %836 = vmatprep.subr.bf16.mxu0 0
        %837 = vmatpush1.bf16.xpose.msra.mxu0 0
        %838 = vmatprep.subr.bf16.mxu0 0
        %839 = vmatpush1.bf16.xpose.msra.mxu0 0
        %840 = vmatprep.subr.bf16.mxu0 0
        %841 = vmatpush1.bf16.xpose.msra.mxu0 0
        %842 = vmatprep.subr.bf16.mxu0 0
        %843 = vmatpush1.bf16.xpose.msra.mxu0 0
        %844 = vmatprep.subr.bf16.mxu0 0
        %845 = vmatpush1.bf16.xpose.msra.mxu0 0
        %846 = vmatprep.subr.bf16.mxu0 0
        %847 = vmatpush1.bf16.xpose.msra.mxu0 0
        %848 = vmatprep.subr.bf16.mxu0 0
        %849 = vmatpush1.bf16.xpose.msra.mxu0 0
        %850 = vmatprep.subr.bf16.mxu0 0
        %851 = vmatpush1.bf16.xpose.msra.mxu0 0
        %852 = vmatprep.subr.bf16.mxu0 0
        %853 = vmatpush1.bf16.xpose.msra.mxu0 0
        %854 = vmatprep.subr.bf16.mxu0 0
        %855 = vmatpush1.bf16.xpose.msra.mxu0 0
        %856 = vmatprep.subr.bf16.mxu0 0
        %857 = vmatpush1.bf16.xpose.msra.mxu0 0
        %858 = vmatprep.mubr.bf16.mxu0 0
        %859 = vmatmul.mubr.bf16.gmra.mrb[0].mxu0 %v821
        %v860 = vpop.f32.mrb[0].mxu0
        %v861 = vadd.f32 %v817, %v860
        %v862 = vpop.f32.mrb[0].mxu0
        %v863 = vpop.f32.mrb[0].mxu0
        %v864 = vpop.f32.mrb[0].mxu0
        %865 = vdwg.mxu0
        %v866 = vsel %vm819, %v861, -inf
        %867 = vmax.xlane.f32.xlu0 %v866
        %v868 = vpop.xlane.xlu0 %867
        %v869 = vsub.f32 %v861, %v868
        %v870 = vmul.f32 %v869, 1.442695
        %v871 = vpow.pop %v870
        %v872 = vsel %vm819, %v871, 0.0
        %873 = vadd.xlane.f32.xlu0 %v872
        %v874 = vpop.xlane.xlu0 %873
        %v875 = vrcp.pop %v874
        %v876 = vmul.f32 %v871, %v875
        %v877 = vadd.f32 %v876, 0.0
        %v878 = vpack.c.bf16 %v876, %v876
        %v880 = vsel %vm819, %v878, 0
        %vm882 = vcmask 1043456
        %v884 = vsel %vm882, %v809, 0
        %886 = vmatprep.subr.bf16.mxu0 0
        %887 = vmatpush1.bf16.msra.mxu0 %v884
        %888 = vmatprep.subr.bf16.mxu0 0
        %889 = vmatpush1.bf16.msra.mxu0 0
        %890 = vmatprep.subr.bf16.mxu0 0
        %891 = vmatpush1.bf16.msra.mxu0 0
        %892 = vmatprep.subr.bf16.mxu0 0
        %893 = vmatpush1.bf16.msra.mxu0 0
        %894 = vmatprep.subr.bf16.mxu0 0
        %895 = vmatpush1.bf16.msra.mxu0 0
        %896 = vmatprep.subr.bf16.mxu0 0
        %897 = vmatpush1.bf16.msra.mxu0 0
        %898 = vmatprep.subr.bf16.mxu0 0
        %899 = vmatpush1.bf16.msra.mxu0 0
        %900 = vmatprep.subr.bf16.mxu0 0
        %901 = vmatpush1.bf16.msra.mxu0 0
        %902 = vmatprep.subr.bf16.mxu0 0
        %903 = vmatpush1.bf16.msra.mxu0 0
        %904 = vmatprep.subr.bf16.mxu0 0
        %905 = vmatpush1.bf16.msra.mxu0 0
        %906 = vmatprep.subr.bf16.mxu0 0
        %907 = vmatpush1.bf16.msra.mxu0 0
        %908 = vmatprep.subr.bf16.mxu0 0
        %909 = vmatpush1.bf16.msra.mxu0 0
        %910 = vmatprep.subr.bf16.mxu0 0
        %911 = vmatpush1.bf16.msra.mxu0 0
        %912 = vmatprep.subr.bf16.mxu0 0
        %913 = vmatpush1.bf16.msra.mxu0 0
        %914 = vmatprep.subr.bf16.mxu0 0
        %915 = vmatpush1.bf16.msra.mxu0 0
        %916 = vmatprep.subr.bf16.mxu0 0
        %917 = vmatpush1.bf16.msra.mxu0 0
        %918 = vmatprep.mubr.bf16.mxu0 0
        %919 = vmatmul.mubr.bf16.gmra.mrb[0].mxu0 %v880
        %v920 = vpop.f32.mrb[0].mxu0
        %v921 = vadd.f32 0.0, %v920
        %v922 = vpop.f32.mrb[0].mxu0
        %v923 = vpop.f32.mrb[0].mxu0
        %v924 = vpop.f32.mrb[0].mxu0
        %925 = vdwg.mxu0
        %927 = vrot.lane.b32.xlu0 %v807, 120
        %v928 = vpop.permute.xlu0 %927
        %930 = vrot.lane.b32.xlu0 %v808, 120
        %v931 = vpop.permute.xlu0 %930
        %v933 = vsel %vm819, %v928, 0
        %v936 = vsel %vm819, %v931, 0
        %938 = vmatprep.subr.bf16.mxu0 0
        %939 = vmatpush1.bf16.xpose.msra.mxu0 %v936
        %940 = vmatprep.subr.bf16.mxu0 0
        %941 = vmatpush1.bf16.xpose.msra.mxu0 0
        %942 = vmatprep.subr.bf16.mxu0 0
        %943 = vmatpush1.bf16.xpose.msra.mxu0 0
        %944 = vmatprep.subr.bf16.mxu0 0
        %945 = vmatpush1.bf16.xpose.msra.mxu0 0
        %946 = vmatprep.subr.bf16.mxu0 0
        %947 = vmatpush1.bf16.xpose.msra.mxu0 0
        %948 = vmatprep.subr.bf16.mxu0 0
        %949 = vmatpush1.bf16.xpose.msra.mxu0 0
        %950 = vmatprep.subr.bf16.mxu0 0
        %951 = vmatpush1.bf16.xpose.msra.mxu0 0
        %952 = vmatprep.subr.bf16.mxu0 0
        %953 = vmatpush1.bf16.xpose.msra.mxu0 0
        %954 = vmatprep.subr.bf16.mxu0 0
        %955 = vmatpush1.bf16.xpose.msra.mxu0 0
        %956 = vmatprep.subr.bf16.mxu0 0
        %957 = vmatpush1.bf16.xpose.msra.mxu0 0
        %958 = vmatprep.subr.bf16.mxu0 0
        %959 = vmatpush1.bf16.xpose.msra.mxu0 0
        %960 = vmatprep.subr.bf16.mxu0 0
        %961 = vmatpush1.bf16.xpose.msra.mxu0 0
        %962 = vmatprep.subr.bf16.mxu0 0
        %963 = vmatpush1.bf16.xpose.msra.mxu0 0
        %964 = vmatprep.subr.bf16.mxu0 0
        %965 = vmatpush1.bf16.xpose.msra.mxu0 0
        %966 = vmatprep.subr.bf16.mxu0 0
        %967 = vmatpush1.bf16.xpose.msra.mxu0 0
        %968 = vmatprep.subr.bf16.mxu0 0
        %969 = vmatpush1.bf16.xpose.msra.mxu0 0
        %970 = vmatprep.mubr.bf16.mxu0 0
        %971 = vmatmul.mubr.bf16.gmra.mrb[0].mxu0 %v933
        %v972 = vpop.f32.mrb[0].mxu0
        %v973 = vadd.f32 %v817, %v972
        %v974 = vpop.f32.mrb[0].mxu0
        %v975 = vpop.f32.mrb[0].mxu0
        %v976 = vpop.f32.mrb[0].mxu0
        %977 = vdwg.mxu0
        %v978 = vsel %vm819, %v973, -inf
        %979 = vmax.xlane.f32.xlu0 %v978
        %v980 = vpop.xlane.xlu0 %979
        %v981 = vsub.f32 %v973, %v980
        %v982 = vmul.f32 %v981, 1.442695
        %v983 = vpow.pop %v982
        %v984 = vsel %vm819, %v983, 0.0
        %985 = vadd.xlane.f32.xlu0 %v984
        %v986 = vpop.xlane.xlu0 %985
        %v987 = vrcp.pop %v986
        %v988 = vmul.f32 %v983, %v987
        %v989 = vadd.f32 %v877, %v988
        %v990 = vpack.c.bf16 %v988, %v988
        %992 = vrot.lane.b32.xlu0 %v809, 120
        %v993 = vpop.permute.xlu0 %992
        %v995 = vsel %vm819, %v990, 0
        %v998 = vsel %vm882, %v993, 0
        %1000 = vmatprep.subr.bf16.mxu0 0
        %1001 = vmatpush1.bf16.msra.mxu0 %v998
        %1002 = vmatprep.subr.bf16.mxu0 0
        %1003 = vmatpush1.bf16.msra.mxu0 0
        %1004 = vmatprep.subr.bf16.mxu0 0
        %1005 = vmatpush1.bf16.msra.mxu0 0
        %1006 = vmatprep.subr.bf16.mxu0 0
        %1007 = vmatpush1.bf16.msra.mxu0 0
        %1008 = vmatprep.subr.bf16.mxu0 0
        %1009 = vmatpush1.bf16.msra.mxu0 0
        %1010 = vmatprep.subr.bf16.mxu0 0
        %1011 = vmatpush1.bf16.msra.mxu0 0
        %1012 = vmatprep.subr.bf16.mxu0 0
        %1013 = vmatpush1.bf16.msra.mxu0 0
        %1014 = vmatprep.subr.bf16.mxu0 0
        %1015 = vmatpush1.bf16.msra.mxu0 0
        %1016 = vmatprep.subr.bf16.mxu0 0
        %1017 = vmatpush1.bf16.msra.mxu0 0
        %1018 = vmatprep.subr.bf16.mxu0 0
        %1019 = vmatpush1.bf16.msra.mxu0 0
        %1020 = vmatprep.subr.bf16.mxu0 0
        %1021 = vmatpush1.bf16.msra.mxu0 0
        %1022 = vmatprep.subr.bf16.mxu0 0
        %1023 = vmatpush1.bf16.msra.mxu0 0
        %1024 = vmatprep.subr.bf16.mxu0 0
        %1025 = vmatpush1.bf16.msra.mxu0 0
        %1026 = vmatprep.subr.bf16.mxu0 0
        %1027 = vmatpush1.bf16.msra.mxu0 0
        %1028 = vmatprep.subr.bf16.mxu0 0
        %1029 = vmatpush1.bf16.msra.mxu0 0
        %1030 = vmatprep.subr.bf16.mxu0 0
        %1031 = vmatpush1.bf16.msra.mxu0 0
        %1032 = vmatprep.mubr.bf16.mxu0 0
        %1033 = vmatmul.mubr.bf16.gmra.mrb[0].mxu0 %v995
        %v1034 = vpop.f32.mrb[0].mxu0
        %v1035 = vadd.f32 0.0, %v1034
        %v1036 = vpop.f32.mrb[0].mxu0
        %v1037 = vpop.f32.mrb[0].mxu0
        %v1038 = vpop.f32.mrb[0].mxu0
        %1039 = vdwg.mxu0
        %1040 = vrot.lane.b32.xlu0 %v807, 112
        %v1041 = vpop.permute.xlu0 %1040
        %1042 = vrot.lane.b32.xlu0 %v808, 112
        %v1043 = vpop.permute.xlu0 %1042
        %v1045 = vsel %vm819, %v1041, 0
        %v1048 = vsel %vm819, %v1043, 0
        %1050 = vmatprep.subr.bf16.mxu0 0
        %1051 = vmatpush1.bf16.xpose.msra.mxu0 %v1048
        %1052 = vmatprep.subr.bf16.mxu0 0
        %1053 = vmatpush1.bf16.xpose.msra.mxu0 0
        %1054 = vmatprep.subr.bf16.mxu0 0
        %1055 = vmatpush1.bf16.xpose.msra.mxu0 0
        %1056 = vmatprep.subr.bf16.mxu0 0
        %1057 = vmatpush1.bf16.xpose.msra.mxu0 0
        %1058 = vmatprep.subr.bf16.mxu0 0
        %1059 = vmatpush1.bf16.xpose.msra.mxu0 0
        %1060 = vmatprep.subr.bf16.mxu0 0
        %1061 = vmatpush1.bf16.xpose.msra.mxu0 0
        %1062 = vmatprep.subr.bf16.mxu0 0
        %1063 = vmatpush1.bf16.xpose.msra.mxu0 0
        %1064 = vmatprep.subr.bf16.mxu0 0
        %1065 = vmatpush1.bf16.xpose.msra.mxu0 0
        %1066 = vmatprep.subr.bf16.mxu0 0
        %1067 = vmatpush1.bf16.xpose.msra.mxu0 0
        %1068 = vmatprep.subr.bf16.mxu0 0
        %1069 = vmatpush1.bf16.xpose.msra.mxu0 0
        %1070 = vmatprep.subr.bf16.mxu0 0
        %1071 = vmatpush1.bf16.xpose.msra.mxu0 0
        %1072 = vmatprep.subr.bf16.mxu0 0
        %1073 = vmatpush1.bf16.xpose.msra.mxu0 0
        %1074 = vmatprep.subr.bf16.mxu0 0
        %1075 = vmatpush1.bf16.xpose.msra.mxu0 0
        %1076 = vmatprep.subr.bf16.mxu0 0
        %1077 = vmatpush1.bf16.xpose.msra.mxu0 0
        %1078 = vmatprep.subr.bf16.mxu0 0
        %1079 = vmatpush1.bf16.xpose.msra.mxu0 0
        %1080 = vmatprep.subr.bf16.mxu0 0
        %1081 = vmatpush1.bf16.xpose.msra.mxu0 0
        %1082 = vmatprep.mubr.bf16.mxu0 0
        %1083 = vmatmul.mubr.bf16.gmra.mrb[0].mxu0 %v1045
        %v1084 = vpop.f32.mrb[0].mxu0
        %v1085 = vadd.f32 %v817, %v1084
        %v1086 = vpop.f32.mrb[0].mxu0
        %v1087 = vpop.f32.mrb[0].mxu0
        %v1088 = vpop.f32.mrb[0].mxu0
        %1089 = vdwg.mxu0
        %v1090 = vsel %vm819, %v1085, -inf
        %1091 = vmax.xlane.f32.xlu0 %v1090
        %v1092 = vpop.xlane.xlu0 %1091
        %v1093 = vsub.f32 %v1085, %v1092
        %v1094 = vmul.f32 %v1093, 1.442695
        %v1095 = vpow.pop %v1094
        %v1096 = vsel %vm819, %v1095, 0.0
        %1097 = vadd.xlane.f32.xlu0 %v1096
        %v1098 = vpop.xlane.xlu0 %1097
        %v1099 = vrcp.pop %v1098
        %v1100 = vmul.f32 %v1095, %v1099
        %v1101 = vadd.f32 %v989, %v1100
        %v1102 = vpack.c.bf16 %v1100, %v1100
        %1103 = vrot.lane.b32.xlu0 %v809, 112
        %v1104 = vpop.permute.xlu0 %1103
        %v1106 = vsel %vm819, %v1102, 0
        %v1109 = vsel %vm882, %v1104, 0
        %1111 = vmatprep.subr.bf16.mxu0 0
        %1112 = vmatpush1.bf16.msra.mxu0 %v1109
        %1113 = vmatprep.subr.bf16.mxu0 0
        %1114 = vmatpush1.bf16.msra.mxu0 0
        %1115 = vmatprep.subr.bf16.mxu0 0
        %1116 = vmatpush1.bf16.msra.mxu0 0
        %1117 = vmatprep.subr.bf16.mxu0 0
        %1118 = vmatpush1.bf16.msra.mxu0 0
        %1119 = vmatprep.subr.bf16.mxu0 0
        %1120 = vmatpush1.bf16.msra.mxu0 0
        %1121 = vmatprep.subr.bf16.mxu0 0
        %1122 = vmatpush1.bf16.msra.mxu0 0
        %1123 = vmatprep.subr.bf16.mxu0 0
        %1124 = vmatpush1.bf16.msra.mxu0 0
        %1125 = vmatprep.subr.bf16.mxu0 0
        %1126 = vmatpush1.bf16.msra.mxu0 0
        %1127 = vmatprep.subr.bf16.mxu0 0
        %1128 = vmatpush1.bf16.msra.mxu0 0
        %1129 = vmatprep.subr.bf16.mxu0 0
        %1130 = vmatpush1.bf16.msra.mxu0 0
        %1131 = vmatprep.subr.bf16.mxu0 0
        %1132 = vmatpush1.bf16.msra.mxu0 0
        %1133 = vmatprep.subr.bf16.mxu0 0
        %1134 = vmatpush1.bf16.msra.mxu0 0
        %1135 = vmatprep.subr.bf16.mxu0 0
        %1136 = vmatpush1.bf16.msra.mxu0 0
        %1137 = vmatprep.subr.bf16.mxu0 0
        %1138 = vmatpush1.bf16.msra.mxu0 0
        %1139 = vmatprep.subr.bf16.mxu0 0
        %1140 = vmatpush1.bf16.msra.mxu0 0
        %1141 = vmatprep.subr.bf16.mxu0 0
        %1142 = vmatpush1.bf16.msra.mxu0 0
        %1143 = vmatprep.mubr.bf16.mxu0 0
        %1144 = vmatmul.mubr.bf16.gmra.mrb[0].mxu0 %v1106
        %v1145 = vpop.f32.mrb[0].mxu0
        %v1146 = vadd.f32 0.0, %v1145
        %v1147 = vpop.f32.mrb[0].mxu0
        %v1148 = vpop.f32.mrb[0].mxu0
        %v1149 = vpop.f32.mrb[0].mxu0
        %1150 = vdwg.mxu0
        %1151 = vrot.lane.b32.xlu0 %v807, 104
        %v1152 = vpop.permute.xlu0 %1151
        %1153 = vrot.lane.b32.xlu0 %v808, 104
        %v1154 = vpop.permute.xlu0 %1153
        %v1156 = vsel %vm819, %v1152, 0
        %v1159 = vsel %vm819, %v1154, 0
        %1161 = vmatprep.subr.bf16.mxu0 0
        %1162 = vmatpush1.bf16.xpose.msra.mxu0 %v1159
        %1163 = vmatprep.subr.bf16.mxu0 0
        %1164 = vmatpush1.bf16.xpose.msra.mxu0 0
        %1165 = vmatprep.subr.bf16.mxu0 0
        %1166 = vmatpush1.bf16.xpose.msra.mxu0 0
        %1167 = vmatprep.subr.bf16.mxu0 0
        %1168 = vmatpush1.bf16.xpose.msra.mxu0 0
        %1169 = vmatprep.subr.bf16.mxu0 0
        %1170 = vmatpush1.bf16.xpose.msra.mxu0 0
        %1171 = vmatprep.subr.bf16.mxu0 0
        %1172 = vmatpush1.bf16.xpose.msra.mxu0 0
        %1173 = vmatprep.subr.bf16.mxu0 0
        %1174 = vmatpush1.bf16.xpose.msra.mxu0 0
        %1175 = vmatprep.subr.bf16.mxu0 0
        %1176 = vmatpush1.bf16.xpose.msra.mxu0 0
        %1177 = vmatprep.subr.bf16.mxu0 0
        %1178 = vmatpush1.bf16.xpose.msra.mxu0 0
        %1179 = vmatprep.subr.bf16.mxu0 0
        %1180 = vmatpush1.bf16.xpose.msra.mxu0 0
        %1181 = vmatprep.subr.bf16.mxu0 0
        %1182 = vmatpush1.bf16.xpose.msra.mxu0 0
        %1183 = vmatprep.subr.bf16.mxu0 0
        %1184 = vmatpush1.bf16.xpose.msra.mxu0 0
        %1185 = vmatprep.subr.bf16.mxu0 0
        %1186 = vmatpush1.bf16.xpose.msra.mxu0 0
        %1187 = vmatprep.subr.bf16.mxu0 0
        %1188 = vmatpush1.bf16.xpose.msra.mxu0 0
        %1189 = vmatprep.subr.bf16.mxu0 0
        %1190 = vmatpush1.bf16.xpose.msra.mxu0 0
        %1191 = vmatprep.subr.bf16.mxu0 0
        %1192 = vmatpush1.bf16.xpose.msra.mxu0 0
        %1193 = vmatprep.mubr.bf16.mxu0 0
        %1194 = vmatmul.mubr.bf16.gmra.mrb[0].mxu0 %v1156
        %v1195 = vpop.f32.mrb[0].mxu0
        %v1196 = vadd.f32 %v817, %v1195
        %v1197 = vpop.f32.mrb[0].mxu0
        %v1198 = vpop.f32.mrb[0].mxu0
        %v1199 = vpop.f32.mrb[0].mxu0
        %1200 = vdwg.mxu0
        %v1201 = vsel %vm819, %v1196, -inf
        %1202 = vmax.xlane.f32.xlu0 %v1201
        %v1203 = vpop.xlane.xlu0 %1202
        %v1204 = vsub.f32 %v1196, %v1203
        %v1205 = vmul.f32 %v1204, 1.442695
        %v1206 = vpow.pop %v1205
        %v1207 = vsel %vm819, %v1206, 0.0
        %1208 = vadd.xlane.f32.xlu0 %v1207
        %v1209 = vpop.xlane.xlu0 %1208
        %v1210 = vrcp.pop %v1209
        %v1211 = vmul.f32 %v1206, %v1210
        %v1212 = vadd.f32 %v1101, %v1211
        %v1213 = vpack.c.bf16 %v1211, %v1211
        %1214 = vrot.lane.b32.xlu0 %v809, 104
        %v1215 = vpop.permute.xlu0 %1214
        %v1217 = vsel %vm819, %v1213, 0
        %v1220 = vsel %vm882, %v1215, 0
        %1222 = vmatprep.subr.bf16.mxu0 0
        %1223 = vmatpush1.bf16.msra.mxu0 %v1220
        %1224 = vmatprep.subr.bf16.mxu0 0
        %1225 = vmatpush1.bf16.msra.mxu0 0
        %1226 = vmatprep.subr.bf16.mxu0 0
        %1227 = vmatpush1.bf16.msra.mxu0 0
        %1228 = vmatprep.subr.bf16.mxu0 0
        %1229 = vmatpush1.bf16.msra.mxu0 0
        %1230 = vmatprep.subr.bf16.mxu0 0
        %1231 = vmatpush1.bf16.msra.mxu0 0
        %1232 = vmatprep.subr.bf16.mxu0 0
        %1233 = vmatpush1.bf16.msra.mxu0 0
        %1234 = vmatprep.subr.bf16.mxu0 0
        %1235 = vmatpush1.bf16.msra.mxu0 0
        %1236 = vmatprep.subr.bf16.mxu0 0
        %1237 = vmatpush1.bf16.msra.mxu0 0
        %1238 = vmatprep.subr.bf16.mxu0 0
        %1239 = vmatpush1.bf16.msra.mxu0 0
        %1240 = vmatprep.subr.bf16.mxu0 0
        %1241 = vmatpush1.bf16.msra.mxu0 0
        %1242 = vmatprep.subr.bf16.mxu0 0
        %1243 = vmatpush1.bf16.msra.mxu0 0
        %1244 = vmatprep.subr.bf16.mxu0 0
        %1245 = vmatpush1.bf16.msra.mxu0 0
        %1246 = vmatprep.subr.bf16.mxu0 0
        %1247 = vmatpush1.bf16.msra.mxu0 0
        %1248 = vmatprep.subr.bf16.mxu0 0
        %1249 = vmatpush1.bf16.msra.mxu0 0
        %1250 = vmatprep.subr.bf16.mxu0 0
        %1251 = vmatpush1.bf16.msra.mxu0 0
        %1252 = vmatprep.subr.bf16.mxu0 0
        %1253 = vmatpush1.bf16.msra.mxu0 0
        %1254 = vmatprep.mubr.bf16.mxu0 0
        %1255 = vmatmul.mubr.bf16.gmra.mrb[0].mxu0 %v1217
        %v1256 = vpop.f32.mrb[0].mxu0
        %v1257 = vadd.f32 0.0, %v1256
        %v1258 = vpop.f32.mrb[0].mxu0
        %v1259 = vpop.f32.mrb[0].mxu0
        %v1260 = vpop.f32.mrb[0].mxu0
        %1261 = vdwg.mxu0
        %1263 = vrot.lane.b32.xlu0 %v1035, 8
        %v1264 = vpop.permute.xlu0 %1263
        %1267 = vrot.lane.b32.xlu0 %v1146, 16
        %v1268 = vpop.permute.xlu0 %1267
        %1271 = vrot.lane.b32.xlu0 %v1257, 24
        %v1272 = vpop.permute.xlu0 %1271
        %v1274 = vsel %vm819, %v921, %v1264
        %vm1275 = vcmask 130048
        %v1276 = vsel %vm1275, %v1274, %v1268
        %vm1277 = vcmask 195584
        %v1278 = vsel %vm1277, %v1276, %v1272
        %v1279 = vpack.c.bf16 %v1278, %v1278
        %v1280 = vld [vmem:[%s6] sm:$0xf]
        %v1281 = vld [vmem:[%s6 + $0x4] sm:$0xf]
        %v1282 = vld [vmem:[%s6 + $0x8] sm:$0xf]
        %v1283 = vld [vmem:[%s6 + $0xc] sm:$0xf]
        %v1284 = vld [vmem:[%s7] sm:$0x1]
        %v1286 = vlaneseq
        %v1287 = vshrl.u32 %v1286, 7
        %v1288 = vsub.s32 0, %v1287
        %v1289 = vrot.slane %v1284, %v1288
        %v1295 = vunpack.c.l.b16 %v1280
        %v1296 = vunpack.c.l.b16 %v1281
        %v1297 = vunpack.c.l.b16 %v1282
        %v1298 = vunpack.c.l.b16 %v1283
        %v1299 = vpack.c.b16 %v1296, %v1295
        %v1300 = vpack.c.b16 %v1298, %v1297
        %v1304 = vsel %vm658, %v1279, 0
        %1306 = vmatprep.subr.bf16.mxu0 0
        %1307 = vmatpush1.bf16.msra.mxu0 %v1299
        %1308 = vmatprep.subr.bf16.mxu0 0
        %1309 = vmatpush1.bf16.msra.mxu0 %v1300
        %1310 = vmatprep.subr.bf16.mxu0 0
        %1311 = vmatpush1.bf16.msra.mxu0 0
        %1312 = vmatprep.subr.bf16.mxu0 0
        %1313 = vmatpush1.bf16.msra.mxu0 0
        %1314 = vmatprep.subr.bf16.mxu0 0
        %1315 = vmatpush1.bf16.msra.mxu0 0
        %1316 = vmatprep.subr.bf16.mxu0 0
        %1317 = vmatpush1.bf16.msra.mxu0 0
        %1318 = vmatprep.subr.bf16.mxu0 0
        %1319 = vmatpush1.bf16.msra.mxu0 0
        %1320 = vmatprep.subr.bf16.mxu0 0
        %1321 = vmatpush1.bf16.msra.mxu0 0
        %1322 = vmatprep.subr.bf16.mxu0 0
        %1323 = vmatpush1.bf16.msra.mxu0 0
        %1324 = vmatprep.subr.bf16.mxu0 0
        %1325 = vmatpush1.bf16.msra.mxu0 0
        %1326 = vmatprep.subr.bf16.mxu0 0
        %1327 = vmatpush1.bf16.msra.mxu0 0
        %1328 = vmatprep.subr.bf16.mxu0 0
        %1329 = vmatpush1.bf16.msra.mxu0 0
        %1330 = vmatprep.subr.bf16.mxu0 0
        %1331 = vmatpush1.bf16.msra.mxu0 0
        %1332 = vmatprep.subr.bf16.mxu0 0
        %1333 = vmatpush1.bf16.msra.mxu0 0
        %1334 = vmatprep.subr.bf16.mxu0 0
        %1335 = vmatpush1.bf16.msra.mxu0 0
        %1336 = vmatprep.subr.bf16.mxu0 0
        %1337 = vmatpush1.bf16.msra.mxu0 0
        %1338 = vmatprep.mubr.bf16.mxu0 0
        %1339 = vmatmul.mubr.bf16.gmra.mrb[0].mxu0 %v1304
        %v1340 = vpop.f32.mrb[0].mxu0
        %v1341 = vadd.f32 %v1289, %v1340
        %v1342 = vpop.f32.mrb[0].mxu0
        %v1343 = vpop.f32.mrb[0].mxu0
        %v1344 = vpop.f32.mrb[0].mxu0
        %1345 = vdwg.mxu0
        %v1346 = vmul.f32 %v1212, 0.25
        %1347 = vst.msk [vmem:[%s611] sm:$0xff] %vm819, %v1346
        %v1348 = vld [vmem:[%s8] sm:$0x1]
        %v1349 = vld [vmem:[%s9] sm:$0x1]
        %v1350 = vsel %vm658, %v1341, 0.0
        %1351 = vadd.xlane.f32.xlu0 %v1350
        %v1352 = vpop.xlane.xlu0 %1351
        %v1353 = vrcp.pop 32.0
        %v1354 = vmul.f32 %v1352, %v1353
        %v1355 = vsub.f32 %v1341, %v1354
        %v1356 = vmul.f32 %v1355, %v1355
        %v1357 = vsel %vm658, %v1356, 0.0
        %1358 = vadd.xlane.f32.xlu0 %v1357
        %v1359 = vpop.xlane.xlu0 %1358
        %v1360 = vmul.f32 %v1359, %v1353
        %v1361 = vadd.f32 %v1360, 1e-05
        %v1362 = vrsqrt.pop %v1361
        %v1363 = vmul.f32 %v1355, %v1362
        %v1365 = vlaneseq
        %v1366 = vshrl.u32 %v1365, 7
        %v1367 = vsub.s32 0, %v1366
        %v1368 = vrot.slane %v1348, %v1367
        %v1370 = vmul.f32 %v1363, %v1368
        %v1372 = vlaneseq
        %v1373 = vshrl.u32 %v1372, 7
        %v1374 = vsub.s32 0, %v1373
        %v1375 = vrot.slane %v1349, %v1374
        %v1377 = vadd.f32 %v1370, %v1375
        %v1378 = vadd.f32 %v631, %v1377
        %v1379 = vld [vmem:[%s10] sm:$0x1]
        %v1380 = vld [vmem:[%s11] sm:$0x1]
        %v1381 = vsel %vm658, %v1378, 0.0
        %1382 = vadd.xlane.f32.xlu0 %v1381
        %v1383 = vpop.xlane.xlu0 %1382
        %v1384 = vmul.f32 %v1383, %v1353
        %v1385 = vsub.f32 %v1378, %v1384
        %v1386 = vmul.f32 %v1385, %v1385
        %v1387 = vsel %vm658, %v1386, 0.0
        %1388 = vadd.xlane.f32.xlu0 %v1387
        %v1389 = vpop.xlane.xlu0 %1388
        %v1390 = vmul.f32 %v1389, %v1353
        %v1391 = vadd.f32 %v1390, 1e-05
        %v1392 = vrsqrt.pop %v1391
        %v1393 = vmul.f32 %v1385, %v1392
        %v1395 = vlaneseq
        %v1396 = vshrl.u32 %v1395, 7
        %v1397 = vsub.s32 0, %v1396
        %v1398 = vrot.slane %v1379, %v1397
        %v1400 = vmul.f32 %v1393, %v1398
        %v1402 = vlaneseq
        %v1403 = vshrl.u32 %v1402, 7
        %v1404 = vsub.s32 0, %v1403
        %v1405 = vrot.slane %v1380, %v1404
        %v1407 = vadd.f32 %v1400, %v1405
        %v1408 = vpack.c.bf16 %v1407, %v1407
        %v1409 = vld [vmem:[%s12] sm:$0xf]
        %v1410 = vld [vmem:[%s12 + $0x4] sm:$0xf]
        %v1411 = vld [vmem:[%s12 + $0x8] sm:$0xf]
        %v1412 = vld [vmem:[%s12 + $0xc] sm:$0xf]
        %v1413 = vld [vmem:[%s13] sm:$0x1]
        %v1415 = vlaneseq
        %v1416 = vshrl.u32 %v1415, 7
        %v1417 = vsub.s32 0, %v1416
        %v1418 = vrot.slane %v1413, %v1417
        %v1424 = vunpack.c.l.b16 %v1409
        %v1425 = vunpack.c.l.b16 %v1410
        %v1426 = vunpack.c.l.b16 %v1411
        %v1427 = vunpack.c.l.b16 %v1412
        %v1428 = vpack.c.b16 %v1425, %v1424
        %v1429 = vpack.c.b16 %v1427, %v1426
        %v1433 = vsel %vm658, %v1408, 0
        %1435 = vmatprep.subr.bf16.mxu0 0
        %1436 = vmatpush1.bf16.msra.mxu0 %v1428
        %1437 = vmatprep.subr.bf16.mxu0 0
        %1438 = vmatpush1.bf16.msra.mxu0 %v1429
        %1439 = vmatprep.subr.bf16.mxu0 0
        %1440 = vmatpush1.bf16.msra.mxu0 0
        %1441 = vmatprep.subr.bf16.mxu0 0
        %1442 = vmatpush1.bf16.msra.mxu0 0
        %1443 = vmatprep.subr.bf16.mxu0 0
        %1444 = vmatpush1.bf16.msra.mxu0 0
        %1445 = vmatprep.subr.bf16.mxu0 0
        %1446 = vmatpush1.bf16.msra.mxu0 0
        %1447 = vmatprep.subr.bf16.mxu0 0
        %1448 = vmatpush1.bf16.msra.mxu0 0
        %1449 = vmatprep.subr.bf16.mxu0 0
        %1450 = vmatpush1.bf16.msra.mxu0 0
        %1451 = vmatprep.subr.bf16.mxu0 0
        %1452 = vmatpush1.bf16.msra.mxu0 0
        %1453 = vmatprep.subr.bf16.mxu0 0
        %1454 = vmatpush1.bf16.msra.mxu0 0
        %1455 = vmatprep.subr.bf16.mxu0 0
        %1456 = vmatpush1.bf16.msra.mxu0 0
        %1457 = vmatprep.subr.bf16.mxu0 0
        %1458 = vmatpush1.bf16.msra.mxu0 0
        %1459 = vmatprep.subr.bf16.mxu0 0
        %1460 = vmatpush1.bf16.msra.mxu0 0
        %1461 = vmatprep.subr.bf16.mxu0 0
        %1462 = vmatpush1.bf16.msra.mxu0 0
        %1463 = vmatprep.subr.bf16.mxu0 0
        %1464 = vmatpush1.bf16.msra.mxu0 0
        %1465 = vmatprep.subr.bf16.mxu0 0
        %1466 = vmatpush1.bf16.msra.mxu0 0
        %1467 = vmatprep.mubr.bf16.mxu0 0
        %1468 = vmatmul.mubr.bf16.gmra.mrb[0].mxu0 %v1433
        %v1469 = vpop.f32.mrb[0].mxu0
        %v1470 = vadd.f32 %v1418, %v1469
        %v1471 = vpop.f32.mrb[0].mxu0
        %v1472 = vpop.f32.mrb[0].mxu0
        %v1473 = vpop.f32.mrb[0].mxu0
        %1474 = vdwg.mxu0
        %v1475 = vmul.f32 %v1470, 1.702
        %v1476 = vxor.u32 %v1475, 2147483648
        %v1477 = vmul.f32 %v1476, 1.442695
        %v1478 = vpow.pop %v1477
        %v1479 = vadd.f32 %v1478, 1.0
        %v1480 = vrcp.pop %v1479
        %v1481 = vmul.f32 1.0, %v1480
        %v1482 = vmul.f32 %v1470, %v1481
        %v1483 = vpack.c.bf16 %v1482, %v1482
        %v1484 = vld [vmem:[%s14] sm:$0xf]
        %v1485 = vld [vmem:[%s14 + $0x4] sm:$0xf]
        %v1486 = vld [vmem:[%s14 + $0x8] sm:$0xf]
        %v1487 = vld [vmem:[%s14 + $0xc] sm:$0xf]
        %v1488 = vld [vmem:[%s14 + $0x10] sm:$0xf]
        %v1489 = vld [vmem:[%s14 + $0x14] sm:$0xf]
        %v1490 = vld [vmem:[%s14 + $0x18] sm:$0xf]
        %v1491 = vld [vmem:[%s14 + $0x1c] sm:$0xf]
        %v1492 = vld [vmem:[%s14 + $0x20] sm:$0xf]
        %v1493 = vld [vmem:[%s14 + $0x24] sm:$0xf]
        %v1494 = vld [vmem:[%s14 + $0x28] sm:$0xf]
        %v1495 = vld [vmem:[%s14 + $0x2c] sm:$0xf]
        %v1496 = vld [vmem:[%s14 + $0x30] sm:$0xf]
        %v1497 = vld [vmem:[%s14 + $0x34] sm:$0xf]
        %v1498 = vld [vmem:[%s14 + $0x38] sm:$0xf]
        %v1499 = vld [vmem:[%s14 + $0x3c] sm:$0xf]
        %v1500 = vld [vmem:[%s15] sm:$0x1]
        %v1502 = vlaneseq
        %v1503 = vshrl.u32 %v1502, 7
        %v1504 = vsub.s32 0, %v1503
        %v1505 = vrot.slane %v1500, %v1504
        %v1523 = vunpack.c.l.b16 %v1484
        %v1524 = vunpack.c.l.b16 %v1485
        %v1525 = vunpack.c.l.b16 %v1486
        %v1526 = vunpack.c.l.b16 %v1487
        %v1527 = vunpack.c.l.b16 %v1488
        %v1528 = vunpack.c.l.b16 %v1489
        %v1529 = vunpack.c.l.b16 %v1490
        %v1530 = vunpack.c.l.b16 %v1491
        %v1531 = vunpack.c.l.b16 %v1492
        %v1532 = vunpack.c.l.b16 %v1493
        %v1533 = vunpack.c.l.b16 %v1494
        %v1534 = vunpack.c.l.b16 %v1495
        %v1535 = vunpack.c.l.b16 %v1496
        %v1536 = vunpack.c.l.b16 %v1497
        %v1537 = vunpack.c.l.b16 %v1498
        %v1538 = vunpack.c.l.b16 %v1499
        %v1539 = vpack.c.b16 %v1524, %v1523
        %v1540 = vpack.c.b16 %v1526, %v1525
        %v1541 = vpack.c.b16 %v1528, %v1527
        %v1542 = vpack.c.b16 %v1530, %v1529
        %v1543 = vpack.c.b16 %v1532, %v1531
        %v1544 = vpack.c.b16 %v1534, %v1533
        %v1545 = vpack.c.b16 %v1536, %v1535
        %v1546 = vpack.c.b16 %v1538, %v1537
        %1555 = vmatprep.subr.bf16.mxu0 0
        %1556 = vmatpush1.bf16.msra.mxu0 %v1539
        %1557 = vmatprep.subr.bf16.mxu0 0
        %1558 = vmatpush1.bf16.msra.mxu0 %v1540
        %1559 = vmatprep.subr.bf16.mxu0 0
        %1560 = vmatpush1.bf16.msra.mxu0 %v1541
        %1561 = vmatprep.subr.bf16.mxu0 0
        %1562 = vmatpush1.bf16.msra.mxu0 %v1542
        %1563 = vmatprep.subr.bf16.mxu0 0
        %1564 = vmatpush1.bf16.msra.mxu0 %v1543
        %1565 = vmatprep.subr.bf16.mxu0 0
        %1566 = vmatpush1.bf16.msra.mxu0 %v1544
        %1567 = vmatprep.subr.bf16.mxu0 0
        %1568 = vmatpush1.bf16.msra.mxu0 %v1545
        %1569 = vmatprep.subr.bf16.mxu0 0
        %1570 = vmatpush1.bf16.msra.mxu0 %v1546
        %1571 = vmatprep.subr.bf16.mxu0 0
        %1572 = vmatpush1.bf16.msra.mxu0 0
        %1573 = vmatprep.subr.bf16.mxu0 0
        %1574 = vmatpush1.bf16.msra.mxu0 0
        %1575 = vmatprep.subr.bf16.mxu0 0
        %1576 = vmatpush1.bf16.msra.mxu0 0
        %1577 = vmatprep.subr.bf16.mxu0 0
        %1578 = vmatpush1.bf16.msra.mxu0 0
        %1579 = vmatprep.subr.bf16.mxu0 0
        %1580 = vmatpush1.bf16.msra.mxu0 0
        %1581 = vmatprep.subr.bf16.mxu0 0
        %1582 = vmatpush1.bf16.msra.mxu0 0
        %1583 = vmatprep.subr.bf16.mxu0 0
        %1584 = vmatpush1.bf16.msra.mxu0 0
        %1585 = vmatprep.subr.bf16.mxu0 0
        %1586 = vmatpush1.bf16.msra.mxu0 0
        %1587 = vmatprep.mubr.bf16.mxu0 0
        %1588 = vmatmul.mubr.bf16.gmra.mrb[0].mxu0 %v1483
        %v1589 = vpop.f32.mrb[0].mxu0
        %v1590 = vadd.f32 %v1505, %v1589
        %v1591 = vpop.f32.mrb[0].mxu0
        %v1592 = vpop.f32.mrb[0].mxu0
        %v1593 = vpop.f32.mrb[0].mxu0
        %1594 = vdwg.mxu0
        %v1595 = vadd.f32 %v1378, %v1590
        %1596 = vst.msk [vmem:[%s604] sm:$0xff] %vm658, %v1595
        %s1597 = sand.u32 %s415, 1
        %s1598 = scalar_lea.sflag [#allocation3], %s1597
        %s1599 = sand.u32 %s415, 1
        %s1600 = smul.addr %s1599, 8
        %s1601 = scalar_lea.vmem [#allocation2], %s1600
        %s1602 = sand.u32 %s443, 1
        %s1603 = scalar_lea.sflag [#allocation5], %s1602
        %s1604 = sand.u32 %s443, 1
        %s1605 = smul.addr %s1604, 8
        %s1606 = scalar_lea.vmem [#allocation4], %s1605
        // Predicated region
        $region85: #{tpu_custom_call.1} parent=83 // pred_check
          %p1607 = pneg %p425
        $region86: #{tpu_custom_call.1} parent=83 // pred_check_branch
          %1609 = sbr.rel (%p1607) target = $region88
        $region87: #{tpu_custom_call.1} parent=83 // pred_region
          %s1611 = ssub.s32 128, 128
          %1612 = vsyncadd %s1598, %s1611
          %s1613 = sadd.s32 %s40, %s39
          %s1614 = smul.addr %s1613, 128
          %s1615 = scalar_lea.hbm %s16, %s1614
          %s1617 = sshll.u32 %s1601, 4
          %s1618 = int_to_ptr.vmem [resolvable:$true] %s1617
          %1620 = dma.vmem_to_hbm [thread:$0]  %s1618, 128, %s1615, %s1598
        $region88: #{tpu_custom_call.1} parent=83 // pred_fallthru
          _
        // Predicated region
        $region89: #{tpu_custom_call.1} parent=83 // pred_check
          %p1621 = pneg %p453
        $region90: #{tpu_custom_call.1} parent=83 // pred_check_branch
          %1623 = sbr.rel (%p1621) target = $region92
        $region91: #{tpu_custom_call.1} parent=83 // pred_region
          %s1625 = ssub.s32 128, 128
          %1626 = vsyncadd %s1603, %s1625
          %s1627 = sadd.s32 %s40, %s39
          %s1628 = smul.addr %s1627, 128
          %s1629 = scalar_lea.hbm %s17, %s1628
          %s1631 = sshll.u32 %s1606, 4
          %s1632 = int_to_ptr.vmem [resolvable:$true] %s1631
          %1634 = dma.vmem_to_hbm [thread:$0]  %s1632, 128, %s1629, %s1603
        $region92: #{tpu_custom_call.1} parent=83 // pred_fallthru
          _
      $region84: #{tpu_custom_call.1} parent=5 // pred_fallthru
        _
      %p1635 = scmp.le.s32.totalorder 2, %s30
      // Predicated region
      $region93: #{tpu_custom_call.1} parent=5 // pred_check
        %p1636 = pneg %p1635
      $region94: #{tpu_custom_call.1} parent=5 // pred_check_branch
        %1638 = sbr.rel (%p1636) target = $region96
      $region95: #{tpu_custom_call.1} parent=5 // pred_region
        %s1639 = ssub.s32 %s30, 2
        // Predicated region
        $region97: #{tpu_custom_call.1} parent=95 // pred_check
          %p1640 = pneg %p431
        $region98: #{tpu_custom_call.1} parent=95 // pred_check_branch
          %1642 = sbr.rel (%p1640) target = $region100
        $region99: #{tpu_custom_call.1} parent=95 // pred_region
          %s1643 = sand.u32 %s416, 1
          %s1644 = scalar_lea.sflag [#allocation3], %s1643
          %s1645 = sand.u32 %s416, 1
          %s1646 = smul.addr %s1645, 8
          %s1647 = scalar_lea.vmem [#allocation2], %s1646
          %1648 = dma.done %s1644, 128
        $region100: #{tpu_custom_call.1} parent=95 // pred_fallthru
          _
        // Predicated region
        $region101: #{tpu_custom_call.1} parent=95 // pred_check
          %p1649 = pneg %p459
        $region102: #{tpu_custom_call.1} parent=95 // pred_check_branch
          %1651 = sbr.rel (%p1649) target = $region104
        $region103: #{tpu_custom_call.1} parent=95 // pred_region
          %s1652 = sand.u32 %s444, 1
          %s1653 = scalar_lea.sflag [#allocation5], %s1652
          %s1654 = sand.u32 %s444, 1
          %s1655 = smul.addr %s1654, 8
          %s1656 = scalar_lea.vmem [#allocation4], %s1655
          %1657 = dma.done %s1653, 128
        $region104: #{tpu_custom_call.1} parent=95 // pred_fallthru
          _
      $region96: #{tpu_custom_call.1} parent=5 // pred_fallthru
        _
    $region6: #{tpu_custom_call.1} parent=1 // loop_footer
      %s34 = sadd.s32 1, %s30
    $region7: #{tpu_custom_call.1} parent=1 // loop_footer_branch
      %29 = sbr.rel target = $region3
    $region8: #{tpu_custom_call.1} parent=1 // loop_exit
      _
    %1658 = vsyncpa [#allocation3], 1
    %s1659 = scalar_lea.sflag [#allocation3], 1
    %1660 = vsyncpa %s1659, 1
    %1661 = vsyncpa [#allocation5], 1
    %s1662 = scalar_lea.sflag [#allocation5], 1
    %1663 = vsyncpa %s1662, 1

// kernel: tpu_custom_call.1
$region0: #{tpu_custom_call.1}
  #allocation0 [shape = 'u32[]', space=smem, size = 0x4, offset = 0x4, fixed_abs, tag = 'smem constant byte address 0x4 - core index']
  #allocation1 [shape = 'u32[144,128]{1,0:T(1,128)}', space=vmem, size = 0x12000, scoped, tag = 'internal scratch']
  %s0 = inlined_call_operand.vmem [shape: f32[2,8,32], index: 0, kind: input, shape index: {}]
  %s1 = inlined_call_operand.vmem [shape: bf16[2,8,32], index: 1, kind: input, shape index: {}]
  %s2 = inlined_call_operand.vmem [shape: bf16[2,8,32], index: 2, kind: input, shape index: {}]
  %s3 = inlined_call_operand.vmem [shape: f32[2,1,8], index: 3, kind: input, shape index: {}]
  %s4 = inlined_call_operand.vmem [shape: bf16[32,96], index: 4, kind: input, shape index: {}]
  %s5 = inlined_call_operand.vmem [shape: f32[1,96], index: 5, kind: input, shape index: {}]
  %s6 = inlined_call_operand.vmem [shape: bf16[32,32], index: 6, kind: input, shape index: {}]
  %s7 = inlined_call_operand.vmem [shape: f32[1,32], index: 7, kind: input, shape index: {}]
  %s8 = inlined_call_operand.vmem [shape: f32[1,32], index: 8, kind: input, shape index: {}]
  %s9 = inlined_call_operand.vmem [shape: f32[1,32], index: 9, kind: input, shape index: {}]
  %s10 = inlined_call_operand.vmem [shape: f32[1,32], index: 10, kind: input, shape index: {}]
  %s11 = inlined_call_operand.vmem [shape: f32[1,32], index: 11, kind: input, shape index: {}]
  %s12 = inlined_call_operand.vmem [shape: bf16[32,128], index: 12, kind: input, shape index: {}]
  %s13 = inlined_call_operand.vmem [shape: f32[1,128], index: 13, kind: input, shape index: {}]
  %s14 = inlined_call_operand.vmem [shape: bf16[128,32], index: 14, kind: input, shape index: {}]
  %s15 = inlined_call_operand.vmem [shape: f32[1,32], index: 15, kind: input, shape index: {}]
  %s16 = inlined_call_operand.hbm [shape: f32[2,8,32], index: 16, kind: output, shape index: {0}]
  %s17 = inlined_call_operand.hbm [shape: f32[2,8,8], index: 17, kind: output, shape index: {1}]
  %18 = xla_tuple %s16, %s17
  %s19 = sld [smem:[#allocation0]]
  $region105: #{tpu_custom_call.1} parent=0
    _
  %s21 = ssub.s32 1, %s19
  %s22 = scalar_select 0, %s21, %s19
  $region1: #{tpu_custom_call.1} parent=0
    #allocation2 [shape = 'u8[8192]{0}', space=vmem, size = 0x2000, scoped, tag = 'output window, operand 0']
    #allocation3 [shape = 's32[2]{0}', space=sflag, size = 0x8, scoped, tag = 'scoped memory for tpu_custom_call.1']
    #allocation4 [shape = 'u8[8192]{0}', space=vmem, size = 0x2000, scoped, tag = 'output window, operand 1']
    #allocation5 [shape = 's32[2]{0}', space=sflag, size = 0x8, scoped, tag = 'scoped memory for tpu_custom_call.1']
    %23 = vsyncpa [#allocation3], 0
    %s24 = scalar_lea.sflag [#allocation3], 1
    %25 = vsyncpa %s24, 0
    %26 = vsyncpa [#allocation5], 0
    %s27 = scalar_lea.sflag [#allocation5], 1
    %28 = vsyncpa %s27, 0
    loop: start=0, step=1, limit=4
    $region2: #{tpu_custom_call.1} parent=1 // loop_pre_header
      _
    $region3: #{tpu_custom_call.1} parent=1 // loop_header
      %s30 = sphi 0, %s34
      %p31 = scmp.ge.s32.totalorder %s30, 4
      %s37 = sphi 0, %s49
      %s38 = sphi 0, %s45
      %s39 = sphi 0, %s37
      %s40 = sphi 0, %s38
      %s41 = sphi 0, %s39
      %s42 = sphi 0, %s40
      %s54 = sphi 0, %s56
      %s57 = sphi 0, %s54
      %s58 = sphi 0, %s57
      %s74 = sphi 0, %s58
      %s80 = sphi 0, %s82
      %s83 = sphi 0, %s80
      %s84 = sphi 0, %s83
      %s100 = sphi 0, %s84
      %s106 = sphi 0, %s108
      %s109 = sphi 0, %s106
      %s110 = sphi 0, %s109
      %s126 = sphi 0, %s110
      %s132 = sphi 0, %s134
      %s135 = sphi 0, %s132
      %s136 = sphi 0, %s135
      %s152 = sphi 0, %s136
      %s156 = sphi 0, %s156
      %s158 = sphi 0, %s156
      %s159 = sphi 0, %s158
      %s173 = sphi 0, %s159
      %s177 = sphi 0, %s177
      %s179 = sphi 0, %s177
      %s180 = sphi 0, %s179
      %s194 = sphi 0, %s180
      %s198 = sphi 0, %s198
      %s200 = sphi 0, %s198
      %s201 = sphi 0, %s200
      %s215 = sphi 0, %s201
      %s219 = sphi 0, %s219
      %s221 = sphi 0, %s219
      %s222 = sphi 0, %s221
      %s236 = sphi 0, %s222
      %s240 = sphi 0, %s240
      %s242 = sphi 0, %s240
      %s243 = sphi 0, %s242
      %s257 = sphi 0, %s243
      %s261 = sphi 0, %s261
      %s263 = sphi 0, %s261
      %s264 = sphi 0, %s263
      %s278 = sphi 0, %s264
      %s282 = sphi 0, %s282
      %s284 = sphi 0, %s282
      %s285 = sphi 0, %s284
      %s299 = sphi 0, %s285
      %s303 = sphi 0, %s303
      %s305 = sphi 0, %s303
      %s306 = sphi 0, %s305
      %s320 = sphi 0, %s306
      %s324 = sphi 0, %s324
      %s326 = sphi 0, %s324
      %s327 = sphi 0, %s326
      %s341 = sphi 0, %s327
      %s345 = sphi 0, %s345
      %s347 = sphi 0, %s345
      %s348 = sphi 0, %s347
      %s362 = sphi 0, %s348
      %s366 = sphi 0, %s366
      %s368 = sphi 0, %s366
      %s369 = sphi 0, %s368
      %s383 = sphi 0, %s369
      %s387 = sphi 0, %s387
      %s389 = sphi 0, %s387
      %s390 = sphi 0, %s389
      %s404 = sphi 0, %s390
      %s412 = sphi 0, %s414
      %s415 = sphi 0, %s412
      %s416 = sphi 0, %s415
      %s432 = sphi 0, %s416
      %s440 = sphi 0, %s442
      %s443 = sphi 0, %s440
      %s444 = sphi 0, %s443
      %s460 = sphi 0, %s444
    $region4: #{tpu_custom_call.1} parent=1 // loop_header_branch
      %33 = sbr.rel (%p31) target = $region8
    $region5: #{tpu_custom_call.1} parent=1 // loop_body
      %s35 = ssub.s32 %s30, 1
      %s36 = ssub.s32 %s30, 2
      %s43 = sadd.s32 1, %s38
      %p44 = scmp.ge.s32.totalorder %s43, 1
      %s45 = scalar_select %p44, 0, %s43
      %s46 = sadd.s32 1, %s37
      %s47 = scalar_select %p44, %s46, %s37
      %p48 = scmp.ge.s32.totalorder %s47, 2
      %s49 = scalar_select %p48, 0, %s47
      %s50 = ssub.s32 %s37, %s49
      %s51 = ssub.s32 %s38, %s45
      %s52 = sor.u32 %s50, %s51
      %p53 = scmp.eq.s32.totalorder %s52, 0
      %s55 = sadd.s32 %s54, 1
      %s56 = scalar_select %p53, %s54, %s55
      %p59 = pneg %p53
      %p60 = scmp.eq.s32.totalorder %s30, 1
      %p61 = por %p59, %p60
      %p62 = scmp.ne.s32.totalorder %s54, %s57
      %p63 = scmp.eq.s32.totalorder %s30, 0
      %p64 = por %p62, %p63
      %p65 = scmp.ne.s32.totalorder %s54, %s57
      %p66 = scmp.eq.s32.totalorder %s35, 1
      %p67 = por %p65, %p66
      %p68 = scmp.ne.s32.totalorder %s57, %s58
      %p69 = scmp.eq.s32.totalorder %s35, 0
      %p70 = por %p68, %p69
      %p71 = scmp.ne.s32.totalorder %s57, %s58
      %p72 = scmp.eq.s32.totalorder %s36, 1
      %p73 = por %p71, %p72
      %p75 = scmp.ne.s32.totalorder %s58, %s74
      %p76 = scmp.eq.s32.totalorder %s36, 0
      %p77 = por %p75, %p76
      %s78 = ssub.s32 %s37, %s49
      %p79 = scmp.eq.s32.totalorder %s78, 0
      %s81 = sadd.s32 %s80, 1
      %s82 = scalar_select %p79, %s80, %s81
      %p85 = pneg %p79
      %p86 = scmp.eq.s32.totalorder %s30, 1
      %p87 = por %p85, %p86
      %p88 = scmp.ne.s32.totalorder %s80, %s83
      %p89 = scmp.eq.s32.totalorder %s30, 0
      %p90 = por %p88, %p89
      %p91 = scmp.ne.s32.totalorder %s80, %s83
      %p92 = scmp.eq.s32.totalorder %s35, 1
      %p93 = por %p91, %p92
      %p94 = scmp.ne.s32.totalorder %s83, %s84
      %p95 = scmp.eq.s32.totalorder %s35, 0
      %p96 = por %p94, %p95
      %p97 = scmp.ne.s32.totalorder %s83, %s84
      %p98 = scmp.eq.s32.totalorder %s36, 1
      %p99 = por %p97, %p98
      %p101 = scmp.ne.s32.totalorder %s84, %s100
      %p102 = scmp.eq.s32.totalorder %s36, 0
      %p103 = por %p101, %p102
      %s104 = ssub.s32 %s37, %s49
      %p105 = scmp.eq.s32.totalorder %s104, 0
      %s107 = sadd.s32 %s106, 1
      %s108 = scalar_select %p105, %s106, %s107
      %p111 = pneg %p105
      %p112 = scmp.eq.s32.totalorder %s30, 1
      %p113 = por %p111, %p112
      %p114 = scmp.ne.s32.totalorder %s106, %s109
      %p115 = scmp.eq.s32.totalorder %s30, 0
      %p116 = por %p114, %p115
      %p117 = scmp.ne.s32.totalorder %s106, %s109
      %p118 = scmp.eq.s32.totalorder %s35, 1
      %p119 = por %p117, %p118
      %p120 = scmp.ne.s32.totalorder %s109, %s110
      %p121 = scmp.eq.s32.totalorder %s35, 0
      %p122 = por %p120, %p121
      %p123 = scmp.ne.s32.totalorder %s109, %s110
      %p124 = scmp.eq.s32.totalorder %s36, 1
      %p125 = por %p123, %p124
      %p127 = scmp.ne.s32.totalorder %s110, %s126
      %p128 = scmp.eq.s32.totalorder %s36, 0
      %p129 = por %p127, %p128
      %s130 = ssub.s32 %s37, %s49
      %p131 = scmp.eq.s32.totalorder %s130, 0
      %s133 = sadd.s32 %s132, 1
      %s134 = scalar_select %p131, %s132, %s133
      %p137 = pneg %p131
      %p138 = scmp.eq.s32.totalorder %s30, 1
      %p139 = por %p137, %p138
      %p140 = scmp.ne.s32.totalorder %s132, %s135
      %p141 = scmp.eq.s32.totalorder %s30, 0
      %p142 = por %p140, %p141
      %p143 = scmp.ne.s32.totalorder %s132, %s135
      %p144 = scmp.eq.s32.totalorder %s35, 1
      %p145 = por %p143, %p144
      %p146 = scmp.ne.s32.totalorder %s135, %s136
      %p147 = scmp.eq.s32.totalorder %s35, 0
      %p148 = por %p146, %p147
      %p149 = scmp.ne.s32.totalorder %s135, %s136
      %p150 = scmp.eq.s32.totalorder %s36, 1
      %p151 = por %p149, %p150
      %p153 = scmp.ne.s32.totalorder %s136, %s152
      %p154 = scmp.eq.s32.totalorder %s36, 0
      %p155 = por %p153, %p154
      %s157 = sadd.s32 %s156, 1
      %p160 = scmp.eq.s32.totalorder %s30, 1
      %p161 = scmp.ne.s32.totalorder %s156, %s158
      %p162 = scmp.eq.s32.totalorder %s30, 0
      %p163 = por %p161, %p162
      %p164 = scmp.ne.s32.totalorder %s156, %s158
      %p165 = scmp.eq.s32.totalorder %s35, 1
      %p166 = por %p164, %p165
      %p167 = scmp.ne.s32.totalorder %s158, %s159
      %p168 = scmp.eq.s32.totalorder %s35, 0
      %p169 = por %p167, %p168
      %p170 = scmp.ne.s32.totalorder %s158, %s159
      %p171 = scmp.eq.s32.totalorder %s36, 1
      %p172 = por %p170, %p171
      %p174 = scmp.ne.s32.totalorder %s159, %s173
      %p175 = scmp.eq.s32.totalorder %s36, 0
      %p176 = por %p174, %p175
      %s178 = sadd.s32 %s177, 1
      %p181 = scmp.eq.s32.totalorder %s30, 1
      %p182 = scmp.ne.s32.totalorder %s177, %s179
      %p183 = scmp.eq.s32.totalorder %s30, 0
      %p184 = por %p182, %p183
      %p185 = scmp.ne.s32.totalorder %s177, %s179
      %p186 = scmp.eq.s32.totalorder %s35, 1
      %p187 = por %p185, %p186
      %p188 = scmp.ne.s32.totalorder %s179, %s180
      %p189 = scmp.eq.s32.totalorder %s35, 0
      %p190 = por %p188, %p189
      %p191 = scmp.ne.s32.totalorder %s179, %s180
      %p192 = scmp.eq.s32.totalorder %s36, 1
      %p193 = por %p191, %p192
      %p195 = scmp.ne.s32.totalorder %s180, %s194
      %p196 = scmp.eq.s32.totalorder %s36, 0
      %p197 = por %p195, %p196
      %s199 = sadd.s32 %s198, 1
      %p202 = scmp.eq.s32.totalorder %s30, 1
      %p203 = scmp.ne.s32.totalorder %s198, %s200
      %p204 = scmp.eq.s32.totalorder %s30, 0
      %p205 = por %p203, %p204
      %p206 = scmp.ne.s32.totalorder %s198, %s200
      %p207 = scmp.eq.s32.totalorder %s35, 1
      %p208 = por %p206, %p207
      %p209 = scmp.ne.s32.totalorder %s200, %s201
      %p210 = scmp.eq.s32.totalorder %s35, 0
      %p211 = por %p209, %p210
      %p212 = scmp.ne.s32.totalorder %s200, %s201
      %p213 = scmp.eq.s32.totalorder %s36, 1
      %p214 = por %p212, %p213
      %p216 = scmp.ne.s32.totalorder %s201, %s215
      %p217 = scmp.eq.s32.totalorder %s36, 0
      %p218 = por %p216, %p217
      %s220 = sadd.s32 %s219, 1
      %p223 = scmp.eq.s32.totalorder %s30, 1
      %p224 = scmp.ne.s32.totalorder %s219, %s221
      %p225 = scmp.eq.s32.totalorder %s30, 0
      %p226 = por %p224, %p225
      %p227 = scmp.ne.s32.totalorder %s219, %s221
      %p228 = scmp.eq.s32.totalorder %s35, 1
      %p229 = por %p227, %p228
      %p230 = scmp.ne.s32.totalorder %s221, %s222
      %p231 = scmp.eq.s32.totalorder %s35, 0
      %p232 = por %p230, %p231
      %p233 = scmp.ne.s32.totalorder %s221, %s222
      %p234 = scmp.eq.s32.totalorder %s36, 1
      %p235 = por %p233, %p234
      %p237 = scmp.ne.s32.totalorder %s222, %s236
      %p238 = scmp.eq.s32.totalorder %s36, 0
      %p239 = por %p237, %p238
      %s241 = sadd.s32 %s240, 1
      %p244 = scmp.eq.s32.totalorder %s30, 1
      %p245 = scmp.ne.s32.totalorder %s240, %s242
      %p246 = scmp.eq.s32.totalorder %s30, 0
      %p247 = por %p245, %p246
      %p248 = scmp.ne.s32.totalorder %s240, %s242
      %p249 = scmp.eq.s32.totalorder %s35, 1
      %p250 = por %p248, %p249
      %p251 = scmp.ne.s32.totalorder %s242, %s243
      %p252 = scmp.eq.s32.totalorder %s35, 0
      %p253 = por %p251, %p252
      %p254 = scmp.ne.s32.totalorder %s242, %s243
      %p255 = scmp.eq.s32.totalorder %s36, 1
      %p256 = por %p254, %p255
      %p258 = scmp.ne.s32.totalorder %s243, %s257
      %p259 = scmp.eq.s32.totalorder %s36, 0
      %p260 = por %p258, %p259
      %s262 = sadd.s32 %s261, 1
      %p265 = scmp.eq.s32.totalorder %s30, 1
      %p266 = scmp.ne.s32.totalorder %s261, %s263
      %p267 = scmp.eq.s32.totalorder %s30, 0
      %p268 = por %p266, %p267
      %p269 = scmp.ne.s32.totalorder %s261, %s263
      %p270 = scmp.eq.s32.totalorder %s35, 1
      %p271 = por %p269, %p270
      %p272 = scmp.ne.s32.totalorder %s263, %s264
      %p273 = scmp.eq.s32.totalorder %s35, 0
      %p274 = por %p272, %p273
      %p275 = scmp.ne.s32.totalorder %s263, %s264
      %p276 = scmp.eq.s32.totalorder %s36, 1
      %p277 = por %p275, %p276
      %p279 = scmp.ne.s32.totalorder %s264, %s278
      %p280 = scmp.eq.s32.totalorder %s36, 0
      %p281 = por %p279, %p280
      %s283 = sadd.s32 %s282, 1
      %p286 = scmp.eq.s32.totalorder %s30, 1
      %p287 = scmp.ne.s32.totalorder %s282, %s284
      %p288 = scmp.eq.s32.totalorder %s30, 0
      %p289 = por %p287, %p288
      %p290 = scmp.ne.s32.totalorder %s282, %s284
      %p291 = scmp.eq.s32.totalorder %s35, 1
      %p292 = por %p290, %p291
      %p293 = scmp.ne.s32.totalorder %s284, %s285
      %p294 = scmp.eq.s32.totalorder %s35, 0
      %p295 = por %p293, %p294
      %p296 = scmp.ne.s32.totalorder %s284, %s285
      %p297 = scmp.eq.s32.totalorder %s36, 1
      %p298 = por %p296, %p297
      %p300 = scmp.ne.s32.totalorder %s285, %s299
      %p301 = scmp.eq.s32.totalorder %s36, 0
      %p302 = por %p300, %p301
      %s304 = sadd.s32 %s303, 1
      %p307 = scmp.eq.s32.totalorder %s30, 1
      %p308 = scmp.ne.s32.totalorder %s303, %s305
      %p309 = scmp.eq.s32.totalorder %s30, 0
      %p310 = por %p308, %p309
      %p311 = scmp.ne.s32.totalorder %s303, %s305
      %p312 = scmp.eq.s32.totalorder %s35, 1
      %p313 = por %p311, %p312
      %p314 = scmp.ne.s32.totalorder %s305, %s306
      %p315 = scmp.eq.s32.totalorder %s35, 0
      %p316 = por %p314, %p315
      %p317 = scmp.ne.s32.totalorder %s305, %s306
      %p318 = scmp.eq.s32.totalorder %s36, 1
      %p319 = por %p317, %p318
      %p321 = scmp.ne.s32.totalorder %s306, %s320
      %p322 = scmp.eq.s32.totalorder %s36, 0
      %p323 = por %p321, %p322
      %s325 = sadd.s32 %s324, 1
      %p328 = scmp.eq.s32.totalorder %s30, 1
      %p329 = scmp.ne.s32.totalorder %s324, %s326
      %p330 = scmp.eq.s32.totalorder %s30, 0
      %p331 = por %p329, %p330
      %p332 = scmp.ne.s32.totalorder %s324, %s326
      %p333 = scmp.eq.s32.totalorder %s35, 1
      %p334 = por %p332, %p333
      %p335 = scmp.ne.s32.totalorder %s326, %s327
      %p336 = scmp.eq.s32.totalorder %s35, 0
      %p337 = por %p335, %p336
      %p338 = scmp.ne.s32.totalorder %s326, %s327
      %p339 = scmp.eq.s32.totalorder %s36, 1
      %p340 = por %p338, %p339
      %p342 = scmp.ne.s32.totalorder %s327, %s341
      %p343 = scmp.eq.s32.totalorder %s36, 0
      %p344 = por %p342, %p343
      %s346 = sadd.s32 %s345, 1
      %p349 = scmp.eq.s32.totalorder %s30, 1
      %p350 = scmp.ne.s32.totalorder %s345, %s347
      %p351 = scmp.eq.s32.totalorder %s30, 0
      %p352 = por %p350, %p351
      %p353 = scmp.ne.s32.totalorder %s345, %s347
      %p354 = scmp.eq.s32.totalorder %s35, 1
      %p355 = por %p353, %p354
      %p356 = scmp.ne.s32.totalorder %s347, %s348
      %p357 = scmp.eq.s32.totalorder %s35, 0
      %p358 = por %p356, %p357
      %p359 = scmp.ne.s32.totalorder %s347, %s348
      %p360 = scmp.eq.s32.totalorder %s36, 1
      %p361 = por %p359, %p360
      %p363 = scmp.ne.s32.totalorder %s348, %s362
      %p364 = scmp.eq.s32.totalorder %s36, 0
      %p365 = por %p363, %p364
      %s367 = sadd.s32 %s366, 1
      %p370 = scmp.eq.s32.totalorder %s30, 1
      %p371 = scmp.ne.s32.totalorder %s366, %s368
      %p372 = scmp.eq.s32.totalorder %s30, 0
      %p373 = por %p371, %p372
      %p374 = scmp.ne.s32.totalorder %s366, %s368
      %p375 = scmp.eq.s32.totalorder %s35, 1
      %p376 = por %p374, %p375
      %p377 = scmp.ne.s32.totalorder %s368, %s369
      %p378 = scmp.eq.s32.totalorder %s35, 0
      %p379 = por %p377, %p378
      %p380 = scmp.ne.s32.totalorder %s368, %s369
      %p381 = scmp.eq.s32.totalorder %s36, 1
      %p382 = por %p380, %p381
      %p384 = scmp.ne.s32.totalorder %s369, %s383
      %p385 = scmp.eq.s32.totalorder %s36, 0
      %p386 = por %p384, %p385
      %s388 = sadd.s32 %s387, 1
      %p391 = scmp.eq.s32.totalorder %s30, 1
      %p392 = scmp.ne.s32.totalorder %s387, %s389
      %p393 = scmp.eq.s32.totalorder %s30, 0
      %p394 = por %p392, %p393
      %p395 = scmp.ne.s32.totalorder %s387, %s389
      %p396 = scmp.eq.s32.totalorder %s35, 1
      %p397 = por %p395, %p396
      %p398 = scmp.ne.s32.totalorder %s389, %s390
      %p399 = scmp.eq.s32.totalorder %s35, 0
      %p400 = por %p398, %p399
      %p401 = scmp.ne.s32.totalorder %s389, %s390
      %p402 = scmp.eq.s32.totalorder %s36, 1
      %p403 = por %p401, %p402
      %p405 = scmp.ne.s32.totalorder %s390, %s404
      %p406 = scmp.eq.s32.totalorder %s36, 0
      %p407 = por %p405, %p406
      %s408 = ssub.s32 %s37, %s49
      %s409 = ssub.s32 %s38, %s45
      %s410 = sor.u32 %s408, %s409
      %p411 = scmp.eq.s32.totalorder %s410, 0
      %s413 = sadd.s32 %s412, 1
      %s414 = scalar_select %p411, %s412, %s413
      %p417 = pneg %p411
      %p418 = scmp.eq.s32.totalorder %s30, 1
      %p419 = por %p417, %p418
      %p420 = scmp.ne.s32.totalorder %s412, %s415
      %p421 = scmp.eq.s32.totalorder %s30, 0
      %p422 = por %p420, %p421
      %p423 = scmp.ne.s32.totalorder %s412, %s415
      %p424 = scmp.eq.s32.totalorder %s35, 1
      %p425 = por %p423, %p424
      %p426 = scmp.ne.s32.totalorder %s415, %s416
      %p427 = scmp.eq.s32.totalorder %s35, 0
      %p428 = por %p426, %p427
      %p429 = scmp.ne.s32.totalorder %s415, %s416
      %p430 = scmp.eq.s32.totalorder %s36, 1
      %p431 = por %p429, %p430
      %p433 = scmp.ne.s32.totalorder %s416, %s432
      %p434 = scmp.eq.s32.totalorder %s36, 0
      %p435 = por %p433, %p434
      %s436 = ssub.s32 %s37, %s49
      %s437 = ssub.s32 %s38, %s45
      %s438 = sor.u32 %s436, %s437
      %p439 = scmp.eq.s32.totalorder %s438, 0
      %s441 = sadd.s32 %s440, 1
      %s442 = scalar_select %p439, %s440, %s441
      %p445 = pneg %p439
      %p446 = scmp.eq.s32.totalorder %s30, 1
      %p447 = por %p445, %p446
      %p448 = scmp.ne.s32.totalorder %s440, %s443
      %p449 = scmp.eq.s32.totalorder %s30, 0
      %p450 = por %p448, %p449
      %p451 = scmp.ne.s32.totalorder %s440, %s443
      %p452 = scmp.eq.s32.totalorder %s35, 1
      %p453 = por %p451, %p452
      %p454 = scmp.ne.s32.totalorder %s443, %s444
      %p455 = scmp.eq.s32.totalorder %s35, 0
      %p456 = por %p454, %p455
      %p457 = scmp.ne.s32.totalorder %s443, %s444
      %p458 = scmp.eq.s32.totalorder %s36, 1
      %p459 = por %p457, %p458
      %p461 = scmp.ne.s32.totalorder %s444, %s460
      %p462 = scmp.eq.s32.totalorder %s36, 0
      %p463 = por %p461, %p462
      %p464 = scmp.le.s32.totalorder 1, %s30
      %p465 = scmp.lt.s32.totalorder %s30, 3
      %p466 = pnand %p464, %p465
      %p467 = pneg %p466
      // Predicated region
      $region9: #{tpu_custom_call.1} parent=5 // pred_check
        _
      $region10: #{tpu_custom_call.1} parent=5 // pred_check_branch
        %469 = sbr.rel (%p466) target = $region12
      $region11: #{tpu_custom_call.1} parent=5 // pred_region
        %s470 = ssub.s32 %s30, 1
        // Predicated region
        $region13: #{tpu_custom_call.1} parent=11 // pred_check
          %p471 = pneg %p169
        $region14: #{tpu_custom_call.1} parent=11 // pred_check_branch
          %473 = sbr.rel (%p471) target = $region16
        $region15: #{tpu_custom_call.1} parent=11 // pred_region
          _
        $region16: #{tpu_custom_call.1} parent=11 // pred_fallthru
          _
        // Predicated region
        $region17: #{tpu_custom_call.1} parent=11 // pred_check
          %p474 = pneg %p190
        $region18: #{tpu_custom_call.1} parent=11 // pred_check_branch
          %476 = sbr.rel (%p474) target = $region20
        $region19: #{tpu_custom_call.1} parent=11 // pred_region
          _
        $region20: #{tpu_custom_call.1} parent=11 // pred_fallthru
          _
        // Predicated region
        $region21: #{tpu_custom_call.1} parent=11 // pred_check
          %p477 = pneg %p211
        $region22: #{tpu_custom_call.1} parent=11 // pred_check_branch
          %479 = sbr.rel (%p477) target = $region24
        $region23: #{tpu_custom_call.1} parent=11 // pred_region
          _
        $region24: #{tpu_custom_call.1} parent=11 // pred_fallthru
          _
        // Predicated region
        $region25: #{tpu_custom_call.1} parent=11 // pred_check
          %p480 = pneg %p232
        $region26: #{tpu_custom_call.1} parent=11 // pred_check_branch
          %482 = sbr.rel (%p480) target = $region28
        $region27: #{tpu_custom_call.1} parent=11 // pred_region
          _
        $region28: #{tpu_custom_call.1} parent=11 // pred_fallthru
          _
        // Predicated region
        $region29: #{tpu_custom_call.1} parent=11 // pred_check
          %p483 = pneg %p253
        $region30: #{tpu_custom_call.1} parent=11 // pred_check_branch
          %485 = sbr.rel (%p483) target = $region32
        $region31: #{tpu_custom_call.1} parent=11 // pred_region
          _
        $region32: #{tpu_custom_call.1} parent=11 // pred_fallthru
          _
        // Predicated region
        $region33: #{tpu_custom_call.1} parent=11 // pred_check
          %p486 = pneg %p274
        $region34: #{tpu_custom_call.1} parent=11 // pred_check_branch
          %488 = sbr.rel (%p486) target = $region36
        $region35: #{tpu_custom_call.1} parent=11 // pred_region
          _
        $region36: #{tpu_custom_call.1} parent=11 // pred_fallthru
          _
        // Predicated region
        $region37: #{tpu_custom_call.1} parent=11 // pred_check
          %p489 = pneg %p295
        $region38: #{tpu_custom_call.1} parent=11 // pred_check_branch
          %491 = sbr.rel (%p489) target = $region40
        $region39: #{tpu_custom_call.1} parent=11 // pred_region
          _
        $region40: #{tpu_custom_call.1} parent=11 // pred_fallthru
          _
        // Predicated region
        $region41: #{tpu_custom_call.1} parent=11 // pred_check
          %p492 = pneg %p316
        $region42: #{tpu_custom_call.1} parent=11 // pred_check_branch
          %494 = sbr.rel (%p492) target = $region44
        $region43: #{tpu_custom_call.1} parent=11 // pred_region
          _
        $region44: #{tpu_custom_call.1} parent=11 // pred_fallthru
          _
        // Predicated region
        $region45: #{tpu_custom_call.1} parent=11 // pred_check
          %p495 = pneg %p337
        $region46: #{tpu_custom_call.1} parent=11 // pred_check_branch
          %497 = sbr.rel (%p495) target = $region48
        $region47: #{tpu_custom_call.1} parent=11 // pred_region
          _
        $region48: #{tpu_custom_call.1} parent=11 // pred_fallthru
          _
        // Predicated region
        $region49: #{tpu_custom_call.1} parent=11 // pred_check
          %p498 = pneg %p358
        $region50: #{tpu_custom_call.1} parent=11 // pred_check_branch
          %500 = sbr.rel (%p498) target = $region52
        $region51: #{tpu_custom_call.1} parent=11 // pred_region
          _
        $region52: #{tpu_custom_call.1} parent=11 // pred_fallthru
          _
        // Predicated region
        $region53: #{tpu_custom_call.1} parent=11 // pred_check
          %p501 = pneg %p379
        $region54: #{tpu_custom_call.1} parent=11 // pred_check_branch
          %503 = sbr.rel (%p501) target = $region56
        $region55: #{tpu_custom_call.1} parent=11 // pred_region
          _
        $region56: #{tpu_custom_call.1} parent=11 // pred_fallthru
          _
        // Predicated region
        $region57: #{tpu_custom_call.1} parent=11 // pred_check
          %p504 = pneg %p400
        $region58: #{tpu_custom_call.1} parent=11 // pred_check_branch
          %506 = sbr.rel (%p504) target = $region60
        $region59: #{tpu_custom_call.1} parent=11 // pred_region
          _
        $region60: #{tpu_custom_call.1} parent=11 // pred_fallthru
          _
      $region12: #{tpu_custom_call.1} parent=5 // pred_fallthru
        _
      %p507 = scmp.lt.s32.totalorder %s30, 2
      // Predicated region
      $region61: #{tpu_custom_call.1} parent=5 // pred_check
        %p508 = pneg %p507
      $region62: #{tpu_custom_call.1} parent=5 // pred_check_branch
        %510 = sbr.rel (%p508) target = $region64
      $region63: #{tpu_custom_call.1} parent=5 // pred_region
        // Predicated region
        $region65: #{tpu_custom_call.1} parent=63 // pred_check
          %p511 = pneg %p64
        $region66: #{tpu_custom_call.1} parent=63 // pred_check_branch
          %513 = sbr.rel (%p511) target = $region68
        $region67: #{tpu_custom_call.1} parent=63 // pred_region
          %p514 = scmp.lt.s32.totalorder %s37, 1
          %s515 = scalar_select %p514, %s37, 1
          %p516 = scmp.lt.s32.totalorder %s38, 0
          %s517 = scalar_select %p516, %s38, 0
          %s518 = sadd.s32 %s517, %s515
          %s519 = smul.addr %s518, 8
          %s520 = scalar_lea.vmem %s0, %s519
        $region68: #{tpu_custom_call.1} parent=63 // pred_fallthru
          _
        // Predicated region
        $region69: #{tpu_custom_call.1} parent=63 // pred_check
          %p521 = pneg %p90
        $region70: #{tpu_custom_call.1} parent=63 // pred_check_branch
          %523 = sbr.rel (%p521) target = $region72
        $region71: #{tpu_custom_call.1} parent=63 // pred_region
          %p524 = scmp.lt.s32.totalorder %s37, 1
          %s525 = scalar_select %p524, %s37, 1
          %s526 = smul.addr %s525, 4
          %s527 = scalar_lea.vmem %s1, %s526
        $region72: #{tpu_custom_call.1} parent=63 // pred_fallthru
          _
        // Predicated region
        $region73: #{tpu_custom_call.1} parent=63 // pred_check
          %p528 = pneg %p116
        $region74: #{tpu_custom_call.1} parent=63 // pred_check_branch
          %530 = sbr.rel (%p528) target = $region76
        $region75: #{tpu_custom_call.1} parent=63 // pred_region
          %p531 = scmp.lt.s32.totalorder %s37, 1
          %s532 = scalar_select %p531, %s37, 1
          %s533 = smul.addr %s532, 4
          %s534 = scalar_lea.vmem %s2, %s533
        $region76: #{tpu_custom_call.1} parent=63 // pred_fallthru
          _
        // Predicated region
        $region77: #{tpu_custom_call.1} parent=63 // pred_check
          %p535 = pneg %p142
        $region78: #{tpu_custom_call.1} parent=63 // pred_check_branch
          %537 = sbr.rel (%p535) target = $region80
        $region79: #{tpu_custom_call.1} parent=63 // pred_region
          %p538 = scmp.lt.s32.totalorder %s37, 1
          %s539 = scalar_select %p538, %s37, 1
          %s540 = scalar_lea.vmem %s3, %s539
        $region80: #{tpu_custom_call.1} parent=63 // pred_fallthru
          _
      $region64: #{tpu_custom_call.1} parent=5 // pred_fallthru
        _
      %p541 = scmp.le.s32.totalorder 1, %s30
      %p542 = scmp.lt.s32.totalorder %s30, 3
      %p543 = pnand %p541, %p542
      %p544 = pneg %p543
      // Predicated region
      $region81: #{tpu_custom_call.1} parent=5 // pred_check
        _
      $region82: #{tpu_custom_call.1} parent=5 // pred_check_branch
        %546 = sbr.rel (%p543) target = $region84
      $region83: #{tpu_custom_call.1} parent=5 // pred_region
        %s547 = ssub.s32 %s30, 1
        %p548 = scmp.lt.s32.totalorder %s39, 1
        %s549 = scalar_select %p548, %s39, 1
        %p550 = scmp.lt.s32.totalorder %s40, 0
        %s551 = scalar_select %p550, %s40, 0
        %s552 = sadd.s32 %s551, %s549
        %s553 = smul.addr %s552, 8
        %s554 = scalar_lea.vmem %s0, %s553
        %p555 = pneg %p70
        %p556 = pneg %p67
        %p557 = scmp.lt.s32.totalorder %s39, 1
        %s558 = scalar_select %p557, %s39, 1
        %s559 = smul.addr %s558, 4
        %s560 = scalar_lea.vmem %s1, %s559
        %p561 = pneg %p96
        %p562 = pneg %p93
        %p563 = scmp.lt.s32.totalorder %s39, 1
        %s564 = scalar_select %p563, %s39, 1
        %s565 = smul.addr %s564, 4
        %s566 = scalar_lea.vmem %s2, %s565
        %p567 = pneg %p122
        %p568 = pneg %p119
        %p569 = scmp.lt.s32.totalorder %s39, 1
        %s570 = scalar_select %p569, %s39, 1
        %s571 = scalar_lea.vmem %s3, %s570
        %p572 = pneg %p148
        %p573 = pneg %p145
        %p574 = pneg %p169
        %p575 = pneg %p166
        %p576 = pneg %p190
        %p577 = pneg %p187
        %p578 = pneg %p211
        %p579 = pneg %p208
        %p580 = pneg %p232
        %p581 = pneg %p229
        %p582 = pneg %p253
        %p583 = pneg %p250
        %p584 = pneg %p274
        %p585 = pneg %p271
        %p586 = pneg %p295
        %p587 = pneg %p292
        %p588 = pneg %p316
        %p589 = pneg %p313
        %p590 = pneg %p337
        %p591 = pneg %p334
        %p592 = pneg %p358
        %p593 = pneg %p355
        %p594 = pneg %p379
        %p595 = pneg %p376
        %p596 = pneg %p400
        %p597 = pneg %p397
        %p598 = pneg %p428
        %p599 = pneg %p425
        %s600 = sand.u32 %s415, 1
        %s601 = scalar_lea.sflag [#allocation3], %s600
        %s602 = sand.u32 %s415, 1
        %s603 = smul.addr %s602, 8
        %s604 = scalar_lea.vmem [#allocation2], %s603
        %p605 = pneg %p456
        %p606 = pneg %p453
        %s607 = sand.u32 %s443, 1
        %s608 = scalar_lea.sflag [#allocation5], %s607
        %s609 = sand.u32 %s443, 1
        %s610 = smul.addr %s609, 8
        %s611 = scalar_lea.vmem [#allocation4], %s610
        %p612 = scmp.lt.s32.totalorder %s39, 1
        %s613 = scalar_select %p612, %s39, 1
        %p614 = scmp.lt.s32.totalorder %s40, 0
        %s615 = scalar_select %p614, %s40, 0
        %s616 = sadd.s32 %s615, %s613
        %s617 = smul.addr %s616, 8
        %s618 = scalar_lea.vmem %s0, %s617
        %p619 = scmp.lt.s32.totalorder %s39, 1
        %s620 = scalar_select %p619, %s39, 1
        %s621 = smul.addr %s620, 4
        %s622 = scalar_lea.vmem %s1, %s621
        %p623 = scmp.lt.s32.totalorder %s39, 1
        %s624 = scalar_select %p623, %s39, 1
        %s625 = smul.addr %s624, 4
        %s626 = scalar_lea.vmem %s2, %s625
        %p627 = scmp.lt.s32.totalorder %s39, 1
        %s628 = scalar_select %p627, %s39, 1
        %s629 = scalar_lea.vmem %s3, %s628
        %v631 = vld [vmem:[%s618] sm:$0xff]
        %v632 = vpack.c.bf16 %v631, %v631
        %v633 = vld [vmem:[%s622] sm:$0xf]
        %v634 = vld [vmem:[%s626] sm:$0xf]
        %v635 = vld [vmem:[%s4] sm:$0xf]
        %v636 = vld [vmem:[%s4 + $0x4] sm:$0xf]
        %v637 = vld [vmem:[%s4 + $0x8] sm:$0xf]
        %v638 = vld [vmem:[%s4 + $0xc] sm:$0xf]
        %v639 = vld [vmem:[%s5] sm:$0x1]
        %v641 = vlaneseq
        %v642 = vshrl.u32 %v641, 7
        %v643 = vsub.s32 0, %v642
        %v644 = vrot.slane %v639, %v643
        %v650 = vunpack.c.l.b16 %v635
        %v651 = vunpack.c.l.b16 %v636
        %v652 = vunpack.c.l.b16 %v637
        %v653 = vunpack.c.l.b16 %v638
        %v654 = vpack.c.b16 %v651, %v650
        %v655 = vpack.c.b16 %v653, %v652
        %vm658 = vcmask 261120
        %v660 = vsel %vm658, %v632, 0
        %662 = vmatprep.subr.bf16.mxu0 0
        %663 = vmatpush1.bf16.msra.mxu0 %v654
        %664 = vmatprep.subr.bf16.mxu0 0
        %665 = vmatpush1.bf16.msra.mxu0 %v655
        %666 = vmatprep.subr.bf16.mxu0 0
        %667 = vmatpush1.bf16.msra.mxu0 0
        %668 = vmatprep.subr.bf16.mxu0 0
        %669 = vmatpush1.bf16.msra.mxu0 0
        %670 = vmatprep.subr.bf16.mxu0 0
        %671 = vmatpush1.bf16.msra.mxu0 0
        %672 = vmatprep.subr.bf16.mxu0 0
        %673 = vmatpush1.bf16.msra.mxu0 0
        %674 = vmatprep.subr.bf16.mxu0 0
        %675 = vmatpush1.bf16.msra.mxu0 0
        %676 = vmatprep.subr.bf16.mxu0 0
        %677 = vmatpush1.bf16.msra.mxu0 0
        %678 = vmatprep.subr.bf16.mxu0 0
        %679 = vmatpush1.bf16.msra.mxu0 0
        %680 = vmatprep.subr.bf16.mxu0 0
        %681 = vmatpush1.bf16.msra.mxu0 0
        %682 = vmatprep.subr.bf16.mxu0 0
        %683 = vmatpush1.bf16.msra.mxu0 0
        %684 = vmatprep.subr.bf16.mxu0 0
        %685 = vmatpush1.bf16.msra.mxu0 0
        %686 = vmatprep.subr.bf16.mxu0 0
        %687 = vmatpush1.bf16.msra.mxu0 0
        %688 = vmatprep.subr.bf16.mxu0 0
        %689 = vmatpush1.bf16.msra.mxu0 0
        %690 = vmatprep.subr.bf16.mxu0 0
        %691 = vmatpush1.bf16.msra.mxu0 0
        %692 = vmatprep.subr.bf16.mxu0 0
        %693 = vmatpush1.bf16.msra.mxu0 0
        %694 = vmatprep.mubr.bf16.mxu0 0
        %695 = vmatmul.mubr.bf16.gmra.mrb[0].mxu0 %v660
        %v696 = vpop.f32.mrb[0].mxu0
        %v697 = vadd.f32 %v644, %v696
        %v698 = vpop.f32.mrb[0].mxu0
        %v699 = vpop.f32.mrb[0].mxu0
        %v700 = vpop.f32.mrb[0].mxu0
        %701 = vdwg.mxu0
        %v702 = vmul.f32 %v697, 0.35355338
        %703 = vrot.lane.b32.xlu0 %v654, 96
        %v704 = vpop.permute.xlu0 %703
        %705 = vrot.lane.b32.xlu0 %v655, 96
        %v706 = vpop.permute.xlu0 %705
        %709 = vrot.lane.b32.xlu0 %v644, 96
        %v710 = vpop.permute.xlu0 %709
        %v713 = vsel %vm658, %v633, 0
        %715 = vmatprep.subr.bf16.mxu0 0
        %716 = vmatpush1.bf16.msra.mxu0 %v704
        %717 = vmatprep.subr.bf16.mxu0 0
        %718 = vmatpush1.bf16.msra.mxu0 %v706
        %719 = vmatprep.subr.bf16.mxu0 0
        %720 = vmatpush1.bf16.msra.mxu0 0
        %721 = vmatprep.subr.bf16.mxu0 0
        %722 = vmatpush1.bf16.msra.mxu0 0
        %723 = vmatprep.subr.bf16.mxu0 0
        %724 = vmatpush1.bf16.msra.mxu0 0
        %725 = vmatprep.subr.bf16.mxu0 0
        %726 = vmatpush1.bf16.msra.mxu0 0
        %727 = vmatprep.subr.bf16.mxu0 0
        %728 = vmatpush1.bf16.msra.mxu0 0
        %729 = vmatprep.subr.bf16.mxu0 0
        %730 = vmatpush1.bf16.msra.mxu0 0
        %731 = vmatprep.subr.bf16.mxu0 0
        %732 = vmatpush1.bf16.msra.mxu0 0
        %733 = vmatprep.subr.bf16.mxu0 0
        %734 = vmatpush1.bf16.msra.mxu0 0
        %735 = vmatprep.subr.bf16.mxu0 0
        %736 = vmatpush1.bf16.msra.mxu0 0
        %737 = vmatprep.subr.bf16.mxu0 0
        %738 = vmatpush1.bf16.msra.mxu0 0
        %739 = vmatprep.subr.bf16.mxu0 0
        %740 = vmatpush1.bf16.msra.mxu0 0
        %741 = vmatprep.subr.bf16.mxu0 0
        %742 = vmatpush1.bf16.msra.mxu0 0
        %743 = vmatprep.subr.bf16.mxu0 0
        %744 = vmatpush1.bf16.msra.mxu0 0
        %745 = vmatprep.subr.bf16.mxu0 0
        %746 = vmatpush1.bf16.msra.mxu0 0
        %747 = vmatprep.mubr.bf16.mxu0 0
        %748 = vmatmul.mubr.bf16.gmra.mrb[0].mxu0 %v713
        %v749 = vpop.f32.mrb[0].mxu0
        %v750 = vadd.f32 %v710, %v749
        %v751 = vpop.f32.mrb[0].mxu0
        %v752 = vpop.f32.mrb[0].mxu0
        %v753 = vpop.f32.mrb[0].mxu0
        %754 = vdwg.mxu0
        %755 = vrot.lane.b32.xlu0 %v654, 64
        %v756 = vpop.permute.xlu0 %755
        %757 = vrot.lane.b32.xlu0 %v655, 64
        %v758 = vpop.permute.xlu0 %757
        %761 = vrot.lane.b32.xlu0 %v644, 64
        %v762 = vpop.permute.xlu0 %761
        %v765 = vsel %vm658, %v634, 0
        %767 = vmatprep.subr.bf16.mxu0 0
        %768 = vmatpush1.bf16.msra.mxu0 %v756
        %769 = vmatprep.subr.bf16.mxu0 0
        %770 = vmatpush1.bf16.msra.mxu0 %v758
        %771 = vmatprep.subr.bf16.mxu0 0
        %772 = vmatpush1.bf16.msra.mxu0 0
        %773 = vmatprep.subr.bf16.mxu0 0
        %774 = vmatpush1.bf16.msra.mxu0 0
        %775 = vmatprep.subr.bf16.mxu0 0
        %776 = vmatpush1.bf16.msra.mxu0 0
        %777 = vmatprep.subr.bf16.mxu0 0
        %778 = vmatpush1.bf16.msra.mxu0 0
        %779 = vmatprep.subr.bf16.mxu0 0
        %780 = vmatpush1.bf16.msra.mxu0 0
        %781 = vmatprep.subr.bf16.mxu0 0
        %782 = vmatpush1.bf16.msra.mxu0 0
        %783 = vmatprep.subr.bf16.mxu0 0
        %784 = vmatpush1.bf16.msra.mxu0 0
        %785 = vmatprep.subr.bf16.mxu0 0
        %786 = vmatpush1.bf16.msra.mxu0 0
        %787 = vmatprep.subr.bf16.mxu0 0
        %788 = vmatpush1.bf16.msra.mxu0 0
        %789 = vmatprep.subr.bf16.mxu0 0
        %790 = vmatpush1.bf16.msra.mxu0 0
        %791 = vmatprep.subr.bf16.mxu0 0
        %792 = vmatpush1.bf16.msra.mxu0 0
        %793 = vmatprep.subr.bf16.mxu0 0
        %794 = vmatpush1.bf16.msra.mxu0 0
        %795 = vmatprep.subr.bf16.mxu0 0
        %796 = vmatpush1.bf16.msra.mxu0 0
        %797 = vmatprep.subr.bf16.mxu0 0
        %798 = vmatpush1.bf16.msra.mxu0 0
        %799 = vmatprep.mubr.bf16.mxu0 0
        %800 = vmatmul.mubr.bf16.gmra.mrb[0].mxu0 %v765
        %v801 = vpop.f32.mrb[0].mxu0
        %v802 = vadd.f32 %v762, %v801
        %v803 = vpop.f32.mrb[0].mxu0
        %v804 = vpop.f32.mrb[0].mxu0
        %v805 = vpop.f32.mrb[0].mxu0
        %806 = vdwg.mxu0
        %v807 = vpack.c.bf16 %v702, %v702
        %v808 = vpack.c.bf16 %v750, %v750
        %v809 = vpack.c.bf16 %v802, %v802
        %v810 = vld [vmem:[%s629] sm:$0x1]
        %vm811 = vcmp.gt.f32.partialorder %v810, 0.5
        %v812 = vsel %vm811, -1e+30, 0.0
        %v814 = vlaneseq
        %v815 = vshrl.u32 %v814, 7
        %v816 = vsub.s32 0, %v815
        %v817 = vrot.slane %v812, %v816
        %vm819 = vcmask 64512
        %v821 = vsel %vm819, %v807, 0
        %v824 = vsel %vm819, %v808, 0
        %826 = vmatprep.subr.bf16.mxu0 0
        %827 = vmatpush1.bf16.xpose.msra.mxu0 %v824
        %828 = vmatprep.subr.bf16.mxu0 0
        %829 = vmatpush1.bf16.xpose.msra.mxu0 0
        %830 = vmatprep.subr.bf16.mxu0 0
        %831 = vmatpush1.bf16.xpose.msra.mxu0 0
        %832 = vmatprep.subr.bf16.mxu0 0
        %833 = vmatpush1.bf16.xpose.msra.mxu0 0
        %834 = vmatprep.subr.bf16.mxu0 0
        %835 = vmatpush1.bf16.xpose.msra.mxu0 0
        %836 = vmatprep.subr.bf16.mxu0 0
        %837 = vmatpush1.bf16.xpose.msra.mxu0 0
        %838 = vmatprep.subr.bf16.mxu0 0
        %839 = vmatpush1.bf16.xpose.msra.mxu0 0
        %840 = vmatprep.subr.bf16.mxu0 0
        %841 = vmatpush1.bf16.xpose.msra.mxu0 0
        %842 = vmatprep.subr.bf16.mxu0 0
        %843 = vmatpush1.bf16.xpose.msra.mxu0 0
        %844 = vmatprep.subr.bf16.mxu0 0
        %845 = vmatpush1.bf16.xpose.msra.mxu0 0
        %846 = vmatprep.subr.bf16.mxu0 0
        %847 = vmatpush1.bf16.xpose.msra.mxu0 0
        %848 = vmatprep.subr.bf16.mxu0 0
        %849 = vmatpush1.bf16.xpose.msra.mxu0 0
        %850 = vmatprep.subr.bf16.mxu0 0
        %851 = vmatpush1.bf16.xpose.msra.mxu0 0
        %852 = vmatprep.subr.bf16.mxu0 0
        %853 = vmatpush1.bf16.xpose.msra.mxu0 0
        %854 = vmatprep.subr.bf16.mxu0 0
        %855 = vmatpush1.bf16.xpose.msra.mxu0 0
        %856 = vmatprep.subr.bf16.mxu0 0
        %857 = vmatpush1.bf16.xpose.msra.mxu0 0
        %858 = vmatprep.mubr.bf16.mxu0 0
        %859 = vmatmul.mubr.bf16.gmra.mrb[0].mxu0 %v821
        %v860 = vpop.f32.mrb[0].mxu0
        %v861 = vadd.f32 %v817, %v860
        %v862 = vpop.f32.mrb[0].mxu0
        %v863 = vpop.f32.mrb[0].mxu0
        %v864 = vpop.f32.mrb[0].mxu0
        %865 = vdwg.mxu0
        %v866 = vsel %vm819, %v861, -inf
        %867 = vmax.xlane.f32.xlu0 %v866
        %v868 = vpop.xlane.xlu0 %867
        %v869 = vsub.f32 %v861, %v868
        %v870 = vmul.f32 %v869, 1.442695
        %v871 = vpow.pop %v870
        %v872 = vsel %vm819, %v871, 0.0
        %873 = vadd.xlane.f32.xlu0 %v872
        %v874 = vpop.xlane.xlu0 %873
        %v875 = vrcp.pop %v874
        %v876 = vmul.f32 %v871, %v875
        %v877 = vadd.f32 %v876, 0.0
        %v878 = vpack.c.bf16 %v876, %v876
        %v880 = vsel %vm819, %v878, 0
        %vm882 = vcmask 1043456
        %v884 = vsel %vm882, %v809, 0
        %886 = vmatprep.subr.bf16.mxu0 0
        %887 = vmatpush1.bf16.msra.mxu0 %v884
        %888 = vmatprep.subr.bf16.mxu0 0
        %889 = vmatpush1.bf16.msra.mxu0 0
        %890 = vmatprep.subr.bf16.mxu0 0
        %891 = vmatpush1.bf16.msra.mxu0 0
        %892 = vmatprep.subr.bf16.mxu0 0
        %893 = vmatpush1.bf16.msra.mxu0 0
        %894 = vmatprep.subr.bf16.mxu0 0
        %895 = vmatpush1.bf16.msra.mxu0 0
        %896 = vmatprep.subr.bf16.mxu0 0
        %897 = vmatpush1.bf16.msra.mxu0 0
        %898 = vmatprep.subr.bf16.mxu0 0
        %899 = vmatpush1.bf16.msra.mxu0 0
        %900 = vmatprep.subr.bf16.mxu0 0
        %901 = vmatpush1.bf16.msra.mxu0 0
        %902 = vmatprep.subr.bf16.mxu0 0
        %903 = vmatpush1.bf16.msra.mxu0 0
        %904 = vmatprep.subr.bf16.mxu0 0
        %905 = vmatpush1.bf16.msra.mxu0 0
        %906 = vmatprep.subr.bf16.mxu0 0
        %907 = vmatpush1.bf16.msra.mxu0 0
        %908 = vmatprep.subr.bf16.mxu0 0
        %909 = vmatpush1.bf16.msra.mxu0 0
        %910 = vmatprep.subr.bf16.mxu0 0
        %911 = vmatpush1.bf16.msra.mxu0 0
        %912 = vmatprep.subr.bf16.mxu0 0
        %913 = vmatpush1.bf16.msra.mxu0 0
        %914 = vmatprep.subr.bf16.mxu0 0
        %915 = vmatpush1.bf16.msra.mxu0 0
        %916 = vmatprep.subr.bf16.mxu0 0
        %917 = vmatpush1.bf16.msra.mxu0 0
        %918 = vmatprep.mubr.bf16.mxu0 0
        %919 = vmatmul.mubr.bf16.gmra.mrb[0].mxu0 %v880
        %v920 = vpop.f32.mrb[0].mxu0
        %v921 = vadd.f32 0.0, %v920
        %v922 = vpop.f32.mrb[0].mxu0
        %v923 = vpop.f32.mrb[0].mxu0
        %v924 = vpop.f32.mrb[0].mxu0
        %925 = vdwg.mxu0
        %927 = vrot.lane.b32.xlu0 %v807, 120
        %v928 = vpop.permute.xlu0 %927
        %930 = vrot.lane.b32.xlu0 %v808, 120
        %v931 = vpop.permute.xlu0 %930
        %v933 = vsel %vm819, %v928, 0
        %v936 = vsel %vm819, %v931, 0
        %938 = vmatprep.subr.bf16.mxu0 0
        %939 = vmatpush1.bf16.xpose.msra.mxu0 %v936
        %940 = vmatprep.subr.bf16.mxu0 0
        %941 = vmatpush1.bf16.xpose.msra.mxu0 0
        %942 = vmatprep.subr.bf16.mxu0 0
        %943 = vmatpush1.bf16.xpose.msra.mxu0 0
        %944 = vmatprep.subr.bf16.mxu0 0
        %945 = vmatpush1.bf16.xpose.msra.mxu0 0
        %946 = vmatprep.subr.bf16.mxu0 0
        %947 = vmatpush1.bf16.xpose.msra.mxu0 0
        %948 = vmatprep.subr.bf16.mxu0 0
        %949 = vmatpush1.bf16.xpose.msra.mxu0 0
        %950 = vmatprep.subr.bf16.mxu0 0
        %951 = vmatpush1.bf16.xpose.msra.mxu0 0
        %952 = vmatprep.subr.bf16.mxu0 0
        %953 = vmatpush1.bf16.xpose.msra.mxu0 0
        %954 = vmatprep.subr.bf16.mxu0 0
        %955 = vmatpush1.bf16.xpose.msra.mxu0 0
        %956 = vmatprep.subr.bf16.mxu0 0
        %957 = vmatpush1.bf16.xpose.msra.mxu0 0
        %958 = vmatprep.subr.bf16.mxu0 0
        %959 = vmatpush1.bf16.xpose.msra.mxu0 0
        %960 = vmatprep.subr.bf16.mxu0 0
        %961 = vmatpush1.bf16.xpose.msra.mxu0 0
        %962 = vmatprep.subr.bf16.mxu0 0
        %963 = vmatpush1.bf16.xpose.msra.mxu0 0
        %964 = vmatprep.subr.bf16.mxu0 0
        %965 = vmatpush1.bf16.xpose.msra.mxu0 0
        %966 = vmatprep.subr.bf16.mxu0 0
        %967 = vmatpush1.bf16.xpose.msra.mxu0 0
        %968 = vmatprep.subr.bf16.mxu0 0
        %969 = vmatpush1.bf16.xpose.msra.mxu0 0
        %970 = vmatprep.mubr.bf16.mxu0 0
        %971 = vmatmul.mubr.bf16.gmra.mrb[0].mxu0 %v933
        %v972 = vpop.f32.mrb[0].mxu0
        %v973 = vadd.f32 %v817, %v972
        %v974 = vpop.f32.mrb[0].mxu0
        %v975 = vpop.f32.mrb[0].mxu0
        %v976 = vpop.f32.mrb[0].mxu0
        %977 = vdwg.mxu0
        %v978 = vsel %vm819, %v973, -inf
        %979 = vmax.xlane.f32.xlu0 %v978
        %v980 = vpop.xlane.xlu0 %979
        %v981 = vsub.f32 %v973, %v980
        %v982 = vmul.f32 %v981, 1.442695
        %v983 = vpow.pop %v982
        %v984 = vsel %vm819, %v983, 0.0
        %985 = vadd.xlane.f32.xlu0 %v984
        %v986 = vpop.xlane.xlu0 %985
        %v987 = vrcp.pop %v986
        %v988 = vmul.f32 %v983, %v987
        %v989 = vadd.f32 %v877, %v988
        %v990 = vpack.c.bf16 %v988, %v988
        %992 = vrot.lane.b32.xlu0 %v809, 120
        %v993 = vpop.permute.xlu0 %992
        %v995 = vsel %vm819, %v990, 0
        %v998 = vsel %vm882, %v993, 0
        %1000 = vmatprep.subr.bf16.mxu0 0
        %1001 = vmatpush1.bf16.msra.mxu0 %v998
        %1002 = vmatprep.subr.bf16.mxu0 0
        %1003 = vmatpush1.bf16.msra.mxu0 0
        %1004 = vmatprep.subr.bf16.mxu0 0
        %1005 = vmatpush1.bf16.msra.mxu0 0
        %1006 = vmatprep.subr.bf16.mxu0 0
        %1007 = vmatpush1.bf16.msra.mxu0 0
        %1008 = vmatprep.subr.bf16.mxu0 0
        %1009 = vmatpush1.bf16.msra.mxu0 0
        %1010 = vmatprep.subr.bf16.mxu0 0
        %1011 = vmatpush1.bf16.msra.mxu0 0
        %1012 = vmatprep.subr.bf16.mxu0 0
        %1013 = vmatpush1.bf16.msra.mxu0 0
        %1014 = vmatprep.subr.bf16.mxu0 0
        %1015 = vmatpush1.bf16.msra.mxu0 0
        %1016 = vmatprep.subr.bf16.mxu0 0
        %1017 = vmatpush1.bf16.msra.mxu0 0
        %1018 = vmatprep.subr.bf16.mxu0 0
        %1019 = vmatpush1.bf16.msra.mxu0 0
        %1020 = vmatprep.subr.bf16.mxu0 0
        %1021 = vmatpush1.bf16.msra.mxu0 0
        %1022 = vmatprep.subr.bf16.mxu0 0
        %1023 = vmatpush1.bf16.msra.mxu0 0
        %1024 = vmatprep.subr.bf16.mxu0 0
        %1025 = vmatpush1.bf16.msra.mxu0 0
        %1026 = vmatprep.subr.bf16.mxu0 0
        %1027 = vmatpush1.bf16.msra.mxu0 0
        %1028 = vmatprep.subr.bf16.mxu0 0
        %1029 = vmatpush1.bf16.msra.mxu0 0
        %1030 = vmatprep.subr.bf16.mxu0 0
        %1031 = vmatpush1.bf16.msra.mxu0 0
        %1032 = vmatprep.mubr.bf16.mxu0 0
        %1033 = vmatmul.mubr.bf16.gmra.mrb[0].mxu0 %v995
        %v1034 = vpop.f32.mrb[0].mxu0
        %v1035 = vadd.f32 0.0, %v1034
        %v1036 = vpop.f32.mrb[0].mxu0
        %v1037 = vpop.f32.mrb[0].mxu0
        %v1038 = vpop.f32.mrb[0].mxu0
        %1039 = vdwg.mxu0
        %1040 = vrot.lane.b32.xlu0 %v807, 112
        %v1041 = vpop.permute.xlu0 %1040
        %1042 = vrot.lane.b32.xlu0 %v808, 112
        %v1043 = vpop.permute.xlu0 %1042
        %v1045 = vsel %vm819, %v1041, 0
        %v1048 = vsel %vm819, %v1043, 0
        %1050 = vmatprep.subr.bf16.mxu0 0
        %1051 = vmatpush1.bf16.xpose.msra.mxu0 %v1048
        %1052 = vmatprep.subr.bf16.mxu0 0
        %1053 = vmatpush1.bf16.xpose.msra.mxu0 0
        %1054 = vmatprep.subr.bf16.mxu0 0
        %1055 = vmatpush1.bf16.xpose.msra.mxu0 0
        %1056 = vmatprep.subr.bf16.mxu0 0
        %1057 = vmatpush1.bf16.xpose.msra.mxu0 0
        %1058 = vmatprep.subr.bf16.mxu0 0
        %1059 = vmatpush1.bf16.xpose.msra.mxu0 0
        %1060 = vmatprep.subr.bf16.mxu0 0
        %1061 = vmatpush1.bf16.xpose.msra.mxu0 0
        %1062 = vmatprep.subr.bf16.mxu0 0
        %1063 = vmatpush1.bf16.xpose.msra.mxu0 0
        %1064 = vmatprep.subr.bf16.mxu0 0
        %1065 = vmatpush1.bf16.xpose.msra.mxu0 0
        %1066 = vmatprep.subr.bf16.mxu0 0
        %1067 = vmatpush1.bf16.xpose.msra.mxu0 0
        %1068 = vmatprep.subr.bf16.mxu0 0
        %1069 = vmatpush1.bf16.xpose.msra.mxu0 0
        %1070 = vmatprep.subr.bf16.mxu0 0
        %1071 = vmatpush1.bf16.xpose.msra.mxu0 0
        %1072 = vmatprep.subr.bf16.mxu0 0
        %1073 = vmatpush1.bf16.xpose.msra.mxu0 0
        %1074 = vmatprep.subr.bf16.mxu0 0
        %1075 = vmatpush1.bf16.xpose.msra.mxu0 0
        %1076 = vmatprep.subr.bf16.mxu0 0
        %1077 = vmatpush1.bf16.xpose.msra.mxu0 0
        %1078 = vmatprep.subr.bf16.mxu0 0
        %1079 = vmatpush1.bf16.xpose.msra.mxu0 0
        %1080 = vmatprep.subr.bf16.mxu0 0
        %1081 = vmatpush1.bf16.xpose.msra.mxu0 0
        %1082 = vmatprep.mubr.bf16.mxu0 0
        %1083 = vmatmul.mubr.bf16.gmra.mrb[0].mxu0 %v1045
        %v1084 = vpop.f32.mrb[0].mxu0
        %v1085 = vadd.f32 %v817, %v1084
        %v1086 = vpop.f32.mrb[0].mxu0
        %v1087 = vpop.f32.mrb[0].mxu0
        %v1088 = vpop.f32.mrb[0].mxu0
        %1089 = vdwg.mxu0
        %v1090 = vsel %vm819, %v1085, -inf
        %1091 = vmax.xlane.f32.xlu0 %v1090
        %v1092 = vpop.xlane.xlu0 %1091
        %v1093 = vsub.f32 %v1085, %v1092
        %v1094 = vmul.f32 %v1093, 1.442695
        %v1095 = vpow.pop %v1094
        %v1096 = vsel %vm819, %v1095, 0.0
        %1097 = vadd.xlane.f32.xlu0 %v1096
        %v1098 = vpop.xlane.xlu0 %1097
        %v1099 = vrcp.pop %v1098
        %v1100 = vmul.f32 %v1095, %v1099
        %v1101 = vadd.f32 %v989, %v1100
        %v1102 = vpack.c.bf16 %v1100, %v1100
        %1103 = vrot.lane.b32.xlu0 %v809, 112
        %v1104 = vpop.permute.xlu0 %1103
        %v1106 = vsel %vm819, %v1102, 0
        %v1109 = vsel %vm882, %v1104, 0
        %1111 = vmatprep.subr.bf16.mxu0 0
        %1112 = vmatpush1.bf16.msra.mxu0 %v1109
        %1113 = vmatprep.subr.bf16.mxu0 0
        %1114 = vmatpush1.bf16.msra.mxu0 0
        %1115 = vmatprep.subr.bf16.mxu0 0
        %1116 = vmatpush1.bf16.msra.mxu0 0
        %1117 = vmatprep.subr.bf16.mxu0 0
        %1118 = vmatpush1.bf16.msra.mxu0 0
        %1119 = vmatprep.subr.bf16.mxu0 0
        %1120 = vmatpush1.bf16.msra.mxu0 0
        %1121 = vmatprep.subr.bf16.mxu0 0
        %1122 = vmatpush1.bf16.msra.mxu0 0
        %1123 = vmatprep.subr.bf16.mxu0 0
        %1124 = vmatpush1.bf16.msra.mxu0 0
        %1125 = vmatprep.subr.bf16.mxu0 0
        %1126 = vmatpush1.bf16.msra.mxu0 0
        %1127 = vmatprep.subr.bf16.mxu0 0
        %1128 = vmatpush1.bf16.msra.mxu0 0
        %1129 = vmatprep.subr.bf16.mxu0 0
        %1130 = vmatpush1.bf16.msra.mxu0 0
        %1131 = vmatprep.subr.bf16.mxu0 0
        %1132 = vmatpush1.bf16.msra.mxu0 0
        %1133 = vmatprep.subr.bf16.mxu0 0
        %1134 = vmatpush1.bf16.msra.mxu0 0
        %1135 = vmatprep.subr.bf16.mxu0 0
        %1136 = vmatpush1.bf16.msra.mxu0 0
        %1137 = vmatprep.subr.bf16.mxu0 0
        %1138 = vmatpush1.bf16.msra.mxu0 0
        %1139 = vmatprep.subr.bf16.mxu0 0
        %1140 = vmatpush1.bf16.msra.mxu0 0
        %1141 = vmatprep.subr.bf16.mxu0 0
        %1142 = vmatpush1.bf16.msra.mxu0 0
        %1143 = vmatprep.mubr.bf16.mxu0 0
        %1144 = vmatmul.mubr.bf16.gmra.mrb[0].mxu0 %v1106
        %v1145 = vpop.f32.mrb[0].mxu0
        %v1146 = vadd.f32 0.0, %v1145
        %v1147 = vpop.f32.mrb[0].mxu0
        %v1148 = vpop.f32.mrb[0].mxu0
        %v1149 = vpop.f32.mrb[0].mxu0
        %1150 = vdwg.mxu0
        %1151 = vrot.lane.b32.xlu0 %v807, 104
        %v1152 = vpop.permute.xlu0 %1151
        %1153 = vrot.lane.b32.xlu0 %v808, 104
        %v1154 = vpop.permute.xlu0 %1153
        %v1156 = vsel %vm819, %v1152, 0
        %v1159 = vsel %vm819, %v1154, 0
        %1161 = vmatprep.subr.bf16.mxu0 0
        %1162 = vmatpush1.bf16.xpose.msra.mxu0 %v1159
        %1163 = vmatprep.subr.bf16.mxu0 0
        %1164 = vmatpush1.bf16.xpose.msra.mxu0 0
        %1165 = vmatprep.subr.bf16.mxu0 0
        %1166 = vmatpush1.bf16.xpose.msra.mxu0 0
        %1167 = vmatprep.subr.bf16.mxu0 0
        %1168 = vmatpush1.bf16.xpose.msra.mxu0 0
        %1169 = vmatprep.subr.bf16.mxu0 0
        %1170 = vmatpush1.bf16.xpose.msra.mxu0 0
        %1171 = vmatprep.subr.bf16.mxu0 0
        %1172 = vmatpush1.bf16.xpose.msra.mxu0 0
        %1173 = vmatprep.subr.bf16.mxu0 0
        %1174 = vmatpush1.bf16.xpose.msra.mxu0 0
        %1175 = vmatprep.subr.bf16.mxu0 0
        %1176 = vmatpush1.bf16.xpose.msra.mxu0 0
        %1177 = vmatprep.subr.bf16.mxu0 0
        %1178 = vmatpush1.bf16.xpose.msra.mxu0 0
        %1179 = vmatprep.subr.bf16.mxu0 0
        %1180 = vmatpush1.bf16.xpose.msra.mxu0 0
        %1181 = vmatprep.subr.bf16.mxu0 0
        %1182 = vmatpush1.bf16.xpose.msra.mxu0 0
        %1183 = vmatprep.subr.bf16.mxu0 0
        %1184 = vmatpush1.bf16.xpose.msra.mxu0 0
        %1185 = vmatprep.subr.bf16.mxu0 0
        %1186 = vmatpush1.bf16.xpose.msra.mxu0 0
        %1187 = vmatprep.subr.bf16.mxu0 0
        %1188 = vmatpush1.bf16.xpose.msra.mxu0 0
        %1189 = vmatprep.subr.bf16.mxu0 0
        %1190 = vmatpush1.bf16.xpose.msra.mxu0 0
        %1191 = vmatprep.subr.bf16.mxu0 0
        %1192 = vmatpush1.bf16.xpose.msra.mxu0 0
        %1193 = vmatprep.mubr.bf16.mxu0 0
        %1194 = vmatmul.mubr.bf16.gmra.mrb[0].mxu0 %v1156
        %v1195 = vpop.f32.mrb[0].mxu0
        %v1196 = vadd.f32 %v817, %v1195
        %v1197 = vpop.f32.mrb[0].mxu0
        %v1198 = vpop.f32.mrb[0].mxu0
        %v1199 = vpop.f32.mrb[0].mxu0
        %1200 = vdwg.mxu0
        %v1201 = vsel %vm819, %v1196, -inf
        %1202 = vmax.xlane.f32.xlu0 %v1201
        %v1203 = vpop.xlane.xlu0 %1202
        %v1204 = vsub.f32 %v1196, %v1203
        %v1205 = vmul.f32 %v1204, 1.442695
        %v1206 = vpow.pop %v1205
        %v1207 = vsel %vm819, %v1206, 0.0
        %1208 = vadd.xlane.f32.xlu0 %v1207
        %v1209 = vpop.xlane.xlu0 %1208
        %v1210 = vrcp.pop %v1209
        %v1211 = vmul.f32 %v1206, %v1210
        %v1212 = vadd.f32 %v1101, %v1211
        %v1213 = vpack.c.bf16 %v1211, %v1211
        %1214 = vrot.lane.b32.xlu0 %v809, 104
        %v1215 = vpop.permute.xlu0 %1214
        %v1217 = vsel %vm819, %v1213, 0
        %v1220 = vsel %vm882, %v1215, 0
        %1222 = vmatprep.subr.bf16.mxu0 0
        %1223 = vmatpush1.bf16.msra.mxu0 %v1220
        %1224 = vmatprep.subr.bf16.mxu0 0
        %1225 = vmatpush1.bf16.msra.mxu0 0
        %1226 = vmatprep.subr.bf16.mxu0 0
        %1227 = vmatpush1.bf16.msra.mxu0 0
        %1228 = vmatprep.subr.bf16.mxu0 0
        %1229 = vmatpush1.bf16.msra.mxu0 0
        %1230 = vmatprep.subr.bf16.mxu0 0
        %1231 = vmatpush1.bf16.msra.mxu0 0
        %1232 = vmatprep.subr.bf16.mxu0 0
        %1233 = vmatpush1.bf16.msra.mxu0 0
        %1234 = vmatprep.subr.bf16.mxu0 0
        %1235 = vmatpush1.bf16.msra.mxu0 0
        %1236 = vmatprep.subr.bf16.mxu0 0
        %1237 = vmatpush1.bf16.msra.mxu0 0
        %1238 = vmatprep.subr.bf16.mxu0 0
        %1239 = vmatpush1.bf16.msra.mxu0 0
        %1240 = vmatprep.subr.bf16.mxu0 0
        %1241 = vmatpush1.bf16.msra.mxu0 0
        %1242 = vmatprep.subr.bf16.mxu0 0
        %1243 = vmatpush1.bf16.msra.mxu0 0
        %1244 = vmatprep.subr.bf16.mxu0 0
        %1245 = vmatpush1.bf16.msra.mxu0 0
        %1246 = vmatprep.subr.bf16.mxu0 0
        %1247 = vmatpush1.bf16.msra.mxu0 0
        %1248 = vmatprep.subr.bf16.mxu0 0
        %1249 = vmatpush1.bf16.msra.mxu0 0
        %1250 = vmatprep.subr.bf16.mxu0 0
        %1251 = vmatpush1.bf16.msra.mxu0 0
        %1252 = vmatprep.subr.bf16.mxu0 0
        %1253 = vmatpush1.bf16.msra.mxu0 0
        %1254 = vmatprep.mubr.bf16.mxu0 0
        %1255 = vmatmul.mubr.bf16.gmra.mrb[0].mxu0 %v1217
        %v1256 = vpop.f32.mrb[0].mxu0
        %v1257 = vadd.f32 0.0, %v1256
        %v1258 = vpop.f32.mrb[0].mxu0
        %v1259 = vpop.f32.mrb[0].mxu0
        %v1260 = vpop.f32.mrb[0].mxu0
        %1261 = vdwg.mxu0
        %1263 = vrot.lane.b32.xlu0 %v1035, 8
        %v1264 = vpop.permute.xlu0 %1263
        %1267 = vrot.lane.b32.xlu0 %v1146, 16
        %v1268 = vpop.permute.xlu0 %1267
        %1271 = vrot.lane.b32.xlu0 %v1257, 24
        %v1272 = vpop.permute.xlu0 %1271
        %v1274 = vsel %vm819, %v921, %v1264
        %vm1275 = vcmask 130048
        %v1276 = vsel %vm1275, %v1274, %v1268
        %vm1277 = vcmask 195584
        %v1278 = vsel %vm1277, %v1276, %v1272
        %v1279 = vpack.c.bf16 %v1278, %v1278
        %v1280 = vld [vmem:[%s6] sm:$0xf]
        %v1281 = vld [vmem:[%s6 + $0x4] sm:$0xf]
        %v1282 = vld [vmem:[%s6 + $0x8] sm:$0xf]
        %v1283 = vld [vmem:[%s6 + $0xc] sm:$0xf]
        %v1284 = vld [vmem:[%s7] sm:$0x1]
        %v1286 = vlaneseq
        %v1287 = vshrl.u32 %v1286, 7
        %v1288 = vsub.s32 0, %v1287
        %v1289 = vrot.slane %v1284, %v1288
        %v1295 = vunpack.c.l.b16 %v1280
        %v1296 = vunpack.c.l.b16 %v1281
        %v1297 = vunpack.c.l.b16 %v1282
        %v1298 = vunpack.c.l.b16 %v1283
        %v1299 = vpack.c.b16 %v1296, %v1295
        %v1300 = vpack.c.b16 %v1298, %v1297
        %v1304 = vsel %vm658, %v1279, 0
        %1306 = vmatprep.subr.bf16.mxu0 0
        %1307 = vmatpush1.bf16.msra.mxu0 %v1299
        %1308 = vmatprep.subr.bf16.mxu0 0
        %1309 = vmatpush1.bf16.msra.mxu0 %v1300
        %1310 = vmatprep.subr.bf16.mxu0 0
        %1311 = vmatpush1.bf16.msra.mxu0 0
        %1312 = vmatprep.subr.bf16.mxu0 0
        %1313 = vmatpush1.bf16.msra.mxu0 0
        %1314 = vmatprep.subr.bf16.mxu0 0
        %1315 = vmatpush1.bf16.msra.mxu0 0
        %1316 = vmatprep.subr.bf16.mxu0 0
        %1317 = vmatpush1.bf16.msra.mxu0 0
        %1318 = vmatprep.subr.bf16.mxu0 0
        %1319 = vmatpush1.bf16.msra.mxu0 0
        %1320 = vmatprep.subr.bf16.mxu0 0
        %1321 = vmatpush1.bf16.msra.mxu0 0
        %1322 = vmatprep.subr.bf16.mxu0 0
        %1323 = vmatpush1.bf16.msra.mxu0 0
        %1324 = vmatprep.subr.bf16.mxu0 0
        %1325 = vmatpush1.bf16.msra.mxu0 0
        %1326 = vmatprep.subr.bf16.mxu0 0
        %1327 = vmatpush1.bf16.msra.mxu0 0
        %1328 = vmatprep.subr.bf16.mxu0 0
        %1329 = vmatpush1.bf16.msra.mxu0 0
        %1330 = vmatprep.subr.bf16.mxu0 0
        %1331 = vmatpush1.bf16.msra.mxu0 0
        %1332 = vmatprep.subr.bf16.mxu0 0
        %1333 = vmatpush1.bf16.msra.mxu0 0
        %1334 = vmatprep.subr.bf16.mxu0 0
        %1335 = vmatpush1.bf16.msra.mxu0 0
        %1336 = vmatprep.subr.bf16.mxu0 0
        %1337 = vmatpush1.bf16.msra.mxu0 0
        %1338 = vmatprep.mubr.bf16.mxu0 0
        %1339 = vmatmul.mubr.bf16.gmra.mrb[0].mxu0 %v1304
        %v1340 = vpop.f32.mrb[0].mxu0
        %v1341 = vadd.f32 %v1289, %v1340
        %v1342 = vpop.f32.mrb[0].mxu0
        %v1343 = vpop.f32.mrb[0].mxu0
        %v1344 = vpop.f32.mrb[0].mxu0
        %1345 = vdwg.mxu0
        %v1346 = vmul.f32 %v1212, 0.25
        %1347 = vst.msk [vmem:[%s611] sm:$0xff] %vm819, %v1346
        %v1348 = vld [vmem:[%s8] sm:$0x1]
        %v1349 = vld [vmem:[%s9] sm:$0x1]
        %v1350 = vsel %vm658, %v1341, 0.0
        %1351 = vadd.xlane.f32.xlu0 %v1350
        %v1352 = vpop.xlane.xlu0 %1351
        %v1353 = vrcp.pop 32.0
        %v1354 = vmul.f32 %v1352, %v1353
        %v1355 = vsub.f32 %v1341, %v1354
        %v1356 = vmul.f32 %v1355, %v1355
        %v1357 = vsel %vm658, %v1356, 0.0
        %1358 = vadd.xlane.f32.xlu0 %v1357
        %v1359 = vpop.xlane.xlu0 %1358
        %v1360 = vmul.f32 %v1359, %v1353
        %v1361 = vadd.f32 %v1360, 1e-05
        %v1362 = vrsqrt.pop %v1361
        %v1363 = vmul.f32 %v1355, %v1362
        %v1365 = vlaneseq
        %v1366 = vshrl.u32 %v1365, 7
        %v1367 = vsub.s32 0, %v1366
        %v1368 = vrot.slane %v1348, %v1367
        %v1370 = vmul.f32 %v1363, %v1368
        %v1372 = vlaneseq
        %v1373 = vshrl.u32 %v1372, 7
        %v1374 = vsub.s32 0, %v1373
        %v1375 = vrot.slane %v1349, %v1374
        %v1377 = vadd.f32 %v1370, %v1375
        %v1378 = vadd.f32 %v631, %v1377
        %v1379 = vld [vmem:[%s10] sm:$0x1]
        %v1380 = vld [vmem:[%s11] sm:$0x1]
        %v1381 = vsel %vm658, %v1378, 0.0
        %1382 = vadd.xlane.f32.xlu0 %v1381
        %v1383 = vpop.xlane.xlu0 %1382
        %v1384 = vmul.f32 %v1383, %v1353
        %v1385 = vsub.f32 %v1378, %v1384
        %v1386 = vmul.f32 %v1385, %v1385
        %v1387 = vsel %vm658, %v1386, 0.0
        %1388 = vadd.xlane.f32.xlu0 %v1387
        %v1389 = vpop.xlane.xlu0 %1388
        %v1390 = vmul.f32 %v1389, %v1353
        %v1391 = vadd.f32 %v1390, 1e-05
        %v1392 = vrsqrt.pop %v1391
        %v1393 = vmul.f32 %v1385, %v1392
        %v1395 = vlaneseq
        %v1396 = vshrl.u32 %v1395, 7
        %v1397 = vsub.s32 0, %v1396
        %v1398 = vrot.slane %v1379, %v1397
        %v1400 = vmul.f32 %v1393, %v1398
        %v1402 = vlaneseq
        %v1403 = vshrl.u32 %v1402, 7
        %v1404 = vsub.s32 0, %v1403
        %v1405 = vrot.slane %v1380, %v1404
        %v1407 = vadd.f32 %v1400, %v1405
        %v1408 = vpack.c.bf16 %v1407, %v1407
        %v1409 = vld [vmem:[%s12] sm:$0xf]
        %v1410 = vld [vmem:[%s12 + $0x4] sm:$0xf]
        %v1411 = vld [vmem:[%s12 + $0x8] sm:$0xf]
        %v1412 = vld [vmem:[%s12 + $0xc] sm:$0xf]
        %v1413 = vld [vmem:[%s13] sm:$0x1]
        %v1415 = vlaneseq
        %v1416 = vshrl.u32 %v1415, 7
        %v1417 = vsub.s32 0, %v1416
        %v1418 = vrot.slane %v1413, %v1417
        %v1424 = vunpack.c.l.b16 %v1409
        %v1425 = vunpack.c.l.b16 %v1410
        %v1426 = vunpack.c.l.b16 %v1411
        %v1427 = vunpack.c.l.b16 %v1412
        %v1428 = vpack.c.b16 %v1425, %v1424
        %v1429 = vpack.c.b16 %v1427, %v1426
        %v1433 = vsel %vm658, %v1408, 0
        %1435 = vmatprep.subr.bf16.mxu0 0
        %1436 = vmatpush1.bf16.msra.mxu0 %v1428
        %1437 = vmatprep.subr.bf16.mxu0 0
        %1438 = vmatpush1.bf16.msra.mxu0 %v1429
        %1439 = vmatprep.subr.bf16.mxu0 0
        %1440 = vmatpush1.bf16.msra.mxu0 0
        %1441 = vmatprep.subr.bf16.mxu0 0
        %1442 = vmatpush1.bf16.msra.mxu0 0
        %1443 = vmatprep.subr.bf16.mxu0 0
        %1444 = vmatpush1.bf16.msra.mxu0 0
        %1445 = vmatprep.subr.bf16.mxu0 0
        %1446 = vmatpush1.bf16.msra.mxu0 0
        %1447 = vmatprep.subr.bf16.mxu0 0
        %1448 = vmatpush1.bf16.msra.mxu0 0
        %1449 = vmatprep.subr.bf16.mxu0 0
        %1450 = vmatpush1.bf16.msra.mxu0 0
        %1451 = vmatprep.subr.bf16.mxu0 0
        %1452 = vmatpush1.bf16.msra.mxu0 0
        %1453 = vmatprep.subr.bf16.mxu0 0
        %1454 = vmatpush1.bf16.msra.mxu0 0
        %1455 = vmatprep.subr.bf16.mxu0 0
        %1456 = vmatpush1.bf16.msra.mxu0 0
        %1457 = vmatprep.subr.bf16.mxu0 0
        %1458 = vmatpush1.bf16.msra.mxu0 0
        %1459 = vmatprep.subr.bf16.mxu0 0
        %1460 = vmatpush1.bf16.msra.mxu0 0
        %1461 = vmatprep.subr.bf16.mxu0 0
        %1462 = vmatpush1.bf16.msra.mxu0 0
        %1463 = vmatprep.subr.bf16.mxu0 0
        %1464 = vmatpush1.bf16.msra.mxu0 0
        %1465 = vmatprep.subr.bf16.mxu0 0
        %1466 = vmatpush1.bf16.msra.mxu0 0
        %1467 = vmatprep.mubr.bf16.mxu0 0
        %1468 = vmatmul.mubr.bf16.gmra.mrb[0].mxu0 %v1433
        %v1469 = vpop.f32.mrb[0].mxu0
        %v1470 = vadd.f32 %v1418, %v1469
        %v1471 = vpop.f32.mrb[0].mxu0
        %v1472 = vpop.f32.mrb[0].mxu0
        %v1473 = vpop.f32.mrb[0].mxu0
        %1474 = vdwg.mxu0
        %v1475 = vmul.f32 %v1470, 1.702
        %v1476 = vxor.u32 %v1475, 2147483648
        %v1477 = vmul.f32 %v1476, 1.442695
        %v1478 = vpow.pop %v1477
        %v1479 = vadd.f32 %v1478, 1.0
        %v1480 = vrcp.pop %v1479
        %v1481 = vmul.f32 1.0, %v1480
        %v1482 = vmul.f32 %v1470, %v1481
        %v1483 = vpack.c.bf16 %v1482, %v1482
        %v1484 = vld [vmem:[%s14] sm:$0xf]
        %v1485 = vld [vmem:[%s14 + $0x4] sm:$0xf]
        %v1486 = vld [vmem:[%s14 + $0x8] sm:$0xf]
        %v1487 = vld [vmem:[%s14 + $0xc] sm:$0xf]
        %v1488 = vld [vmem:[%s14 + $0x10] sm:$0xf]
        %v1489 = vld [vmem:[%s14 + $0x14] sm:$0xf]
        %v1490 = vld [vmem:[%s14 + $0x18] sm:$0xf]
        %v1491 = vld [vmem:[%s14 + $0x1c] sm:$0xf]
        %v1492 = vld [vmem:[%s14 + $0x20] sm:$0xf]
        %v1493 = vld [vmem:[%s14 + $0x24] sm:$0xf]
        %v1494 = vld [vmem:[%s14 + $0x28] sm:$0xf]
        %v1495 = vld [vmem:[%s14 + $0x2c] sm:$0xf]
        %v1496 = vld [vmem:[%s14 + $0x30] sm:$0xf]
        %v1497 = vld [vmem:[%s14 + $0x34] sm:$0xf]
        %v1498 = vld [vmem:[%s14 + $0x38] sm:$0xf]
        %v1499 = vld [vmem:[%s14 + $0x3c] sm:$0xf]
        %v1500 = vld [vmem:[%s15] sm:$0x1]
        %v1502 = vlaneseq
        %v1503 = vshrl.u32 %v1502, 7
        %v1504 = vsub.s32 0, %v1503
        %v1505 = vrot.slane %v1500, %v1504
        %v1523 = vunpack.c.l.b16 %v1484
        %v1524 = vunpack.c.l.b16 %v1485
        %v1525 = vunpack.c.l.b16 %v1486
        %v1526 = vunpack.c.l.b16 %v1487
        %v1527 = vunpack.c.l.b16 %v1488
        %v1528 = vunpack.c.l.b16 %v1489
        %v1529 = vunpack.c.l.b16 %v1490
        %v1530 = vunpack.c.l.b16 %v1491
        %v1531 = vunpack.c.l.b16 %v1492
        %v1532 = vunpack.c.l.b16 %v1493
        %v1533 = vunpack.c.l.b16 %v1494
        %v1534 = vunpack.c.l.b16 %v1495
        %v1535 = vunpack.c.l.b16 %v1496
        %v1536 = vunpack.c.l.b16 %v1497
        %v1537 = vunpack.c.l.b16 %v1498
        %v1538 = vunpack.c.l.b16 %v1499
        %v1539 = vpack.c.b16 %v1524, %v1523
        %v1540 = vpack.c.b16 %v1526, %v1525
        %v1541 = vpack.c.b16 %v1528, %v1527
        %v1542 = vpack.c.b16 %v1530, %v1529
        %v1543 = vpack.c.b16 %v1532, %v1531
        %v1544 = vpack.c.b16 %v1534, %v1533
        %v1545 = vpack.c.b16 %v1536, %v1535
        %v1546 = vpack.c.b16 %v1538, %v1537
        %1555 = vmatprep.subr.bf16.mxu0 0
        %1556 = vmatpush1.bf16.msra.mxu0 %v1539
        %1557 = vmatprep.subr.bf16.mxu0 0
        %1558 = vmatpush1.bf16.msra.mxu0 %v1540
        %1559 = vmatprep.subr.bf16.mxu0 0
        %1560 = vmatpush1.bf16.msra.mxu0 %v1541
        %1561 = vmatprep.subr.bf16.mxu0 0
        %1562 = vmatpush1.bf16.msra.mxu0 %v1542
        %1563 = vmatprep.subr.bf16.mxu0 0
        %1564 = vmatpush1.bf16.msra.mxu0 %v1543
        %1565 = vmatprep.subr.bf16.mxu0 0
        %1566 = vmatpush1.bf16.msra.mxu0 %v1544
        %1567 = vmatprep.subr.bf16.mxu0 0
        %1568 = vmatpush1.bf16.msra.mxu0 %v1545
        %1569 = vmatprep.subr.bf16.mxu0 0
        %1570 = vmatpush1.bf16.msra.mxu0 %v1546
        %1571 = vmatprep.subr.bf16.mxu0 0
        %1572 = vmatpush1.bf16.msra.mxu0 0
        %1573 = vmatprep.subr.bf16.mxu0 0
        %1574 = vmatpush1.bf16.msra.mxu0 0
        %1575 = vmatprep.subr.bf16.mxu0 0
        %1576 = vmatpush1.bf16.msra.mxu0 0
        %1577 = vmatprep.subr.bf16.mxu0 0
        %1578 = vmatpush1.bf16.msra.mxu0 0
        %1579 = vmatprep.subr.bf16.mxu0 0
        %1580 = vmatpush1.bf16.msra.mxu0 0
        %1581 = vmatprep.subr.bf16.mxu0 0
        %1582 = vmatpush1.bf16.msra.mxu0 0
        %1583 = vmatprep.subr.bf16.mxu0 0
        %1584 = vmatpush1.bf16.msra.mxu0 0
        %1585 = vmatprep.subr.bf16.mxu0 0
        %1586 = vmatpush1.bf16.msra.mxu0 0
        %1587 = vmatprep.mubr.bf16.mxu0 0
        %1588 = vmatmul.mubr.bf16.gmra.mrb[0].mxu0 %v1483
        %v1589 = vpop.f32.mrb[0].mxu0
        %v1590 = vadd.f32 %v1505, %v1589
        %v1591 = vpop.f32.mrb[0].mxu0
        %v1592 = vpop.f32.mrb[0].mxu0
        %v1593 = vpop.f32.mrb[0].mxu0
        %1594 = vdwg.mxu0
        %v1595 = vadd.f32 %v1378, %v1590
        %1596 = vst.msk [vmem:[%s604] sm:$0xff] %vm658, %v1595
        %s1597 = sand.u32 %s415, 1
        %s1598 = scalar_lea.sflag [#allocation3], %s1597
        %s1599 = sand.u32 %s415, 1
        %s1600 = smul.addr %s1599, 8
        %s1601 = scalar_lea.vmem [#allocation2], %s1600
        %s1602 = sand.u32 %s443, 1
        %s1603 = scalar_lea.sflag [#allocation5], %s1602
        %s1604 = sand.u32 %s443, 1
        %s1605 = smul.addr %s1604, 8
        %s1606 = scalar_lea.vmem [#allocation4], %s1605
        // Predicated region
        $region85: #{tpu_custom_call.1} parent=83 // pred_check
          %p1607 = pneg %p425
        $region86: #{tpu_custom_call.1} parent=83 // pred_check_branch
          %1609 = sbr.rel (%p1607) target = $region88
        $region87: #{tpu_custom_call.1} parent=83 // pred_region
          %s1611 = ssub.s32 128, 128
          %1612 = vsyncadd %s1598, %s1611
          %s1613 = sadd.s32 %s40, %s39
          %s1614 = smul.addr %s1613, 128
          %s1615 = scalar_lea.hbm %s16, %s1614
          %s1617 = sshll.u32 %s1601, 4
          %s1618 = int_to_ptr.vmem [resolvable:$true] %s1617
          %1620 = dma.vmem_to_hbm [thread:$0]  %s1618, 128, %s1615, %s1598
        $region88: #{tpu_custom_call.1} parent=83 // pred_fallthru
          _
        // Predicated region
        $region89: #{tpu_custom_call.1} parent=83 // pred_check
          %p1621 = pneg %p453
        $region90: #{tpu_custom_call.1} parent=83 // pred_check_branch
          %1623 = sbr.rel (%p1621) target = $region92
        $region91: #{tpu_custom_call.1} parent=83 // pred_region
          %s1625 = ssub.s32 128, 128
          %1626 = vsyncadd %s1603, %s1625
          %s1627 = sadd.s32 %s40, %s39
          %s1628 = smul.addr %s1627, 128
          %s1629 = scalar_lea.hbm %s17, %s1628
          %s1631 = sshll.u32 %s1606, 4
          %s1632 = int_to_ptr.vmem [resolvable:$true] %s1631
          %1634 = dma.vmem_to_hbm [thread:$0]  %s1632, 128, %s1629, %s1603
        $region92: #{tpu_custom_call.1} parent=83 // pred_fallthru
          _
      $region84: #{tpu_custom_call.1} parent=5 // pred_fallthru
        _
      %p1635 = scmp.le.s32.totalorder 2, %s30
      // Predicated region
      $region93: #{tpu_custom_call.1} parent=5 // pred_check
        %p1636 = pneg %p1635
      $region94: #{tpu_custom_call.1} parent=5 // pred_check_branch
        %1638 = sbr.rel (%p1636) target = $region96
      $region95: #{tpu_custom_call.1} parent=5 // pred_region
        %s1639 = ssub.s32 %s30, 2
        // Predicated region
        $region97: #{tpu_custom_call.1} parent=95 // pred_check
          %p1640 = pneg %p431
        $region98: #{tpu_custom_call.1} parent=95 // pred_check_branch
          %1642 = sbr.rel (%p1640) target = $region100
        $region99: #{tpu_custom_call.1} parent=95 // pred_region
          %s1643 = sand.u32 %s416, 1
          %s1644 = scalar_lea.sflag [#allocation3], %s1643
          %s1645 = sand.u32 %s416, 1
          %s1646 = smul.addr %s1645, 8
          %s1647 = scalar_lea.vmem [#allocation2], %s1646
          %1648 = dma.done %s1644, 128
        $region100: #{tpu_custom_call.1} parent=95 // pred_fallthru
          _
        // Predicated region
        $region101: #{tpu_custom_call.1} parent=95 // pred_check
          %p1649 = pneg %p459
        $region102: #{tpu_custom_call.1} parent=95 // pred_check_branch
          %1651 = sbr.rel (%p1649) target = $region104
        $region103: #{tpu_custom_call.1} parent=95 // pred_region
          %s1652 = sand.u32 %s444, 1
          %s1653 = scalar_lea.sflag [#allocation5], %s1652
          %s1654 = sand.u32 %s444, 1
          %s1655 = smul.addr %s1654, 8
          %s1656 = scalar_lea.vmem [#allocation4], %s1655
          %1657 = dma.done %s1653, 128
        $region104: #{tpu_custom_call.1} parent=95 // pred_fallthru
          _
      $region96: #{tpu_custom_call.1} parent=5 // pred_fallthru
        _
    $region6: #{tpu_custom_call.1} parent=1 // loop_footer
      %s34 = sadd.s32 1, %s30
    $region7: #{tpu_custom_call.1} parent=1 // loop_footer_branch
      %29 = sbr.rel target = $region3
    $region8: #{tpu_custom_call.1} parent=1 // loop_exit
      _
    %1658 = vsyncpa [#allocation3], 1
    %s1659 = scalar_lea.sflag [#allocation3], 1
    %1660 = vsyncpa %s1659, 1
    %1661 = vsyncpa [#allocation5], 1
    %s1662 = scalar_lea.sflag [#allocation5], 1
    %1663 = vsyncpa %s1662, 1

</llo_original>
